<compile_context>
chip_gen: v7x
topology: tpu7x:2x2x1
jax: 0.10.0
libtpu: 0.0.40
codegen_flags: <defaults>
</compile_context>

<pallas_src>
import functools

import numpy as np

import jax
import jax.numpy as jnp
from jax import lax
from jax.experimental import pallas as pl
from jax.experimental.pallas import tpu as pltpu


def _round_up(x, m):
    return ((x + m - 1) // m) * m


# --------------------------------------------------------------------------- #
# Fused kernel: for one batch element, on the coarse (H x W) grid flattened to the
# lane axis (padded grid Hp*Wp, rounded up to a 128-multiple computed span LC):
#   1. conv1 (subpel + identity-upsample branches, one M=128 matmul as 3 per-ky dots)
#   2. LeakyReLU + zero-mask of the halo ring on the main branch, parked in VMEM scratch
#   3. conv2-with-PixelShuffle-folded-in: 9 accumulating dots over coarse offsets
#   4. inverse GDN (block-diagonal gamma over (channel, phase)) + residual add
# Output rows are the 4*out_ch pre-shuffle channels (c*4 + py*2 + px); the single
# remaining pixel shuffle happens once in the wrapper.
# --------------------------------------------------------------------------- #
def _fused_kernel(mask_ref, x_ref, w1_ref, b1_ref, w2_ref, b2_ref, g_ref, beta_ref,
                  o_ref, scr_ref, *, wp, lc, pad_l, lbuf, oc4):
    x = x_ref[0]                                        # (CIN_pad, LBUF)

    # ---- conv1: subpel + upsample branches share one matmul (M = 2*oc4 = 128) ------- #
    # 3 accumulating dots, one per kernel row ky; K = 3*CIN_pad. Each tap slice is a
    # whole 8-sublane group, so the 3-slice stack needs no sublane shuffles.
    y1 = None
    for ky in range(3):
        s = pad_l + (ky - 1) * wp - 1                   # start of the dx = -1 tap window
        rhs = jnp.concatenate([x[:, s:s + lc],
                               x[:, s + 1:s + 1 + lc],
                               x[:, s + 2:s + 2 + lc]], axis=0)   # (3*CIN_pad, LC)
        d = jnp.dot(w1_ref[ky], rhs, preferred_element_type=jnp.float32)
        y1 = d if y1 is None else y1 + d
    y1 = y1 + b1_ref[...]                               # (2*oc4, LC)

    main = y1[:oc4]                                     # subpel branch (pre-shuffle layout)
    iden = y1[oc4:]                                     # identity branch (pre-shuffle layout)
    main = jnp.where(main >= 0, main, 0.01 * main)      # LeakyReLU(0.01), main branch only
    main = main * mask_ref[...]                         # zero halo ring / tail lanes

    # ---- park masked main branch in VMEM scratch so conv2 reads shifted windows ----- #
    scr_ref[:, :pad_l] = jnp.zeros((oc4, pad_l), jnp.float32)
    scr_ref[:, pad_l:pad_l + lc] = main                 # 128-aligned, lane-dense store
    scr_ref[:, pad_l + lc:] = jnp.zeros((oc4, lbuf - pad_l - lc), jnp.float32)

    # ---- conv2 with PixelShuffle folded in: 9 accumulating dots over coarse offsets -- #
    y2 = None
    k = 0
    for ey in (-1, 0, 1):
        for ex in (-1, 0, 1):
            s = pad_l + ey * wp + ex
            d = jnp.dot(w2_ref[k], scr_ref[:, s:s + lc],
                        preferred_element_type=jnp.float32)
            y2 = d if y2 is None else y2 + d
            k += 1
    y2 = y2 + b2_ref[...]                               # (oc4, LC)

    # ---- inverse GDN (per shuffled pixel == per (coarse lane, phase)) + residual ----- #
    norm = jnp.dot(g_ref[...], y2 * y2, preferred_element_type=jnp.float32) + beta_ref[...]
    out = y2 * jnp.sqrt(norm) + iden
    o_ref[0] = out.astype(o_ref.dtype)


# --------------------------------------------------------------------------- #
# Parameter preparation (hoisted out of the per-call path: call once).
# Folds the GDN NonNegativeParametrizer (LowerBound fwd = max) into static params,
# builds the per-ky conv1 matrices (channels padded to 8), and builds the
# phase-decomposed conv2 weights that absorb the PixelShuffle.
# --------------------------------------------------------------------------- #
def prepare_params(w_subpel, b_subpel, w_up, b_up, w_conv, b_conv,
                   beta_param, gamma_param, *, r=2,
                   beta_min=1e-6, reparam_offset=2.0 ** -18):
    ped = reparam_offset ** 2
    beta_eff = jnp.maximum(beta_param, (beta_min + ped) ** 0.5) ** 2 - ped
    gamma_eff = jnp.maximum(gamma_param, ped ** 0.5) ** 2 - ped

    oc4, cin = w_subpel.shape[0], w_subpel.shape[1]
    rr = r * r
    oc = oc4 // rr
    cin_pad = _round_up(max(cin, 8), 8)

    # conv1 (both branches): per-ky matrices, columns ordered (dx, ci), ci zero-padded.
    w_cat = jnp.concatenate([w_subpel, w_up], axis=0)               # (2*oc4, ci, ky, kx)
    w1 = jnp.transpose(w_cat, (2, 0, 3, 1))                         # (ky, out, kx, ci)
    w1 = jnp.pad(w1, ((0, 0), (0, 0), (0, 0), (0, cin_pad - cin)))
    w1 = w1.reshape(3, 2 * oc4, 3 * cin_pad)
    b1 = jnp.concatenate([b_subpel, b_up]).reshape(-1, 1)

    # conv2 with PixelShuffle folded in (phase decomposition over the coarse grid):
    #   out[o, r*h+py, r*w+px] = sum_{dy,dx} w_conv[o,c,dy+1,dx+1]
    #                            * main[c*rr + qy*r + qx, h+ey, w+ex]
    # with dy = r*ey + qy - py (same relation for the x axis). sel encodes that mapping.
    sel = np.zeros((3, r, r, 3), np.float32)        # (ey+1, p, q, dy+1)
    for a in range(3):
        for p in range(r):
            for q in range(r):
                d = r * (a - 1) + q - p
                if -1 <= d <= 1:
                    sel[a, p, q, d + 1] = 1.0
    sel = jnp.asarray(sel)
    w2 = jnp.einsum("ocyx,apqy,brsx->aboprcqs", w_conv, sel, sel)
    w2 = w2.reshape(9, oc * rr, oc * rr)            # offset index k = (ey+1)*3 + (ex+1)
    b2 = jnp.repeat(b_conv, rr).reshape(-1, 1)

    # GDN mixes channels at a fixed shuffled pixel == fixed (coarse lane, phase).
    gamma64 = jnp.kron(gamma_eff, jnp.eye(rr, dtype=gamma_eff.dtype))
    beta64 = jnp.repeat(beta_eff, rr).reshape(-1, 1)

    return {"w1": w1, "b1": b1, "w2": w2, "b2": b2,
            "gamma64": gamma64, "beta64": beta64,
            "gamma": gamma_eff, "beta": beta_eff}


# --------------------------------------------------------------------------- #
# Forward pass (NCHW in / NCHW out), semantics of ResidualBlockUpsample.forward.
# --------------------------------------------------------------------------- #
def residual_block_upsample_forward(x, params, *, r=2):
    n, cin, h, w = x.shape
    w1, b1 = params["w1"], params["b1"]
    w2, b2 = params["w2"], params["b2"]
    g64, beta64 = params["gamma64"], params["beta64"]
    cin_pad = w1.shape[-1] // 3
    oc4 = w2.shape[1]
    oc = oc4 // (r * r)
    assert w1.shape == (3, 2 * oc4, 3 * cin_pad)

    wp, hp = w + 2, h + 2
    l0 = hp * wp                                    # flattened padded coarse grid
    lc = _round_up(l0, 128)                         # lane-dense computed span
    pad_l = max(128, _round_up(wp + 1, 128))        # left margin (lane aligned)
    lbuf = _round_up(pad_l + lc + wp + 1, 128)      # full channel-major buffer length

    # zero-pad: 1-px spatial ring, channels cin -> cin_pad, lane margins (XLA fuses).
    xp = jnp.pad(x, ((0, 0), (0, cin_pad - cin), (1, 1), (1, 1))).reshape(n, cin_pad, l0)
    xb = jnp.pad(xp, ((0, 0), (0, 0), (pad_l, lbuf - pad_l - l0)))

    # validity mask over the computed span (1 at interior coarse pixels, 0 at halo/tail).
    pos = jnp.arange(lc, dtype=jnp.int32)
    row, col = pos // wp, pos % wp
    mask = ((pos < l0) & (row >= 1) & (row <= h) & (col >= 1) & (col <= w))
    mask = mask.astype(jnp.float32).reshape(1, lc)

    y = pl.pallas_call(
        functools.partial(_fused_kernel, wp=wp, lc=lc, pad_l=pad_l, lbuf=lbuf, oc4=oc4),
        out_shape=jax.ShapeDtypeStruct((n, oc4, lc), jnp.float32),
        grid=(n,),
        in_specs=[
            pl.BlockSpec((1, lc), lambda i: (0, 0)),
            pl.BlockSpec((1, cin_pad, lbuf), lambda i: (i, 0, 0)),
            pl.BlockSpec((3, 2 * oc4, 3 * cin_pad), lambda i: (0, 0, 0)),
            pl.BlockSpec((2 * oc4, 1), lambda i: (0, 0)),
            pl.BlockSpec((9, oc4, oc4), lambda i: (0, 0, 0)),
            pl.BlockSpec((oc4, 1), lambda i: (0, 0)),
            pl.BlockSpec((oc4, oc4), lambda i: (0, 0)),
            pl.BlockSpec((oc4, 1), lambda i: (0, 0)),
        ],
        out_specs=pl.BlockSpec((1, oc4, lc), lambda i: (i, 0, 0)),
        scratch_shapes=[pltpu.VMEM((oc4, lbuf), jnp.float32)],
        compiler_params=pltpu.CompilerParams(dimension_semantics=("parallel",)),
    )(mask, xb, w1, b1, w2, b2, g64, beta64)

    # interior extraction + the single remaining pixel shuffle (one fused XLA relayout).
    yv = y[:, :, wp + 1:wp + 1 + h * wp].reshape(n, oc4, h, wp)[:, :, :, :w]
    t = yv.reshape(n, oc, r, r, h, w)
    return jnp.transpose(t, (0, 1, 4, 2, 5, 3)).reshape(n, oc, r * h, r * w)


# --------------------------------------------------------------------------- #
# Pure-JAX reference (independent of the kernel layout / phase-decomposition choices).
# --------------------------------------------------------------------------- #
def _reference_forward(x, w_s, b_s, w_u, b_u, w_c, b_c, gamma_eff, beta_eff, r=2):
    def conv(v, wt, b):
        y = lax.conv_general_dilated(
            v, wt, window_strides=(1, 1), padding=((1, 1), (1, 1)),
            dimension_numbers=("NCHW", "OIHW", "NCHW"),
            precision=lax.Precision.HIGHEST)
        return y + b[None, :, None, None]

    def shuffle(v):
        nn, cc, hh, ww = v.shape
        c = cc // (r * r)
        v = v.reshape(nn, c, r, r, hh, ww)
        return jnp.transpose(v, (0, 1, 4, 2, 5, 3)).reshape(nn, c, hh * r, ww * r)

    out = shuffle(conv(x, w_s, b_s))
    out = jnp.where(out >= 0, out, 0.01 * out)          # LeakyReLU(0.01)
    out = conv(out, w_c, b_c)
    c = out.shape[1]
    norm = lax.conv_general_dilated(
        out * out, gamma_eff.reshape(c, c, 1, 1), (1, 1), ((0, 0), (0, 0)),
        dimension_numbers=("NCHW", "OIHW", "NCHW"),
        precision=lax.Precision.HIGHEST) + beta_eff[None, :, None, None]
    out = out * jnp.sqrt(norm)                          # inverse GDN
    identity = shuffle(conv(x, w_u, b_u))
    return out + identity


# ----------------------------------- main ---------------------------------- #
if __name__ == "__main__":
    in_ch, out_ch, r = 4, 16, 2
    N, H, W = 2, 16, 16
    oc4 = out_ch * r * r  # 64 conv-output channels per branch

    key = jax.random.PRNGKey(0)
    ks = jax.random.split(key, 7)
    x = jax.random.normal(ks[0], (N, in_ch, H, W), dtype=jnp.float32)
    # nn.Conv2d layouts: weight (Cout, Cin, kH, kW), bias (Cout,)
    w_subpel = 0.1 * jax.random.normal(ks[1], (oc4, in_ch, 3, 3), jnp.float32)
    b_subpel = 0.1 * jax.random.normal(ks[2], (oc4,), jnp.float32)
    w_up = 0.1 * jax.random.normal(ks[3], (oc4, in_ch, 3, 3), jnp.float32)
    b_up = 0.1 * jax.random.normal(ks[4], (oc4,), jnp.float32)
    w_conv = 0.1 * jax.random.normal(ks[5], (out_ch, out_ch, 3, 3), jnp.float32)
    b_conv = 0.1 * jax.random.normal(ks[6], (out_ch,), jnp.float32)

    # GDN parameters at their PyTorch-default initialization (reparametrized form).
    ped = 2.0 ** -36
    beta_param = jnp.sqrt(jnp.ones((out_ch,), jnp.float32) + ped)
    gamma_param = jnp.sqrt(0.1 * jnp.eye(out_ch, dtype=jnp.float32) + ped)

    # Weight / GDN layout prep hoisted out of the per-call (jitted) path.
    params = prepare_params(w_subpel, b_subpel, w_up, b_up, w_conv, b_conv,
                            beta_param, gamma_param, r=r)

    fwd = jax.jit(functools.partial(residual_block_upsample_forward, r=r))
    out = jax.block_until_ready(fwd(x, params))
    assert out.shape == (N, out_ch, r * H, r * W), out.shape

    ref = _reference_forward(x, w_subpel, b_subpel, w_up, b_up, w_conv, b_conv,
                             params["gamma"], params["beta"], r=r)
    max_err = float(jnp.max(jnp.abs(out - ref)))
    assert jnp.allclose(out, ref, atol=1e-3, rtol=1e-3), max_err

    # TODO(synk): LowerBound's custom backward (straight-through-style gradient) is
    # training-only autograd and is not part of this forward-pass kernel.
    print("KERNEL_OK")
</pallas_src>

<mosaic_0001>
module attributes {stable_mosaic.version = 11 : i64} {
  func.func @_fused_kernel(%arg0: i32, %arg1: memref<1x384xf32, #tpu.memory_space<vmem>>, %arg2: memref<1x8x640xf32, #tpu.memory_space<vmem>>, %arg3: memref<3x128x24xf32, #tpu.memory_space<vmem>>, %arg4: memref<128x1xf32, #tpu.memory_space<vmem>>, %arg5: memref<9x64x64xf32, #tpu.memory_space<vmem>>, %arg6: memref<64x1xf32, #tpu.memory_space<vmem>>, %arg7: memref<64x64xf32, #tpu.memory_space<vmem>>, %arg8: memref<64x1xf32, #tpu.memory_space<vmem>>, %arg9: memref<1x64x384xf32, #tpu.memory_space<vmem>>, %arg10: memref<64x640xf32, #tpu.memory_space<vmem>>) attributes {dimension_semantics = [#tpu.dimension_semantics<parallel>], iteration_bounds = array<i64: 2>, scalar_prefetch = 0 : i64, scratch_operands = 1 : i64, tpu.core_type = #tpu.core_type<tc>, window_params = [{pipeline_mode = #tpu.pipeline_mode<synchronous>, transform_indices = @transform_0, window_bounds = array<i64: 1, 384>}, {transform_indices = @transform_1, window_bounds = array<i64: 1, 8, 640>}, {pipeline_mode = #tpu.pipeline_mode<synchronous>, transform_indices = @transform_2, window_bounds = array<i64: 3, 128, 24>}, {pipeline_mode = #tpu.pipeline_mode<synchronous>, transform_indices = @transform_3, window_bounds = array<i64: 128, 1>}, {pipeline_mode = #tpu.pipeline_mode<synchronous>, transform_indices = @transform_4, window_bounds = array<i64: 9, 64, 64>}, {pipeline_mode = #tpu.pipeline_mode<synchronous>, transform_indices = @transform_5, window_bounds = array<i64: 64, 1>}, {pipeline_mode = #tpu.pipeline_mode<synchronous>, transform_indices = @transform_6, window_bounds = array<i64: 64, 64>}, {pipeline_mode = #tpu.pipeline_mode<synchronous>, transform_indices = @transform_7, window_bounds = array<i64: 64, 1>}, {transform_indices = @transform_8, window_bounds = array<i64: 1, 64, 384>}]} {
    %c0 = arith.constant 0 : index
    %c0_0 = arith.constant 0 : index
    %c0_1 = arith.constant 0 : index
    %0 = vector.load %arg2[%c0, %c0_0, %c0_1] : memref<1x8x640xf32, #tpu.memory_space<vmem>>, vector<1x8x640xf32>
    %1 = vector.shape_cast %0 : vector<1x8x640xf32> to vector<8x640xf32>
    %2 = vector.extract_strided_slice %1 {offsets = [0, 109], sizes = [8, 384], strides = [1, 1]} : vector<8x640xf32> to vector<8x384xf32>
    %3 = vector.extract_strided_slice %1 {offsets = [0, 110], sizes = [8, 384], strides = [1, 1]} : vector<8x640xf32> to vector<8x384xf32>
    %4 = vector.extract_strided_slice %1 {offsets = [0, 111], sizes = [8, 384], strides = [1, 1]} : vector<8x640xf32> to vector<8x384xf32>
    %5 = tpu.concatenate %2, %3, %4 in 0 : vector<8x384xf32>, vector<8x384xf32>, vector<8x384xf32> -> vector<24x384xf32>
    %c0_2 = arith.constant 0 : index
    %c0_3 = arith.constant 0 : index
    %c0_4 = arith.constant 0 : index
    %6 = vector.load %arg3[%c0_2, %c0_3, %c0_4] : memref<3x128x24xf32, #tpu.memory_space<vmem>>, vector<1x128x24xf32>
    %7 = vector.shape_cast %6 : vector<1x128x24xf32> to vector<128x24xf32>
    %cst = arith.constant dense<0.000000e+00> : vector<128x384xf32>
    %8 = tpu.matmul %7, %5, %cst {dimension_numbers = #tpu.dot_dimension_numbers<[1], [0], [0], [1], [0, 0, 1, 1], [], []>} : vector<128x24xf32>, vector<24x384xf32>, vector<128x384xf32> -> vector<128x384xf32>
    %9 = vector.extract_strided_slice %1 {offsets = [0, 127], sizes = [8, 384], strides = [1, 1]} : vector<8x640xf32> to vector<8x384xf32>
    %10 = vector.extract_strided_slice %1 {offsets = [0, 128], sizes = [8, 384], strides = [1, 1]} : vector<8x640xf32> to vector<8x384xf32>
    %11 = vector.extract_strided_slice %1 {offsets = [0, 129], sizes = [8, 384], strides = [1, 1]} : vector<8x640xf32> to vector<8x384xf32>
    %12 = tpu.concatenate %9, %10, %11 in 0 : vector<8x384xf32>, vector<8x384xf32>, vector<8x384xf32> -> vector<24x384xf32>
    %c1 = arith.constant 1 : index
    %c0_5 = arith.constant 0 : index
    %c0_6 = arith.constant 0 : index
    %13 = vector.load %arg3[%c1, %c0_5, %c0_6] : memref<3x128x24xf32, #tpu.memory_space<vmem>>, vector<1x128x24xf32>
    %14 = vector.shape_cast %13 : vector<1x128x24xf32> to vector<128x24xf32>
    %cst_7 = arith.constant dense<0.000000e+00> : vector<128x384xf32>
    %15 = tpu.matmul %14, %12, %cst_7 {dimension_numbers = #tpu.dot_dimension_numbers<[1], [0], [0], [1], [0, 0, 1, 1], [], []>} : vector<128x24xf32>, vector<24x384xf32>, vector<128x384xf32> -> vector<128x384xf32>
    %16 = arith.addf %8, %15 : vector<128x384xf32>
    %17 = vector.extract_strided_slice %1 {offsets = [0, 145], sizes = [8, 384], strides = [1, 1]} : vector<8x640xf32> to vector<8x384xf32>
    %18 = vector.extract_strided_slice %1 {offsets = [0, 146], sizes = [8, 384], strides = [1, 1]} : vector<8x640xf32> to vector<8x384xf32>
    %19 = vector.extract_strided_slice %1 {offsets = [0, 147], sizes = [8, 384], strides = [1, 1]} : vector<8x640xf32> to vector<8x384xf32>
    %20 = tpu.concatenate %17, %18, %19 in 0 : vector<8x384xf32>, vector<8x384xf32>, vector<8x384xf32> -> vector<24x384xf32>
    %c2 = arith.constant 2 : index
    %c0_8 = arith.constant 0 : index
    %c0_9 = arith.constant 0 : index
    %21 = vector.load %arg3[%c2, %c0_8, %c0_9] : memref<3x128x24xf32, #tpu.memory_space<vmem>>, vector<1x128x24xf32>
    %22 = vector.shape_cast %21 : vector<1x128x24xf32> to vector<128x24xf32>
    %cst_10 = arith.constant dense<0.000000e+00> : vector<128x384xf32>
    %23 = tpu.matmul %22, %20, %cst_10 {dimension_numbers = #tpu.dot_dimension_numbers<[1], [0], [0], [1], [0, 0, 1, 1], [], []>} : vector<128x24xf32>, vector<24x384xf32>, vector<128x384xf32> -> vector<128x384xf32>
    %24 = arith.addf %16, %23 : vector<128x384xf32>
    %c0_11 = arith.constant 0 : index
    %c0_12 = arith.constant 0 : index
    %25 = vector.load %arg4[%c0_11, %c0_12] : memref<128x1xf32, #tpu.memory_space<vmem>>, vector<128x1xf32>
    %26 = vector.broadcast %25 : vector<128x1xf32> to vector<128x384xf32>
    %27 = arith.addf %24, %26 : vector<128x384xf32>
    %28 = vector.extract_strided_slice %27 {offsets = [0, 0], sizes = [64, 384], strides = [1, 1]} : vector<128x384xf32> to vector<64x384xf32>
    %29 = vector.extract_strided_slice %27 {offsets = [64, 0], sizes = [64, 384], strides = [1, 1]} : vector<128x384xf32> to vector<64x384xf32>
    %cst_13 = arith.constant 0.000000e+00 : f32
    %30 = vector.broadcast %cst_13 : f32 to vector<64x384xf32>
    %31 = arith.cmpf oge, %28, %30 : vector<64x384xf32>
    %cst_14 = arith.constant 0.00999999977 : f32
    %32 = vector.broadcast %cst_14 : f32 to vector<64x384xf32>
    %33 = arith.mulf %32, %28 : vector<64x384xf32>
    %34 = arith.select %31, %28, %33 : vector<64x384xi1>, vector<64x384xf32>
    %c0_15 = arith.constant 0 : index
    %c0_16 = arith.constant 0 : index
    %35 = vector.load %arg1[%c0_15, %c0_16] : memref<1x384xf32, #tpu.memory_space<vmem>>, vector<1x384xf32>
    %36 = vector.broadcast %35 : vector<1x384xf32> to vector<64x384xf32>
    %37 = arith.mulf %34, %36 : vector<64x384xf32>
    %cst_17 = arith.constant 0.000000e+00 : f32
    %38 = vector.broadcast %cst_17 : f32 to vector<64x128xf32>
    %c0_18 = arith.constant 0 : index
    %c0_19 = arith.constant 0 : index
    %39 = vector.load %arg10[%c0_18, %c0_19] : memref<64x640xf32, #tpu.memory_space<vmem>>, vector<64x128xf32>
    tpu.vector_store %arg10[%c0_18, %c0_19], %38 {strides = array<i32>} : memref<64x640xf32, #tpu.memory_space<vmem>>, vector<64x128xf32>,
    %c0_20 = arith.constant 0 : index
    %c128 = arith.constant 128 : index
    %40 = vector.load %arg10[%c0_20, %c128] : memref<64x640xf32, #tpu.memory_space<vmem>>, vector<64x384xf32>
    tpu.vector_store %arg10[%c0_20, %c128], %37 {strides = array<i32>} : memref<64x640xf32, #tpu.memory_space<vmem>>, vector<64x384xf32>,
    %cst_21 = arith.constant 0.000000e+00 : f32
    %41 = vector.broadcast %cst_21 : f32 to vector<64x128xf32>
    %c0_22 = arith.constant 0 : index
    %c512 = arith.constant 512 : index
    %42 = vector.load %arg10[%c0_22, %c512] : memref<64x640xf32, #tpu.memory_space<vmem>>, vector<64x128xf32>
    tpu.vector_store %arg10[%c0_22, %c512], %41 {strides = array<i32>} : memref<64x640xf32, #tpu.memory_space<vmem>>, vector<64x128xf32>,
    %c0_23 = arith.constant 0 : index
    %c0_24 = arith.constant 0 : index
    %c0_25 = arith.constant 0 : index
    %43 = vector.load %arg5[%c0_23, %c0_24, %c0_25] : memref<9x64x64xf32, #tpu.memory_space<vmem>>, vector<1x64x64xf32>
    %44 = vector.shape_cast %43 : vector<1x64x64xf32> to vector<64x64xf32>
    %c0_26 = arith.constant 0 : index
    %c109 = arith.constant 109 : index
    %45 = vector.load %arg10[%c0_26, %c109] : memref<64x640xf32, #tpu.memory_space<vmem>>, vector<64x384xf32>
    %cst_27 = arith.constant dense<0.000000e+00> : vector<64x384xf32>
    %46 = tpu.matmul %44, %45, %cst_27 {dimension_numbers = #tpu.dot_dimension_numbers<[1], [0], [0], [1], [0, 0, 1, 1], [], []>} : vector<64x64xf32>, vector<64x384xf32>, vector<64x384xf32> -> vector<64x384xf32>
    %c1_28 = arith.constant 1 : index
    %c0_29 = arith.constant 0 : index
    %c0_30 = arith.constant 0 : index
    %47 = vector.load %arg5[%c1_28, %c0_29, %c0_30] : memref<9x64x64xf32, #tpu.memory_space<vmem>>, vector<1x64x64xf32>
    %48 = vector.shape_cast %47 : vector<1x64x64xf32> to vector<64x64xf32>
    %c0_31 = arith.constant 0 : index
    %c110 = arith.constant 110 : index
    %49 = vector.load %arg10[%c0_31, %c110] : memref<64x640xf32, #tpu.memory_space<vmem>>, vector<64x384xf32>
    %cst_32 = arith.constant dense<0.000000e+00> : vector<64x384xf32>
    %50 = tpu.matmul %48, %49, %cst_32 {dimension_numbers = #tpu.dot_dimension_numbers<[1], [0], [0], [1], [0, 0, 1, 1], [], []>} : vector<64x64xf32>, vector<64x384xf32>, vector<64x384xf32> -> vector<64x384xf32>
    %51 = arith.addf %46, %50 : vector<64x384xf32>
    %c2_33 = arith.constant 2 : index
    %c0_34 = arith.constant 0 : index
    %c0_35 = arith.constant 0 : index
    %52 = vector.load %arg5[%c2_33, %c0_34, %c0_35] : memref<9x64x64xf32, #tpu.memory_space<vmem>>, vector<1x64x64xf32>
    %53 = vector.shape_cast %52 : vector<1x64x64xf32> to vector<64x64xf32>
    %c0_36 = arith.constant 0 : index
    %c111 = arith.constant 111 : index
    %54 = vector.load %arg10[%c0_36, %c111] : memref<64x640xf32, #tpu.memory_space<vmem>>, vector<64x384xf32>
    %cst_37 = arith.constant dense<0.000000e+00> : vector<64x384xf32>
    %55 = tpu.matmul %53, %54, %cst_37 {dimension_numbers = #tpu.dot_dimension_numbers<[1], [0], [0], [1], [0, 0, 1, 1], [], []>} : vector<64x64xf32>, vector<64x384xf32>, vector<64x384xf32> -> vector<64x384xf32>
    %56 = arith.addf %51, %55 : vector<64x384xf32>
    %c3 = arith.constant 3 : index
    %c0_38 = arith.constant 0 : index
    %c0_39 = arith.constant 0 : index
    %57 = vector.load %arg5[%c3, %c0_38, %c0_39] : memref<9x64x64xf32, #tpu.memory_space<vmem>>, vector<1x64x64xf32>
    %58 = vector.shape_cast %57 : vector<1x64x64xf32> to vector<64x64xf32>
    %c0_40 = arith.constant 0 : index
    %c127 = arith.constant 127 : index
    %59 = vector.load %arg10[%c0_40, %c127] : memref<64x640xf32, #tpu.memory_space<vmem>>, vector<64x384xf32>
    %cst_41 = arith.constant dense<0.000000e+00> : vector<64x384xf32>
    %60 = tpu.matmul %58, %59, %cst_41 {dimension_numbers = #tpu.dot_dimension_numbers<[1], [0], [0], [1], [0, 0, 1, 1], [], []>} : vector<64x64xf32>, vector<64x384xf32>, vector<64x384xf32> -> vector<64x384xf32>
    %61 = arith.addf %56, %60 : vector<64x384xf32>
    %c4 = arith.constant 4 : index
    %c0_42 = arith.constant 0 : index
    %c0_43 = arith.constant 0 : index
    %62 = vector.load %arg5[%c4, %c0_42, %c0_43] : memref<9x64x64xf32, #tpu.memory_space<vmem>>, vector<1x64x64xf32>
    %63 = vector.shape_cast %62 : vector<1x64x64xf32> to vector<64x64xf32>
    %c0_44 = arith.constant 0 : index
    %c128_45 = arith.constant 128 : index
    %64 = vector.load %arg10[%c0_44, %c128_45] : memref<64x640xf32, #tpu.memory_space<vmem>>, vector<64x384xf32>
    %cst_46 = arith.constant dense<0.000000e+00> : vector<64x384xf32>
    %65 = tpu.matmul %63, %64, %cst_46 {dimension_numbers = #tpu.dot_dimension_numbers<[1], [0], [0], [1], [0, 0, 1, 1], [], []>} : vector<64x64xf32>, vector<64x384xf32>, vector<64x384xf32> -> vector<64x384xf32>
    %66 = arith.addf %61, %65 : vector<64x384xf32>
    %c5 = arith.constant 5 : index
    %c0_47 = arith.constant 0 : index
    %c0_48 = arith.constant 0 : index
    %67 = vector.load %arg5[%c5, %c0_47, %c0_48] : memref<9x64x64xf32, #tpu.memory_space<vmem>>, vector<1x64x64xf32>
    %68 = vector.shape_cast %67 : vector<1x64x64xf32> to vector<64x64xf32>
    %c0_49 = arith.constant 0 : index
    %c129 = arith.constant 129 : index
    %69 = vector.load %arg10[%c0_49, %c129] : memref<64x640xf32, #tpu.memory_space<vmem>>, vector<64x384xf32>
    %cst_50 = arith.constant dense<0.000000e+00> : vector<64x384xf32>
    %70 = tpu.matmul %68, %69, %cst_50 {dimension_numbers = #tpu.dot_dimension_numbers<[1], [0], [0], [1], [0, 0, 1, 1], [], []>} : vector<64x64xf32>, vector<64x384xf32>, vector<64x384xf32> -> vector<64x384xf32>
    %71 = arith.addf %66, %70 : vector<64x384xf32>
    %c6 = arith.constant 6 : index
    %c0_51 = arith.constant 0 : index
    %c0_52 = arith.constant 0 : index
    %72 = vector.load %arg5[%c6, %c0_51, %c0_52] : memref<9x64x64xf32, #tpu.memory_space<vmem>>, vector<1x64x64xf32>
    %73 = vector.shape_cast %72 : vector<1x64x64xf32> to vector<64x64xf32>
    %c0_53 = arith.constant 0 : index
    %c145 = arith.constant 145 : index
    %74 = vector.load %arg10[%c0_53, %c145] : memref<64x640xf32, #tpu.memory_space<vmem>>, vector<64x384xf32>
    %cst_54 = arith.constant dense<0.000000e+00> : vector<64x384xf32>
    %75 = tpu.matmul %73, %74, %cst_54 {dimension_numbers = #tpu.dot_dimension_numbers<[1], [0], [0], [1], [0, 0, 1, 1], [], []>} : vector<64x64xf32>, vector<64x384xf32>, vector<64x384xf32> -> vector<64x384xf32>
    %76 = arith.addf %71, %75 : vector<64x384xf32>
    %c7 = arith.constant 7 : index
    %c0_55 = arith.constant 0 : index
    %c0_56 = arith.constant 0 : index
    %77 = vector.load %arg5[%c7, %c0_55, %c0_56] : memref<9x64x64xf32, #tpu.memory_space<vmem>>, vector<1x64x64xf32>
    %78 = vector.shape_cast %77 : vector<1x64x64xf32> to vector<64x64xf32>
    %c0_57 = arith.constant 0 : index
    %c146 = arith.constant 146 : index
    %79 = vector.load %arg10[%c0_57, %c146] : memref<64x640xf32, #tpu.memory_space<vmem>>, vector<64x384xf32>
    %cst_58 = arith.constant dense<0.000000e+00> : vector<64x384xf32>
    %80 = tpu.matmul %78, %79, %cst_58 {dimension_numbers = #tpu.dot_dimension_numbers<[1], [0], [0], [1], [0, 0, 1, 1], [], []>} : vector<64x64xf32>, vector<64x384xf32>, vector<64x384xf32> -> vector<64x384xf32>
    %81 = arith.addf %76, %80 : vector<64x384xf32>
    %c8 = arith.constant 8 : index
    %c0_59 = arith.constant 0 : index
    %c0_60 = arith.constant 0 : index
    %82 = vector.load %arg5[%c8, %c0_59, %c0_60] : memref<9x64x64xf32, #tpu.memory_space<vmem>>, vector<1x64x64xf32>
    %83 = vector.shape_cast %82 : vector<1x64x64xf32> to vector<64x64xf32>
    %c0_61 = arith.constant 0 : index
    %c147 = arith.constant 147 : index
    %84 = vector.load %arg10[%c0_61, %c147] : memref<64x640xf32, #tpu.memory_space<vmem>>, vector<64x384xf32>
    %cst_62 = arith.constant dense<0.000000e+00> : vector<64x384xf32>
    %85 = tpu.matmul %83, %84, %cst_62 {dimension_numbers = #tpu.dot_dimension_numbers<[1], [0], [0], [1], [0, 0, 1, 1], [], []>} : vector<64x64xf32>, vector<64x384xf32>, vector<64x384xf32> -> vector<64x384xf32>
    %86 = arith.addf %81, %85 : vector<64x384xf32>
    %c0_63 = arith.constant 0 : index
    %c0_64 = arith.constant 0 : index
    %87 = vector.load %arg6[%c0_63, %c0_64] : memref<64x1xf32, #tpu.memory_space<vmem>>, vector<64x1xf32>
    %88 = vector.broadcast %87 : vector<64x1xf32> to vector<64x384xf32>
    %89 = arith.addf %86, %88 : vector<64x384xf32>
    %c0_65 = arith.constant 0 : index
    %c0_66 = arith.constant 0 : index
    %90 = vector.load %arg7[%c0_65, %c0_66] : memref<64x64xf32, #tpu.memory_space<vmem>>, vector<64x64xf32>
    %91 = arith.mulf %89, %89 : vector<64x384xf32>
    %cst_67 = arith.constant dense<0.000000e+00> : vector<64x384xf32>
    %92 = tpu.matmul %90, %91, %cst_67 {dimension_numbers = #tpu.dot_dimension_numbers<[1], [0], [0], [1], [0, 0, 1, 1], [], []>} : vector<64x64xf32>, vector<64x384xf32>, vector<64x384xf32> -> vector<64x384xf32>
    %c0_68 = arith.constant 0 : index
    %c0_69 = arith.constant 0 : index
    %93 = vector.load %arg8[%c0_68, %c0_69] : memref<64x1xf32, #tpu.memory_space<vmem>>, vector<64x1xf32>
    %94 = vector.broadcast %93 : vector<64x1xf32> to vector<64x384xf32>
    %95 = arith.addf %92, %94 : vector<64x384xf32>
    %96 = math.sqrt %95 : vector<64x384xf32>
    %97 = arith.mulf %89, %96 : vector<64x384xf32>
    %98 = arith.addf %97, %29 : vector<64x384xf32>
    %c0_70 = arith.constant 0 : index
    %c0_71 = arith.constant 0 : index
    %c0_72 = arith.constant 0 : index
    %99 = vector.load %arg9[%c0_70, %c0_71, %c0_72] : memref<1x64x384xf32, #tpu.memory_space<vmem>>, vector<1x64x384xf32>
    %100 = vector.shape_cast %99 : vector<1x64x384xf32> to vector<64x384xf32>
    %101 = vector.shape_cast %98 : vector<64x384xf32> to vector<1x64x384xf32>
    tpu.vector_store %arg9[%c0_70, %c0_71, %c0_72], %101 {strides = array<i32>} : memref<1x64x384xf32, #tpu.memory_space<vmem>>, vector<1x64x384xf32>,
    return
  }
  func.func @transform_0(%arg0: i32) -> (i32, i32) {
    %c0_i32 = arith.constant 0 : i32
    %c0_i32_0 = arith.constant 0 : i32
    %c0_i32_1 = arith.constant 0 : i32
    return %c0_i32, %c0_i32_0 : i32, i32
  }
  func.func @transform_1(%arg0: i32) -> (i32, i32, i32) {
    %c0_i32 = arith.constant 0 : i32
    %c0_i32_0 = arith.constant 0 : i32
    %c0_i32_1 = arith.constant 0 : i32
    return %arg0, %c0_i32, %c0_i32_0 : i32, i32, i32
  }
  func.func @transform_2(%arg0: i32) -> (i32, i32, i32) {
    %c0_i32 = arith.constant 0 : i32
    %c0_i32_0 = arith.constant 0 : i32
    %c0_i32_1 = arith.constant 0 : i32
    %c0_i32_2 = arith.constant 0 : i32
    return %c0_i32, %c0_i32_0, %c0_i32_1 : i32, i32, i32
  }
  func.func @transform_3(%arg0: i32) -> (i32, i32) {
    %c0_i32 = arith.constant 0 : i32
    %c0_i32_0 = arith.constant 0 : i32
    %c0_i32_1 = arith.constant 0 : i32
    return %c0_i32, %c0_i32_0 : i32, i32
  }
  func.func @transform_4(%arg0: i32) -> (i32, i32, i32) {
    %c0_i32 = arith.constant 0 : i32
    %c0_i32_0 = arith.constant 0 : i32
    %c0_i32_1 = arith.constant 0 : i32
    %c0_i32_2 = arith.constant 0 : i32
    return %c0_i32, %c0_i32_0, %c0_i32_1 : i32, i32, i32
  }
  func.func @transform_5(%arg0: i32) -> (i32, i32) {
    %c0_i32 = arith.constant 0 : i32
    %c0_i32_0 = arith.constant 0 : i32
    %c0_i32_1 = arith.constant 0 : i32
    return %c0_i32, %c0_i32_0 : i32, i32
  }
  func.func @transform_6(%arg0: i32) -> (i32, i32) {
    %c0_i32 = arith.constant 0 : i32
    %c0_i32_0 = arith.constant 0 : i32
    %c0_i32_1 = arith.constant 0 : i32
    return %c0_i32, %c0_i32_0 : i32, i32
  }
  func.func @transform_7(%arg0: i32) -> (i32, i32) {
    %c0_i32 = arith.constant 0 : i32
    %c0_i32_0 = arith.constant 0 : i32
    %c0_i32_1 = arith.constant 0 : i32
    return %c0_i32, %c0_i32_0 : i32, i32
  }
  func.func @transform_8(%arg0: i32) -> (i32, i32, i32) {
    %c0_i32 = arith.constant 0 : i32
    %c0_i32_0 = arith.constant 0 : i32
    %c0_i32_1 = arith.constant 0 : i32
    return %arg0, %c0_i32, %c0_i32_0 : i32, i32, i32
  }
}

</mosaic_0001>

<llo_original>
// kernel: residual_block_upsample_forward.1
$region0: #{residual_block_upsample_forward.1}
  #allocation0 [shape = 'u32[]', space=smem, size = 0x4, offset = 0x4, fixed_abs, tag = 'smem constant byte address 0x4 - core index']
  #allocation1 [shape = 'u32[144,128]{1,0:T(1,128)}', space=vmem, size = 0x12000, scoped, tag = 'internal scratch']
  #allocation2 [shape = 'f32[64,640]{1,0:T(8,128)}', space=vmem, size = 0x28000, scoped, tag = 'scratch operand']
  %s0 = inlined_call_operand.vmem [shape: f32[1,384], index: 0, kind: input, shape index: {}]
  %s1 = inlined_call_operand.vmem [shape: f32[2,8,640], index: 1, kind: input, shape index: {}]
  %s2 = inlined_call_operand.vmem [shape: f32[3,128,24], index: 2, kind: input, shape index: {}]
  %s3 = inlined_call_operand.vmem [shape: f32[128,1], index: 3, kind: input, shape index: {}]
  %s4 = inlined_call_operand.vmem [shape: f32[9,64,64], index: 4, kind: input, shape index: {}]
  %s5 = inlined_call_operand.vmem [shape: f32[64,1], index: 5, kind: input, shape index: {}]
  %s6 = inlined_call_operand.vmem [shape: f32[64,64], index: 6, kind: input, shape index: {}]
  %s7 = inlined_call_operand.vmem [shape: f32[64,1], index: 7, kind: input, shape index: {}]
  %s8 = inlined_call_operand.vmem [shape: f32[2,64,384], index: 8, kind: output, shape index: {}]
  %s9 = sld [smem:[#allocation0]]
  $region65: #{residual_block_upsample_forward.1} parent=0
    _
  %s11 = ssub.s32 1, %s9
  %s12 = scalar_select 0, %s11, %s9
  loop: start=0, step=1, limit=4
  $region2: #{residual_block_upsample_forward.1} parent=0 // loop_pre_header
    _
  $region3: #{residual_block_upsample_forward.1} parent=0 // loop_header
    %s14 = sphi 0, %s18
    %p15 = scmp.ge.s32.totalorder %s14, 4
    %s22 = sphi 0, %s22
    %s24 = sphi 0, %s22
    %s25 = sphi 0, %s24
    %s39 = sphi 0, %s25
    %s45 = sphi 0, %s47
    %s48 = sphi 0, %s45
    %s49 = sphi 0, %s48
    %s65 = sphi 0, %s49
    %s69 = sphi 0, %s69
    %s71 = sphi 0, %s69
    %s72 = sphi 0, %s71
    %s86 = sphi 0, %s72
    %s90 = sphi 0, %s90
    %s92 = sphi 0, %s90
    %s93 = sphi 0, %s92
    %s107 = sphi 0, %s93
    %s111 = sphi 0, %s111
    %s113 = sphi 0, %s111
    %s114 = sphi 0, %s113
    %s128 = sphi 0, %s114
    %s132 = sphi 0, %s132
    %s134 = sphi 0, %s132
    %s135 = sphi 0, %s134
    %s149 = sphi 0, %s135
    %s153 = sphi 0, %s153
    %s155 = sphi 0, %s153
    %s156 = sphi 0, %s155
    %s170 = sphi 0, %s156
    %s174 = sphi 0, %s174
    %s176 = sphi 0, %s174
    %s177 = sphi 0, %s176
    %s191 = sphi 0, %s177
    %s197 = sphi 0, %s199
    %s200 = sphi 0, %s197
    %s201 = sphi 0, %s200
    %s217 = sphi 0, %s201
  $region4: #{residual_block_upsample_forward.1} parent=0 // loop_header_branch
    %17 = sbr.rel (%p15) target = $region8
  $region5: #{residual_block_upsample_forward.1} parent=0 // loop_body
    %s19 = ssub.s32 %s14, 1
    %s20 = ssub.s32 %s14, 2
    %s21 = sadd.s32 %s14, 1
    %s23 = sadd.s32 %s22, 1
    %p26 = scmp.eq.s32.totalorder %s14, 1
    %p27 = scmp.ne.s32.totalorder %s22, %s24
    %p28 = scmp.eq.s32.totalorder %s14, 0
    %p29 = por %p27, %p28
    %p30 = scmp.ne.s32.totalorder %s22, %s24
    %p31 = scmp.eq.s32.totalorder %s19, 1
    %p32 = por %p30, %p31
    %p33 = scmp.ne.s32.totalorder %s24, %s25
    %p34 = scmp.eq.s32.totalorder %s19, 0
    %p35 = por %p33, %p34
    %p36 = scmp.ne.s32.totalorder %s24, %s25
    %p37 = scmp.eq.s32.totalorder %s20, 1
    %p38 = por %p36, %p37
    %p40 = scmp.ne.s32.totalorder %s25, %s39
    %p41 = scmp.eq.s32.totalorder %s20, 0
    %p42 = por %p40, %p41
    %s43 = ssub.s32 %s14, %s21
    %p44 = scmp.eq.s32.totalorder %s43, 0
    %s46 = sadd.s32 %s45, 1
    %s47 = scalar_select %p44, %s45, %s46
    %p50 = pneg %p44
    %p51 = scmp.eq.s32.totalorder %s14, 1
    %p52 = por %p50, %p51
    %p53 = scmp.ne.s32.totalorder %s45, %s48
    %p54 = scmp.eq.s32.totalorder %s14, 0
    %p55 = por %p53, %p54
    %p56 = scmp.ne.s32.totalorder %s45, %s48
    %p57 = scmp.eq.s32.totalorder %s19, 1
    %p58 = por %p56, %p57
    %p59 = scmp.ne.s32.totalorder %s48, %s49
    %p60 = scmp.eq.s32.totalorder %s19, 0
    %p61 = por %p59, %p60
    %p62 = scmp.ne.s32.totalorder %s48, %s49
    %p63 = scmp.eq.s32.totalorder %s20, 1
    %p64 = por %p62, %p63
    %p66 = scmp.ne.s32.totalorder %s49, %s65
    %p67 = scmp.eq.s32.totalorder %s20, 0
    %p68 = por %p66, %p67
    %s70 = sadd.s32 %s69, 1
    %p73 = scmp.eq.s32.totalorder %s14, 1
    %p74 = scmp.ne.s32.totalorder %s69, %s71
    %p75 = scmp.eq.s32.totalorder %s14, 0
    %p76 = por %p74, %p75
    %p77 = scmp.ne.s32.totalorder %s69, %s71
    %p78 = scmp.eq.s32.totalorder %s19, 1
    %p79 = por %p77, %p78
    %p80 = scmp.ne.s32.totalorder %s71, %s72
    %p81 = scmp.eq.s32.totalorder %s19, 0
    %p82 = por %p80, %p81
    %p83 = scmp.ne.s32.totalorder %s71, %s72
    %p84 = scmp.eq.s32.totalorder %s20, 1
    %p85 = por %p83, %p84
    %p87 = scmp.ne.s32.totalorder %s72, %s86
    %p88 = scmp.eq.s32.totalorder %s20, 0
    %p89 = por %p87, %p88
    %s91 = sadd.s32 %s90, 1
    %p94 = scmp.eq.s32.totalorder %s14, 1
    %p95 = scmp.ne.s32.totalorder %s90, %s92
    %p96 = scmp.eq.s32.totalorder %s14, 0
    %p97 = por %p95, %p96
    %p98 = scmp.ne.s32.totalorder %s90, %s92
    %p99 = scmp.eq.s32.totalorder %s19, 1
    %p100 = por %p98, %p99
    %p101 = scmp.ne.s32.totalorder %s92, %s93
    %p102 = scmp.eq.s32.totalorder %s19, 0
    %p103 = por %p101, %p102
    %p104 = scmp.ne.s32.totalorder %s92, %s93
    %p105 = scmp.eq.s32.totalorder %s20, 1
    %p106 = por %p104, %p105
    %p108 = scmp.ne.s32.totalorder %s93, %s107
    %p109 = scmp.eq.s32.totalorder %s20, 0
    %p110 = por %p108, %p109
    %s112 = sadd.s32 %s111, 1
    %p115 = scmp.eq.s32.totalorder %s14, 1
    %p116 = scmp.ne.s32.totalorder %s111, %s113
    %p117 = scmp.eq.s32.totalorder %s14, 0
    %p118 = por %p116, %p117
    %p119 = scmp.ne.s32.totalorder %s111, %s113
    %p120 = scmp.eq.s32.totalorder %s19, 1
    %p121 = por %p119, %p120
    %p122 = scmp.ne.s32.totalorder %s113, %s114
    %p123 = scmp.eq.s32.totalorder %s19, 0
    %p124 = por %p122, %p123
    %p125 = scmp.ne.s32.totalorder %s113, %s114
    %p126 = scmp.eq.s32.totalorder %s20, 1
    %p127 = por %p125, %p126
    %p129 = scmp.ne.s32.totalorder %s114, %s128
    %p130 = scmp.eq.s32.totalorder %s20, 0
    %p131 = por %p129, %p130
    %s133 = sadd.s32 %s132, 1
    %p136 = scmp.eq.s32.totalorder %s14, 1
    %p137 = scmp.ne.s32.totalorder %s132, %s134
    %p138 = scmp.eq.s32.totalorder %s14, 0
    %p139 = por %p137, %p138
    %p140 = scmp.ne.s32.totalorder %s132, %s134
    %p141 = scmp.eq.s32.totalorder %s19, 1
    %p142 = por %p140, %p141
    %p143 = scmp.ne.s32.totalorder %s134, %s135
    %p144 = scmp.eq.s32.totalorder %s19, 0
    %p145 = por %p143, %p144
    %p146 = scmp.ne.s32.totalorder %s134, %s135
    %p147 = scmp.eq.s32.totalorder %s20, 1
    %p148 = por %p146, %p147
    %p150 = scmp.ne.s32.totalorder %s135, %s149
    %p151 = scmp.eq.s32.totalorder %s20, 0
    %p152 = por %p150, %p151
    %s154 = sadd.s32 %s153, 1
    %p157 = scmp.eq.s32.totalorder %s14, 1
    %p158 = scmp.ne.s32.totalorder %s153, %s155
    %p159 = scmp.eq.s32.totalorder %s14, 0
    %p160 = por %p158, %p159
    %p161 = scmp.ne.s32.totalorder %s153, %s155
    %p162 = scmp.eq.s32.totalorder %s19, 1
    %p163 = por %p161, %p162
    %p164 = scmp.ne.s32.totalorder %s155, %s156
    %p165 = scmp.eq.s32.totalorder %s19, 0
    %p166 = por %p164, %p165
    %p167 = scmp.ne.s32.totalorder %s155, %s156
    %p168 = scmp.eq.s32.totalorder %s20, 1
    %p169 = por %p167, %p168
    %p171 = scmp.ne.s32.totalorder %s156, %s170
    %p172 = scmp.eq.s32.totalorder %s20, 0
    %p173 = por %p171, %p172
    %s175 = sadd.s32 %s174, 1
    %p178 = scmp.eq.s32.totalorder %s14, 1
    %p179 = scmp.ne.s32.totalorder %s174, %s176
    %p180 = scmp.eq.s32.totalorder %s14, 0
    %p181 = por %p179, %p180
    %p182 = scmp.ne.s32.totalorder %s174, %s176
    %p183 = scmp.eq.s32.totalorder %s19, 1
    %p184 = por %p182, %p183
    %p185 = scmp.ne.s32.totalorder %s176, %s177
    %p186 = scmp.eq.s32.totalorder %s19, 0
    %p187 = por %p185, %p186
    %p188 = scmp.ne.s32.totalorder %s176, %s177
    %p189 = scmp.eq.s32.totalorder %s20, 1
    %p190 = por %p188, %p189
    %p192 = scmp.ne.s32.totalorder %s177, %s191
    %p193 = scmp.eq.s32.totalorder %s20, 0
    %p194 = por %p192, %p193
    %s195 = ssub.s32 %s14, %s21
    %p196 = scmp.eq.s32.totalorder %s195, 0
    %s198 = sadd.s32 %s197, 1
    %s199 = scalar_select %p196, %s197, %s198
    %p202 = pneg %p196
    %p203 = scmp.eq.s32.totalorder %s14, 1
    %p204 = por %p202, %p203
    %p205 = scmp.ne.s32.totalorder %s197, %s200
    %p206 = scmp.eq.s32.totalorder %s14, 0
    %p207 = por %p205, %p206
    %p208 = scmp.ne.s32.totalorder %s197, %s200
    %p209 = scmp.eq.s32.totalorder %s19, 1
    %p210 = por %p208, %p209
    %p211 = scmp.ne.s32.totalorder %s200, %s201
    %p212 = scmp.eq.s32.totalorder %s19, 0
    %p213 = por %p211, %p212
    %p214 = scmp.ne.s32.totalorder %s200, %s201
    %p215 = scmp.eq.s32.totalorder %s20, 1
    %p216 = por %p214, %p215
    %p218 = scmp.ne.s32.totalorder %s201, %s217
    %p219 = scmp.eq.s32.totalorder %s20, 0
    %p220 = por %p218, %p219
    %p221 = scmp.le.s32.totalorder 1, %s14
    %p222 = scmp.lt.s32.totalorder %s14, 3
    %p223 = pnand %p221, %p222
    %p224 = pneg %p223
    // Predicated region
    $region9: #{residual_block_upsample_forward.1} parent=5 // pred_check
      _
    $region10: #{residual_block_upsample_forward.1} parent=5 // pred_check_branch
      %226 = sbr.rel (%p223) target = $region12
    $region11: #{residual_block_upsample_forward.1} parent=5 // pred_region
      %s227 = ssub.s32 %s14, 1
      // Predicated region
      $region13: #{residual_block_upsample_forward.1} parent=11 // pred_check
        %p228 = pneg %p35
      $region14: #{residual_block_upsample_forward.1} parent=11 // pred_check_branch
        %230 = sbr.rel (%p228) target = $region16
      $region15: #{residual_block_upsample_forward.1} parent=11 // pred_region
        _
      $region16: #{residual_block_upsample_forward.1} parent=11 // pred_fallthru
        _
      // Predicated region
      $region17: #{residual_block_upsample_forward.1} parent=11 // pred_check
        %p231 = pneg %p82
      $region18: #{residual_block_upsample_forward.1} parent=11 // pred_check_branch
        %233 = sbr.rel (%p231) target = $region20
      $region19: #{residual_block_upsample_forward.1} parent=11 // pred_region
        _
      $region20: #{residual_block_upsample_forward.1} parent=11 // pred_fallthru
        _
      // Predicated region
      $region21: #{residual_block_upsample_forward.1} parent=11 // pred_check
        %p234 = pneg %p103
      $region22: #{residual_block_upsample_forward.1} parent=11 // pred_check_branch
        %236 = sbr.rel (%p234) target = $region24
      $region23: #{residual_block_upsample_forward.1} parent=11 // pred_region
        _
      $region24: #{residual_block_upsample_forward.1} parent=11 // pred_fallthru
        _
      // Predicated region
      $region25: #{residual_block_upsample_forward.1} parent=11 // pred_check
        %p237 = pneg %p124
      $region26: #{residual_block_upsample_forward.1} parent=11 // pred_check_branch
        %239 = sbr.rel (%p237) target = $region28
      $region27: #{residual_block_upsample_forward.1} parent=11 // pred_region
        _
      $region28: #{residual_block_upsample_forward.1} parent=11 // pred_fallthru
        _
      // Predicated region
      $region29: #{residual_block_upsample_forward.1} parent=11 // pred_check
        %p240 = pneg %p145
      $region30: #{residual_block_upsample_forward.1} parent=11 // pred_check_branch
        %242 = sbr.rel (%p240) target = $region32
      $region31: #{residual_block_upsample_forward.1} parent=11 // pred_region
        _
      $region32: #{residual_block_upsample_forward.1} parent=11 // pred_fallthru
        _
      // Predicated region
      $region33: #{residual_block_upsample_forward.1} parent=11 // pred_check
        %p243 = pneg %p166
      $region34: #{residual_block_upsample_forward.1} parent=11 // pred_check_branch
        %245 = sbr.rel (%p243) target = $region36
      $region35: #{residual_block_upsample_forward.1} parent=11 // pred_region
        _
      $region36: #{residual_block_upsample_forward.1} parent=11 // pred_fallthru
        _
      // Predicated region
      $region37: #{residual_block_upsample_forward.1} parent=11 // pred_check
        %p246 = pneg %p187
      $region38: #{residual_block_upsample_forward.1} parent=11 // pred_check_branch
        %248 = sbr.rel (%p246) target = $region40
      $region39: #{residual_block_upsample_forward.1} parent=11 // pred_region
        _
      $region40: #{residual_block_upsample_forward.1} parent=11 // pred_fallthru
        _
    $region12: #{residual_block_upsample_forward.1} parent=5 // pred_fallthru
      _
    %p249 = scmp.lt.s32.totalorder %s14, 2
    // Predicated region
    $region41: #{residual_block_upsample_forward.1} parent=5 // pred_check
      %p250 = pneg %p249
    $region42: #{residual_block_upsample_forward.1} parent=5 // pred_check_branch
      %252 = sbr.rel (%p250) target = $region44
    $region43: #{residual_block_upsample_forward.1} parent=5 // pred_region
      // Predicated region
      $region45: #{residual_block_upsample_forward.1} parent=43 // pred_check
        %p253 = pneg %p55
      $region46: #{residual_block_upsample_forward.1} parent=43 // pred_check_branch
        %255 = sbr.rel (%p253) target = $region48
      $region47: #{residual_block_upsample_forward.1} parent=43 // pred_region
        %p256 = scmp.lt.s32.totalorder %s14, 1
        %s257 = scalar_select %p256, %s14, 1
        %s258 = smul.addr %s257, 5
        %s259 = smul.addr %s258, 8
        %s260 = scalar_lea.vmem %s1, %s259
      $region48: #{residual_block_upsample_forward.1} parent=43 // pred_fallthru
        _
    $region44: #{residual_block_upsample_forward.1} parent=5 // pred_fallthru
      _
    %p261 = scmp.le.s32.totalorder 1, %s14
    %p262 = scmp.lt.s32.totalorder %s14, 3
    %p263 = pnand %p261, %p262
    %p264 = pneg %p263
    // Predicated region
    $region49: #{residual_block_upsample_forward.1} parent=5 // pred_check
      _
    $region50: #{residual_block_upsample_forward.1} parent=5 // pred_check_branch
      %266 = sbr.rel (%p263) target = $region52
    $region51: #{residual_block_upsample_forward.1} parent=5 // pred_region
      %s267 = ssub.s32 %s14, 1
      %p268 = pneg %p35
      %p269 = pneg %p32
      %p270 = scmp.lt.s32.totalorder %s19, 1
      %s271 = scalar_select %p270, %s19, 1
      %s272 = smul.addr %s271, 5
      %s273 = smul.addr %s272, 8
      %s274 = scalar_lea.vmem %s1, %s273
      %p275 = pneg %p61
      %p276 = pneg %p58
      %p277 = pneg %p82
      %p278 = pneg %p79
      %p279 = pneg %p103
      %p280 = pneg %p100
      %p281 = pneg %p124
      %p282 = pneg %p121
      %p283 = pneg %p145
      %p284 = pneg %p142
      %p285 = pneg %p166
      %p286 = pneg %p163
      %p287 = pneg %p187
      %p288 = pneg %p184
      %p289 = pneg %p213
      %p290 = pneg %p210
      %p291 = scmp.lt.s32.totalorder %s19, 1
      %s292 = scalar_select %p291, %s19, 1
      %s293 = smul.addr %s292, 24
      %s294 = smul.addr %s293, 8
      %s295 = scalar_lea.vmem %s8, %s294
      %p296 = scmp.lt.s32.totalorder %s19, 1
      %s297 = scalar_select %p296, %s19, 1
      %s298 = smul.addr %s297, 5
      %s299 = smul.addr %s298, 8
      %s300 = scalar_lea.vmem %s1, %s299
      %p301 = scmp.lt.s32.totalorder %s19, 1
      %s302 = scalar_select %p301, %s19, 1
      %s303 = smul.addr %s302, 24
      %s304 = smul.addr %s303, 8
      %s305 = scalar_lea.vmem %s8, %s304
      %v306 = vld [vmem:[%s300] sm:$0xff]
      %v307 = vld [vmem:[%s300 + $0x8] sm:$0xff]
      %v308 = vld [vmem:[%s300 + $0x10] sm:$0xff]
      %v309 = vld [vmem:[%s300 + $0x18] sm:$0xff]
      %v310 = vld [vmem:[%s300 + $0x20] sm:$0xff]
      %315 = vrot.lane.b32.xlu0 %v306, 127
      %v316 = vpop.permute.xlu0 %315
      %317 = vrot.lane.b32.xlu0 %v307, 127
      %v318 = vpop.permute.xlu0 %317
      %319 = vrot.lane.b32.xlu0 %v308, 127
      %v320 = vpop.permute.xlu0 %319
      %321 = vrot.lane.b32.xlu0 %v309, 127
      %v322 = vpop.permute.xlu0 %321
      %vm323 = vcmask 1039360
      %v324 = vsel %vm323, %v316, %v318
      %v325 = vsel %vm323, %v318, %v320
      %v326 = vsel %vm323, %v320, %v322
      %327 = vrot.lane.b32.xlu0 %v306, 126
      %v328 = vpop.permute.xlu0 %327
      %329 = vrot.lane.b32.xlu0 %v307, 126
      %v330 = vpop.permute.xlu0 %329
      %331 = vrot.lane.b32.xlu0 %v308, 126
      %v332 = vpop.permute.xlu0 %331
      %333 = vrot.lane.b32.xlu0 %v309, 126
      %v334 = vpop.permute.xlu0 %333
      %vm335 = vcmask 1031168
      %v336 = vsel %vm335, %v328, %v330
      %v337 = vsel %vm335, %v330, %v332
      %v338 = vsel %vm335, %v332, %v334
      %v339 = vld [vmem:[%s2] sm:$0xff]
      %v340 = vld [vmem:[%s2 + $0x8] sm:$0xff]
      %v341 = vld [vmem:[%s2 + $0x10] sm:$0xff]
      %v342 = vld [vmem:[%s2 + $0x18] sm:$0xff]
      %v343 = vld [vmem:[%s2 + $0x20] sm:$0xff]
      %v344 = vld [vmem:[%s2 + $0x28] sm:$0xff]
      %v345 = vld [vmem:[%s2 + $0x30] sm:$0xff]
      %v346 = vld [vmem:[%s2 + $0x38] sm:$0xff]
      %v347 = vld [vmem:[%s2 + $0x40] sm:$0xff]
      %v348 = vld [vmem:[%s2 + $0x48] sm:$0xff]
      %v349 = vld [vmem:[%s2 + $0x50] sm:$0xff]
      %v350 = vld [vmem:[%s2 + $0x58] sm:$0xff]
      %v351 = vld [vmem:[%s2 + $0x60] sm:$0xff]
      %v352 = vld [vmem:[%s2 + $0x68] sm:$0xff]
      %v353 = vld [vmem:[%s2 + $0x70] sm:$0xff]
      %v354 = vld [vmem:[%s2 + $0x78] sm:$0xff]
      %356 = vrot.lane.b32.xlu0 %v310, 126
      %v357 = vpop.permute.xlu0 %356
      %v358 = vsel %vm335, %v334, %v357
      %s359 = scalar_lea.vmem %s2, 128
      %v360 = vld [vmem:[%s359] sm:$0xff]
      %v361 = vld [vmem:[%s359 + $0x8] sm:$0xff]
      %v362 = vld [vmem:[%s359 + $0x10] sm:$0xff]
      %v363 = vld [vmem:[%s359 + $0x18] sm:$0xff]
      %v364 = vld [vmem:[%s359 + $0x20] sm:$0xff]
      %v365 = vld [vmem:[%s359 + $0x28] sm:$0xff]
      %v366 = vld [vmem:[%s359 + $0x30] sm:$0xff]
      %v367 = vld [vmem:[%s359 + $0x38] sm:$0xff]
      %v368 = vld [vmem:[%s359 + $0x40] sm:$0xff]
      %v369 = vld [vmem:[%s359 + $0x48] sm:$0xff]
      %v370 = vld [vmem:[%s359 + $0x50] sm:$0xff]
      %v371 = vld [vmem:[%s359 + $0x58] sm:$0xff]
      %v372 = vld [vmem:[%s359 + $0x60] sm:$0xff]
      %v373 = vld [vmem:[%s359 + $0x68] sm:$0xff]
      %v374 = vld [vmem:[%s359 + $0x70] sm:$0xff]
      %v375 = vld [vmem:[%s359 + $0x78] sm:$0xff]
      %376 = vrot.lane.b32.xlu0 %v306, 1
      %v377 = vpop.permute.xlu0 %376
      %378 = vrot.lane.b32.xlu0 %v307, 1
      %v379 = vpop.permute.xlu0 %378
      %380 = vrot.lane.b32.xlu0 %v308, 1
      %v381 = vpop.permute.xlu0 %380
      %382 = vrot.lane.b32.xlu0 %v309, 1
      %v383 = vpop.permute.xlu0 %382
      %384 = vrot.lane.b32.xlu0 %v318, 1
      %v385 = vpop.permute.xlu0 %384
      %386 = vrot.lane.b32.xlu0 %v325, 1
      %v387 = vpop.permute.xlu0 %386
      %388 = vrot.lane.b32.xlu0 %v326, 1
      %v389 = vpop.permute.xlu0 %388
      %390 = vrot.lane.b32.xlu0 %v322, 1
      %v391 = vpop.permute.xlu0 %390
      %392 = vrot.lane.b32.xlu0 %v330, 1
      %v393 = vpop.permute.xlu0 %392
      %394 = vrot.lane.b32.xlu0 %v337, 1
      %v395 = vpop.permute.xlu0 %394
      %396 = vrot.lane.b32.xlu0 %v338, 1
      %v397 = vpop.permute.xlu0 %396
      %398 = vrot.lane.b32.xlu0 %v358, 1
      %v399 = vpop.permute.xlu0 %398
      %vm400 = vcmask 7168
      %v401 = vsel %vm400, %v377, %v379
      %v402 = vsel %vm400, %v379, %v381
      %v403 = vsel %vm400, %v381, %v383
      %v404 = vsel %vm400, %v385, %v387
      %v405 = vsel %vm400, %v387, %v389
      %v406 = vsel %vm400, %v389, %v391
      %v407 = vsel %vm400, %v393, %v395
      %v408 = vsel %vm400, %v395, %v397
      %v409 = vsel %vm400, %v397, %v399
      %vm419 = vcmask 195584
      %v421 = vsel %vm419, %v360, 0
      %v424 = vsel %vm419, %v361, 0
      %v427 = vsel %vm419, %v362, 0
      %v430 = vsel %vm419, %v363, 0
      %v433 = vsel %vm419, %v364, 0
      %v436 = vsel %vm419, %v365, 0
      %v439 = vsel %vm419, %v366, 0
      %v442 = vsel %vm419, %v367, 0
      %v445 = vsel %vm419, %v368, 0
      %v448 = vsel %vm419, %v369, 0
      %v451 = vsel %vm419, %v370, 0
      %v454 = vsel %vm419, %v371, 0
      %v457 = vsel %vm419, %v372, 0
      %v460 = vsel %vm419, %v373, 0
      %v463 = vsel %vm419, %v374, 0
      %v466 = vsel %vm419, %v375, 0
      %468 = vmatprep.subr.mxu0 %v402
      %469 = vmatpush1.msra.mxu0 %v401
      %470 = vmatprep.subr.mxu0 %v405
      %471 = vmatpush1.msra.mxu0 %v404
      %472 = vmatprep.subr.mxu0 %v408
      %473 = vmatpush1.msra.mxu0 %v407
      %474 = vmatprep.subr.mxu0 0.0
      %475 = vmatpush1.msra.mxu0 0.0
      %476 = vmatprep.subr.mxu0 0.0
      %477 = vmatpush1.msra.mxu0 0.0
      %478 = vmatprep.subr.mxu0 0.0
      %479 = vmatpush1.msra.mxu0 0.0
      %480 = vmatprep.subr.mxu0 0.0
      %481 = vmatpush1.msra.mxu0 0.0
      %482 = vmatprep.subr.mxu0 0.0
      %483 = vmatpush1.msra.mxu0 0.0
      %484 = vmatprep.subr.mxu0 0.0
      %485 = vmatpush1.msra.mxu0 0.0
      %486 = vmatprep.subr.mxu0 0.0
      %487 = vmatpush1.msra.mxu0 0.0
      %488 = vmatprep.subr.mxu0 0.0
      %489 = vmatpush1.msra.mxu0 0.0
      %490 = vmatprep.subr.mxu0 0.0
      %491 = vmatpush1.msra.mxu0 0.0
      %492 = vmatprep.subr.mxu0 0.0
      %493 = vmatpush1.msra.mxu0 0.0
      %494 = vmatprep.subr.mxu0 0.0
      %495 = vmatpush1.msra.mxu0 0.0
      %496 = vmatprep.subr.mxu0 0.0
      %497 = vmatpush1.msra.mxu0 0.0
      %498 = vmatprep.subr.mxu0 0.0
      %499 = vmatpush1.msra.mxu0 0.0
      %500 = vmatprep.subr.mxu0 0.0
      %501 = vmatpush1.msra.mxu0 0.0
      %502 = vmatprep.subr.mxu0 0.0
      %503 = vmatpush1.msra.mxu0 0.0
      %504 = vmatprep.subr.mxu0 0.0
      %505 = vmatpush1.msra.mxu0 0.0
      %506 = vmatprep.subr.mxu0 0.0
      %507 = vmatpush1.msra.mxu0 0.0
      %508 = vmatprep.subr.mxu0 0.0
      %509 = vmatpush1.msra.mxu0 0.0
      %510 = vmatprep.subr.mxu0 0.0
      %511 = vmatpush1.msra.mxu0 0.0
      %512 = vmatprep.subr.mxu0 0.0
      %513 = vmatpush1.msra.mxu0 0.0
      %514 = vmatprep.subr.mxu0 0.0
      %515 = vmatpush1.msra.mxu0 0.0
      %516 = vmatprep.subr.mxu0 0.0
      %517 = vmatpush1.msra.mxu0 0.0
      %518 = vmatprep.subr.mxu0 0.0
      %519 = vmatpush1.msra.mxu0 0.0
      %520 = vmatprep.subr.mxu0 0.0
      %521 = vmatpush1.msra.mxu0 0.0
      %522 = vmatprep.subr.mxu0 0.0
      %523 = vmatpush1.msra.mxu0 0.0
      %524 = vmatprep.subr.mxu0 0.0
      %525 = vmatpush1.msra.mxu0 0.0
      %526 = vmatprep.subr.mxu0 0.0
      %527 = vmatpush1.msra.mxu0 0.0
      %528 = vmatprep.subr.mxu0 0.0
      %529 = vmatpush1.msra.mxu0 0.0
      %530 = vmatprep.subr.mxu0 0.0
      %531 = vmatpush1.msra.mxu0 0.0
      %532 = vmatprep.mubr.f32.mxu0 0.0
      %533 = vmatmul.mubr.f32.gmra.mrb[0].mxu0 %v421
      %v534 = vpop.f32.mrb[0].mxu0
      %v535 = vadd.f32 0.0, %v534
      %v536 = vpop.f32.mrb[0].mxu0
      %v537 = vadd.f32 0.0, %v536
      %538 = vmatprep.mubr.f32.mxu0 0.0
      %539 = vmatmul.mubr.f32.gmra.mrb[0].mxu0 %v424
      %v540 = vpop.f32.mrb[0].mxu0
      %v541 = vadd.f32 0.0, %v540
      %v542 = vpop.f32.mrb[0].mxu0
      %v543 = vadd.f32 0.0, %v542
      %544 = vmatprep.mubr.f32.mxu0 0.0
      %545 = vmatmul.mubr.f32.gmra.mrb[0].mxu0 %v427
      %v546 = vpop.f32.mrb[0].mxu0
      %v547 = vadd.f32 0.0, %v546
      %v548 = vpop.f32.mrb[0].mxu0
      %v549 = vadd.f32 0.0, %v548
      %550 = vmatprep.mubr.f32.mxu0 0.0
      %551 = vmatmul.mubr.f32.gmra.mrb[0].mxu0 %v430
      %v552 = vpop.f32.mrb[0].mxu0
      %v553 = vadd.f32 0.0, %v552
      %v554 = vpop.f32.mrb[0].mxu0
      %v555 = vadd.f32 0.0, %v554
      %556 = vmatprep.mubr.f32.mxu0 0.0
      %557 = vmatmul.mubr.f32.gmra.mrb[0].mxu0 %v433
      %v558 = vpop.f32.mrb[0].mxu0
      %v559 = vadd.f32 0.0, %v558
      %v560 = vpop.f32.mrb[0].mxu0
      %v561 = vadd.f32 0.0, %v560
      %562 = vmatprep.mubr.f32.mxu0 0.0
      %563 = vmatmul.mubr.f32.gmra.mrb[0].mxu0 %v436
      %v564 = vpop.f32.mrb[0].mxu0
      %v565 = vadd.f32 0.0, %v564
      %v566 = vpop.f32.mrb[0].mxu0
      %v567 = vadd.f32 0.0, %v566
      %568 = vmatprep.mubr.f32.mxu0 0.0
      %569 = vmatmul.mubr.f32.gmra.mrb[0].mxu0 %v439
      %v570 = vpop.f32.mrb[0].mxu0
      %v571 = vadd.f32 0.0, %v570
      %v572 = vpop.f32.mrb[0].mxu0
      %v573 = vadd.f32 0.0, %v572
      %574 = vmatprep.mubr.f32.mxu0 0.0
      %575 = vmatmul.mubr.f32.gmra.mrb[0].mxu0 %v442
      %v576 = vpop.f32.mrb[0].mxu0
      %v577 = vadd.f32 0.0, %v576
      %v578 = vpop.f32.mrb[0].mxu0
      %v579 = vadd.f32 0.0, %v578
      %580 = vmatprep.mubr.f32.mxu0 0.0
      %581 = vmatmul.mubr.f32.gmra.mrb[0].mxu0 %v445
      %v582 = vpop.f32.mrb[0].mxu0
      %v583 = vadd.f32 0.0, %v582
      %v584 = vpop.f32.mrb[0].mxu0
      %v585 = vadd.f32 0.0, %v584
      %586 = vmatprep.mubr.f32.mxu0 0.0
      %587 = vmatmul.mubr.f32.gmra.mrb[0].mxu0 %v448
      %v588 = vpop.f32.mrb[0].mxu0
      %v589 = vadd.f32 0.0, %v588
      %v590 = vpop.f32.mrb[0].mxu0
      %v591 = vadd.f32 0.0, %v590
      %592 = vmatprep.mubr.f32.mxu0 0.0
      %593 = vmatmul.mubr.f32.gmra.mrb[0].mxu0 %v451
      %v594 = vpop.f32.mrb[0].mxu0
      %v595 = vadd.f32 0.0, %v594
      %v596 = vpop.f32.mrb[0].mxu0
      %v597 = vadd.f32 0.0, %v596
      %598 = vmatprep.mubr.f32.mxu0 0.0
      %599 = vmatmul.mubr.f32.gmra.mrb[0].mxu0 %v454
      %v600 = vpop.f32.mrb[0].mxu0
      %v601 = vadd.f32 0.0, %v600
      %v602 = vpop.f32.mrb[0].mxu0
      %v603 = vadd.f32 0.0, %v602
      %604 = vmatprep.mubr.f32.mxu0 0.0
      %605 = vmatmul.mubr.f32.gmra.mrb[0].mxu0 %v457
      %v606 = vpop.f32.mrb[0].mxu0
      %v607 = vadd.f32 0.0, %v606
      %v608 = vpop.f32.mrb[0].mxu0
      %v609 = vadd.f32 0.0, %v608
      %610 = vmatprep.mubr.f32.mxu0 0.0
      %611 = vmatmul.mubr.f32.gmra.mrb[0].mxu0 %v460
      %v612 = vpop.f32.mrb[0].mxu0
      %v613 = vadd.f32 0.0, %v612
      %v614 = vpop.f32.mrb[0].mxu0
      %v615 = vadd.f32 0.0, %v614
      %616 = vmatprep.mubr.f32.mxu0 0.0
      %617 = vmatmul.mubr.f32.gmra.mrb[0].mxu0 %v463
      %v618 = vpop.f32.mrb[0].mxu0
      %v619 = vadd.f32 0.0, %v618
      %v620 = vpop.f32.mrb[0].mxu0
      %v621 = vadd.f32 0.0, %v620
      %622 = vmatprep.mubr.f32.mxu0 0.0
      %623 = vmatmul.mubr.f32.gmra.mrb[0].mxu0 %v466
      %v624 = vpop.f32.mrb[0].mxu0
      %v625 = vadd.f32 0.0, %v624
      %v626 = vpop.f32.mrb[0].mxu0
      %v627 = vadd.f32 0.0, %v626
      %628 = vdwg.mxu0
      %629 = vmatprep.subr.mxu0 0.0
      %630 = vmatpush1.msra.mxu0 %v403
      %631 = vmatprep.subr.mxu0 0.0
      %632 = vmatpush1.msra.mxu0 %v406
      %633 = vmatprep.subr.mxu0 0.0
      %634 = vmatpush1.msra.mxu0 %v409
      %635 = vmatprep.subr.mxu0 0.0
      %636 = vmatpush1.msra.mxu0 0.0
      %637 = vmatprep.subr.mxu0 0.0
      %638 = vmatpush1.msra.mxu0 0.0
      %639 = vmatprep.subr.mxu0 0.0
      %640 = vmatpush1.msra.mxu0 0.0
      %641 = vmatprep.subr.mxu0 0.0
      %642 = vmatpush1.msra.mxu0 0.0
      %643 = vmatprep.subr.mxu0 0.0
      %644 = vmatpush1.msra.mxu0 0.0
      %645 = vmatprep.subr.mxu0 0.0
      %646 = vmatpush1.msra.mxu0 0.0
      %647 = vmatprep.subr.mxu0 0.0
      %648 = vmatpush1.msra.mxu0 0.0
      %649 = vmatprep.subr.mxu0 0.0
      %650 = vmatpush1.msra.mxu0 0.0
      %651 = vmatprep.subr.mxu0 0.0
      %652 = vmatpush1.msra.mxu0 0.0
      %653 = vmatprep.subr.mxu0 0.0
      %654 = vmatpush1.msra.mxu0 0.0
      %655 = vmatprep.subr.mxu0 0.0
      %656 = vmatpush1.msra.mxu0 0.0
      %657 = vmatprep.subr.mxu0 0.0
      %658 = vmatpush1.msra.mxu0 0.0
      %659 = vmatprep.subr.mxu0 0.0
      %660 = vmatpush1.msra.mxu0 0.0
      %661 = vmatprep.subr.mxu0 0.0
      %662 = vmatpush1.msra.mxu0 0.0
      %663 = vmatprep.subr.mxu0 0.0
      %664 = vmatpush1.msra.mxu0 0.0
      %665 = vmatprep.subr.mxu0 0.0
      %666 = vmatpush1.msra.mxu0 0.0
      %667 = vmatprep.subr.mxu0 0.0
      %668 = vmatpush1.msra.mxu0 0.0
      %669 = vmatprep.subr.mxu0 0.0
      %670 = vmatpush1.msra.mxu0 0.0
      %671 = vmatprep.subr.mxu0 0.0
      %672 = vmatpush1.msra.mxu0 0.0
      %673 = vmatprep.subr.mxu0 0.0
      %674 = vmatpush1.msra.mxu0 0.0
      %675 = vmatprep.subr.mxu0 0.0
      %676 = vmatpush1.msra.mxu0 0.0
      %677 = vmatprep.subr.mxu0 0.0
      %678 = vmatpush1.msra.mxu0 0.0
      %679 = vmatprep.subr.mxu0 0.0
      %680 = vmatpush1.msra.mxu0 0.0
      %681 = vmatprep.subr.mxu0 0.0
      %682 = vmatpush1.msra.mxu0 0.0
      %683 = vmatprep.subr.mxu0 0.0
      %684 = vmatpush1.msra.mxu0 0.0
      %685 = vmatprep.subr.mxu0 0.0
      %686 = vmatpush1.msra.mxu0 0.0
      %687 = vmatprep.subr.mxu0 0.0
      %688 = vmatpush1.msra.mxu0 0.0
      %689 = vmatprep.subr.mxu0 0.0
      %690 = vmatpush1.msra.mxu0 0.0
      %691 = vmatprep.subr.mxu0 0.0
      %692 = vmatpush1.msra.mxu0 0.0
      %693 = vmatprep.mubr.f32.mxu0 0.0
      %694 = vmatmul.mubr.f32.gmra.mrb[0].mxu0 %v421
      %v695 = vpop.f32.mrb[0].mxu0
      %v696 = vadd.f32 0.0, %v695
      %v697 = vpop.f32.mrb[0].mxu0
      %698 = vmatprep.mubr.f32.mxu0 0.0
      %699 = vmatmul.mubr.f32.gmra.mrb[0].mxu0 %v424
      %v700 = vpop.f32.mrb[0].mxu0
      %v701 = vadd.f32 0.0, %v700
      %v702 = vpop.f32.mrb[0].mxu0
      %703 = vmatprep.mubr.f32.mxu0 0.0
      %704 = vmatmul.mubr.f32.gmra.mrb[0].mxu0 %v427
      %v705 = vpop.f32.mrb[0].mxu0
      %v706 = vadd.f32 0.0, %v705
      %v707 = vpop.f32.mrb[0].mxu0
      %708 = vmatprep.mubr.f32.mxu0 0.0
      %709 = vmatmul.mubr.f32.gmra.mrb[0].mxu0 %v430
      %v710 = vpop.f32.mrb[0].mxu0
      %v711 = vadd.f32 0.0, %v710
      %v712 = vpop.f32.mrb[0].mxu0
      %713 = vmatprep.mubr.f32.mxu0 0.0
      %714 = vmatmul.mubr.f32.gmra.mrb[0].mxu0 %v433
      %v715 = vpop.f32.mrb[0].mxu0
      %v716 = vadd.f32 0.0, %v715
      %v717 = vpop.f32.mrb[0].mxu0
      %718 = vmatprep.mubr.f32.mxu0 0.0
      %719 = vmatmul.mubr.f32.gmra.mrb[0].mxu0 %v436
      %v720 = vpop.f32.mrb[0].mxu0
      %v721 = vadd.f32 0.0, %v720
      %v722 = vpop.f32.mrb[0].mxu0
      %723 = vmatprep.mubr.f32.mxu0 0.0
      %724 = vmatmul.mubr.f32.gmra.mrb[0].mxu0 %v439
      %v725 = vpop.f32.mrb[0].mxu0
      %v726 = vadd.f32 0.0, %v725
      %v727 = vpop.f32.mrb[0].mxu0
      %728 = vmatprep.mubr.f32.mxu0 0.0
      %729 = vmatmul.mubr.f32.gmra.mrb[0].mxu0 %v442
      %v730 = vpop.f32.mrb[0].mxu0
      %v731 = vadd.f32 0.0, %v730
      %v732 = vpop.f32.mrb[0].mxu0
      %733 = vmatprep.mubr.f32.mxu0 0.0
      %734 = vmatmul.mubr.f32.gmra.mrb[0].mxu0 %v445
      %v735 = vpop.f32.mrb[0].mxu0
      %v736 = vadd.f32 0.0, %v735
      %v737 = vpop.f32.mrb[0].mxu0
      %738 = vmatprep.mubr.f32.mxu0 0.0
      %739 = vmatmul.mubr.f32.gmra.mrb[0].mxu0 %v448
      %v740 = vpop.f32.mrb[0].mxu0
      %v741 = vadd.f32 0.0, %v740
      %v742 = vpop.f32.mrb[0].mxu0
      %743 = vmatprep.mubr.f32.mxu0 0.0
      %744 = vmatmul.mubr.f32.gmra.mrb[0].mxu0 %v451
      %v745 = vpop.f32.mrb[0].mxu0
      %v746 = vadd.f32 0.0, %v745
      %v747 = vpop.f32.mrb[0].mxu0
      %748 = vmatprep.mubr.f32.mxu0 0.0
      %749 = vmatmul.mubr.f32.gmra.mrb[0].mxu0 %v454
      %v750 = vpop.f32.mrb[0].mxu0
      %v751 = vadd.f32 0.0, %v750
      %v752 = vpop.f32.mrb[0].mxu0
      %753 = vmatprep.mubr.f32.mxu0 0.0
      %754 = vmatmul.mubr.f32.gmra.mrb[0].mxu0 %v457
      %v755 = vpop.f32.mrb[0].mxu0
      %v756 = vadd.f32 0.0, %v755
      %v757 = vpop.f32.mrb[0].mxu0
      %758 = vmatprep.mubr.f32.mxu0 0.0
      %759 = vmatmul.mubr.f32.gmra.mrb[0].mxu0 %v460
      %v760 = vpop.f32.mrb[0].mxu0
      %v761 = vadd.f32 0.0, %v760
      %v762 = vpop.f32.mrb[0].mxu0
      %763 = vmatprep.mubr.f32.mxu0 0.0
      %764 = vmatmul.mubr.f32.gmra.mrb[0].mxu0 %v463
      %v765 = vpop.f32.mrb[0].mxu0
      %v766 = vadd.f32 0.0, %v765
      %v767 = vpop.f32.mrb[0].mxu0
      %768 = vmatprep.mubr.f32.mxu0 0.0
      %769 = vmatmul.mubr.f32.gmra.mrb[0].mxu0 %v466
      %v770 = vpop.f32.mrb[0].mxu0
      %v771 = vadd.f32 0.0, %v770
      %v772 = vpop.f32.mrb[0].mxu0
      %773 = vdwg.mxu0
      %774 = vrot.lane.b32.xlu0 %v306, 19
      %v775 = vpop.permute.xlu0 %774
      %776 = vrot.lane.b32.xlu0 %v307, 19
      %v777 = vpop.permute.xlu0 %776
      %778 = vrot.lane.b32.xlu0 %v308, 19
      %v779 = vpop.permute.xlu0 %778
      %780 = vrot.lane.b32.xlu0 %v309, 19
      %v781 = vpop.permute.xlu0 %780
      %782 = vrot.lane.b32.xlu0 %v324, 19
      %v783 = vpop.permute.xlu0 %782
      %784 = vrot.lane.b32.xlu0 %v325, 19
      %v785 = vpop.permute.xlu0 %784
      %786 = vrot.lane.b32.xlu0 %v326, 19
      %v787 = vpop.permute.xlu0 %786
      %788 = vrot.lane.b32.xlu0 %v322, 19
      %v789 = vpop.permute.xlu0 %788
      %790 = vrot.lane.b32.xlu0 %v336, 19
      %v791 = vpop.permute.xlu0 %790
      %792 = vrot.lane.b32.xlu0 %v337, 19
      %v793 = vpop.permute.xlu0 %792
      %794 = vrot.lane.b32.xlu0 %v338, 19
      %v795 = vpop.permute.xlu0 %794
      %796 = vrot.lane.b32.xlu0 %v334, 19
      %v797 = vpop.permute.xlu0 %796
      %vm798 = vcmask 154624
      %v799 = vsel %vm798, %v775, %v777
      %v800 = vsel %vm798, %v777, %v779
      %v801 = vsel %vm798, %v779, %v781
      %v802 = vsel %vm798, %v783, %v785
      %v803 = vsel %vm798, %v785, %v787
      %v804 = vsel %vm798, %v787, %v789
      %v805 = vsel %vm798, %v791, %v793
      %v806 = vsel %vm798, %v793, %v795
      %v807 = vsel %vm798, %v795, %v797
      %v818 = vsel %vm419, %v339, 0
      %v821 = vsel %vm419, %v340, 0
      %v824 = vsel %vm419, %v341, 0
      %v827 = vsel %vm419, %v342, 0
      %v830 = vsel %vm419, %v343, 0
      %v833 = vsel %vm419, %v344, 0
      %v836 = vsel %vm419, %v345, 0
      %v839 = vsel %vm419, %v346, 0
      %v842 = vsel %vm419, %v347, 0
      %v845 = vsel %vm419, %v348, 0
      %v848 = vsel %vm419, %v349, 0
      %v851 = vsel %vm419, %v350, 0
      %v854 = vsel %vm419, %v351, 0
      %v857 = vsel %vm419, %v352, 0
      %v860 = vsel %vm419, %v353, 0
      %v863 = vsel %vm419, %v354, 0
      %865 = vmatprep.subr.mxu0 %v800
      %866 = vmatpush1.msra.mxu0 %v799
      %867 = vmatprep.subr.mxu0 %v803
      %868 = vmatpush1.msra.mxu0 %v802
      %869 = vmatprep.subr.mxu0 %v806
      %870 = vmatpush1.msra.mxu0 %v805
      %871 = vmatprep.subr.mxu0 0.0
      %872 = vmatpush1.msra.mxu0 0.0
      %873 = vmatprep.subr.mxu0 0.0
      %874 = vmatpush1.msra.mxu0 0.0
      %875 = vmatprep.subr.mxu0 0.0
      %876 = vmatpush1.msra.mxu0 0.0
      %877 = vmatprep.subr.mxu0 0.0
      %878 = vmatpush1.msra.mxu0 0.0
      %879 = vmatprep.subr.mxu0 0.0
      %880 = vmatpush1.msra.mxu0 0.0
      %881 = vmatprep.subr.mxu0 0.0
      %882 = vmatpush1.msra.mxu0 0.0
      %883 = vmatprep.subr.mxu0 0.0
      %884 = vmatpush1.msra.mxu0 0.0
      %885 = vmatprep.subr.mxu0 0.0
      %886 = vmatpush1.msra.mxu0 0.0
      %887 = vmatprep.subr.mxu0 0.0
      %888 = vmatpush1.msra.mxu0 0.0
      %889 = vmatprep.subr.mxu0 0.0
      %890 = vmatpush1.msra.mxu0 0.0
      %891 = vmatprep.subr.mxu0 0.0
      %892 = vmatpush1.msra.mxu0 0.0
      %893 = vmatprep.subr.mxu0 0.0
      %894 = vmatpush1.msra.mxu0 0.0
      %895 = vmatprep.subr.mxu0 0.0
      %896 = vmatpush1.msra.mxu0 0.0
      %897 = vmatprep.subr.mxu0 0.0
      %898 = vmatpush1.msra.mxu0 0.0
      %899 = vmatprep.subr.mxu0 0.0
      %900 = vmatpush1.msra.mxu0 0.0
      %901 = vmatprep.subr.mxu0 0.0
      %902 = vmatpush1.msra.mxu0 0.0
      %903 = vmatprep.subr.mxu0 0.0
      %904 = vmatpush1.msra.mxu0 0.0
      %905 = vmatprep.subr.mxu0 0.0
      %906 = vmatpush1.msra.mxu0 0.0
      %907 = vmatprep.subr.mxu0 0.0
      %908 = vmatpush1.msra.mxu0 0.0
      %909 = vmatprep.subr.mxu0 0.0
      %910 = vmatpush1.msra.mxu0 0.0
      %911 = vmatprep.subr.mxu0 0.0
      %912 = vmatpush1.msra.mxu0 0.0
      %913 = vmatprep.subr.mxu0 0.0
      %914 = vmatpush1.msra.mxu0 0.0
      %915 = vmatprep.subr.mxu0 0.0
      %916 = vmatpush1.msra.mxu0 0.0
      %917 = vmatprep.subr.mxu0 0.0
      %918 = vmatpush1.msra.mxu0 0.0
      %919 = vmatprep.subr.mxu0 0.0
      %920 = vmatpush1.msra.mxu0 0.0
      %921 = vmatprep.subr.mxu0 0.0
      %922 = vmatpush1.msra.mxu0 0.0
      %923 = vmatprep.subr.mxu0 0.0
      %924 = vmatpush1.msra.mxu0 0.0
      %925 = vmatprep.subr.mxu0 0.0
      %926 = vmatpush1.msra.mxu0 0.0
      %927 = vmatprep.subr.mxu0 0.0
      %928 = vmatpush1.msra.mxu0 0.0
      %929 = vmatprep.mubr.f32.mxu0 0.0
      %930 = vmatmul.mubr.f32.gmra.mrb[0].mxu0 %v818
      %v931 = vpop.f32.mrb[0].mxu0
      %v932 = vadd.f32 %v535, %v931
      %v933 = vpop.f32.mrb[0].mxu0
      %v934 = vadd.f32 %v537, %v933
      %935 = vmatprep.mubr.f32.mxu0 0.0
      %936 = vmatmul.mubr.f32.gmra.mrb[0].mxu0 %v821
      %v937 = vpop.f32.mrb[0].mxu0
      %v938 = vadd.f32 %v541, %v937
      %v939 = vpop.f32.mrb[0].mxu0
      %v940 = vadd.f32 %v543, %v939
      %941 = vmatprep.mubr.f32.mxu0 0.0
      %942 = vmatmul.mubr.f32.gmra.mrb[0].mxu0 %v824
      %v943 = vpop.f32.mrb[0].mxu0
      %v944 = vadd.f32 %v547, %v943
      %v945 = vpop.f32.mrb[0].mxu0
      %v946 = vadd.f32 %v549, %v945
      %947 = vmatprep.mubr.f32.mxu0 0.0
      %948 = vmatmul.mubr.f32.gmra.mrb[0].mxu0 %v827
      %v949 = vpop.f32.mrb[0].mxu0
      %v950 = vadd.f32 %v553, %v949
      %v951 = vpop.f32.mrb[0].mxu0
      %v952 = vadd.f32 %v555, %v951
      %953 = vmatprep.mubr.f32.mxu0 0.0
      %954 = vmatmul.mubr.f32.gmra.mrb[0].mxu0 %v830
      %v955 = vpop.f32.mrb[0].mxu0
      %v956 = vadd.f32 %v559, %v955
      %v957 = vpop.f32.mrb[0].mxu0
      %v958 = vadd.f32 %v561, %v957
      %959 = vmatprep.mubr.f32.mxu0 0.0
      %960 = vmatmul.mubr.f32.gmra.mrb[0].mxu0 %v833
      %v961 = vpop.f32.mrb[0].mxu0
      %v962 = vadd.f32 %v565, %v961
      %v963 = vpop.f32.mrb[0].mxu0
      %v964 = vadd.f32 %v567, %v963
      %965 = vmatprep.mubr.f32.mxu0 0.0
      %966 = vmatmul.mubr.f32.gmra.mrb[0].mxu0 %v836
      %v967 = vpop.f32.mrb[0].mxu0
      %v968 = vadd.f32 %v571, %v967
      %v969 = vpop.f32.mrb[0].mxu0
      %v970 = vadd.f32 %v573, %v969
      %971 = vmatprep.mubr.f32.mxu0 0.0
      %972 = vmatmul.mubr.f32.gmra.mrb[0].mxu0 %v839
      %v973 = vpop.f32.mrb[0].mxu0
      %v974 = vadd.f32 %v577, %v973
      %v975 = vpop.f32.mrb[0].mxu0
      %v976 = vadd.f32 %v579, %v975
      %977 = vmatprep.mubr.f32.mxu0 0.0
      %978 = vmatmul.mubr.f32.gmra.mrb[0].mxu0 %v842
      %v979 = vpop.f32.mrb[0].mxu0
      %v980 = vadd.f32 %v583, %v979
      %v981 = vpop.f32.mrb[0].mxu0
      %v982 = vadd.f32 %v585, %v981
      %983 = vmatprep.mubr.f32.mxu0 0.0
      %984 = vmatmul.mubr.f32.gmra.mrb[0].mxu0 %v845
      %v985 = vpop.f32.mrb[0].mxu0
      %v986 = vadd.f32 %v589, %v985
      %v987 = vpop.f32.mrb[0].mxu0
      %v988 = vadd.f32 %v591, %v987
      %989 = vmatprep.mubr.f32.mxu0 0.0
      %990 = vmatmul.mubr.f32.gmra.mrb[0].mxu0 %v848
      %v991 = vpop.f32.mrb[0].mxu0
      %v992 = vadd.f32 %v595, %v991
      %v993 = vpop.f32.mrb[0].mxu0
      %v994 = vadd.f32 %v597, %v993
      %995 = vmatprep.mubr.f32.mxu0 0.0
      %996 = vmatmul.mubr.f32.gmra.mrb[0].mxu0 %v851
      %v997 = vpop.f32.mrb[0].mxu0
      %v998 = vadd.f32 %v601, %v997
      %v999 = vpop.f32.mrb[0].mxu0
      %v1000 = vadd.f32 %v603, %v999
      %1001 = vmatprep.mubr.f32.mxu0 0.0
      %1002 = vmatmul.mubr.f32.gmra.mrb[0].mxu0 %v854
      %v1003 = vpop.f32.mrb[0].mxu0
      %v1004 = vadd.f32 %v607, %v1003
      %v1005 = vpop.f32.mrb[0].mxu0
      %v1006 = vadd.f32 %v609, %v1005
      %1007 = vmatprep.mubr.f32.mxu0 0.0
      %1008 = vmatmul.mubr.f32.gmra.mrb[0].mxu0 %v857
      %v1009 = vpop.f32.mrb[0].mxu0
      %v1010 = vadd.f32 %v613, %v1009
      %v1011 = vpop.f32.mrb[0].mxu0
      %v1012 = vadd.f32 %v615, %v1011
      %1013 = vmatprep.mubr.f32.mxu0 0.0
      %1014 = vmatmul.mubr.f32.gmra.mrb[0].mxu0 %v860
      %v1015 = vpop.f32.mrb[0].mxu0
      %v1016 = vadd.f32 %v619, %v1015
      %v1017 = vpop.f32.mrb[0].mxu0
      %v1018 = vadd.f32 %v621, %v1017
      %1019 = vmatprep.mubr.f32.mxu0 0.0
      %1020 = vmatmul.mubr.f32.gmra.mrb[0].mxu0 %v863
      %v1021 = vpop.f32.mrb[0].mxu0
      %v1022 = vadd.f32 %v625, %v1021
      %v1023 = vpop.f32.mrb[0].mxu0
      %v1024 = vadd.f32 %v627, %v1023
      %1025 = vdwg.mxu0
      %1026 = vmatprep.subr.mxu0 0.0
      %1027 = vmatpush1.msra.mxu0 %v801
      %1028 = vmatprep.subr.mxu0 0.0
      %1029 = vmatpush1.msra.mxu0 %v804
      %1030 = vmatprep.subr.mxu0 0.0
      %1031 = vmatpush1.msra.mxu0 %v807
      %1032 = vmatprep.subr.mxu0 0.0
      %1033 = vmatpush1.msra.mxu0 0.0
      %1034 = vmatprep.subr.mxu0 0.0
      %1035 = vmatpush1.msra.mxu0 0.0
      %1036 = vmatprep.subr.mxu0 0.0
      %1037 = vmatpush1.msra.mxu0 0.0
      %1038 = vmatprep.subr.mxu0 0.0
      %1039 = vmatpush1.msra.mxu0 0.0
      %1040 = vmatprep.subr.mxu0 0.0
      %1041 = vmatpush1.msra.mxu0 0.0
      %1042 = vmatprep.subr.mxu0 0.0
      %1043 = vmatpush1.msra.mxu0 0.0
      %1044 = vmatprep.subr.mxu0 0.0
      %1045 = vmatpush1.msra.mxu0 0.0
      %1046 = vmatprep.subr.mxu0 0.0
      %1047 = vmatpush1.msra.mxu0 0.0
      %1048 = vmatprep.subr.mxu0 0.0
      %1049 = vmatpush1.msra.mxu0 0.0
      %1050 = vmatprep.subr.mxu0 0.0
      %1051 = vmatpush1.msra.mxu0 0.0
      %1052 = vmatprep.subr.mxu0 0.0
      %1053 = vmatpush1.msra.mxu0 0.0
      %1054 = vmatprep.subr.mxu0 0.0
      %1055 = vmatpush1.msra.mxu0 0.0
      %1056 = vmatprep.subr.mxu0 0.0
      %1057 = vmatpush1.msra.mxu0 0.0
      %1058 = vmatprep.subr.mxu0 0.0
      %1059 = vmatpush1.msra.mxu0 0.0
      %1060 = vmatprep.subr.mxu0 0.0
      %1061 = vmatpush1.msra.mxu0 0.0
      %1062 = vmatprep.subr.mxu0 0.0
      %1063 = vmatpush1.msra.mxu0 0.0
      %1064 = vmatprep.subr.mxu0 0.0
      %1065 = vmatpush1.msra.mxu0 0.0
      %1066 = vmatprep.subr.mxu0 0.0
      %1067 = vmatpush1.msra.mxu0 0.0
      %1068 = vmatprep.subr.mxu0 0.0
      %1069 = vmatpush1.msra.mxu0 0.0
      %1070 = vmatprep.subr.mxu0 0.0
      %1071 = vmatpush1.msra.mxu0 0.0
      %1072 = vmatprep.subr.mxu0 0.0
      %1073 = vmatpush1.msra.mxu0 0.0
      %1074 = vmatprep.subr.mxu0 0.0
      %1075 = vmatpush1.msra.mxu0 0.0
      %1076 = vmatprep.subr.mxu0 0.0
      %1077 = vmatpush1.msra.mxu0 0.0
      %1078 = vmatprep.subr.mxu0 0.0
      %1079 = vmatpush1.msra.mxu0 0.0
      %1080 = vmatprep.subr.mxu0 0.0
      %1081 = vmatpush1.msra.mxu0 0.0
      %1082 = vmatprep.subr.mxu0 0.0
      %1083 = vmatpush1.msra.mxu0 0.0
      %1084 = vmatprep.subr.mxu0 0.0
      %1085 = vmatpush1.msra.mxu0 0.0
      %1086 = vmatprep.subr.mxu0 0.0
      %1087 = vmatpush1.msra.mxu0 0.0
      %1088 = vmatprep.subr.mxu0 0.0
      %1089 = vmatpush1.msra.mxu0 0.0
      %1090 = vmatprep.mubr.f32.mxu0 0.0
      %1091 = vmatmul.mubr.f32.gmra.mrb[0].mxu0 %v818
      %v1092 = vpop.f32.mrb[0].mxu0
      %v1093 = vadd.f32 %v696, %v1092
      %v1094 = vpop.f32.mrb[0].mxu0
      %1095 = vmatprep.mubr.f32.mxu0 0.0
      %1096 = vmatmul.mubr.f32.gmra.mrb[0].mxu0 %v821
      %v1097 = vpop.f32.mrb[0].mxu0
      %v1098 = vadd.f32 %v701, %v1097
      %v1099 = vpop.f32.mrb[0].mxu0
      %1100 = vmatprep.mubr.f32.mxu0 0.0
      %1101 = vmatmul.mubr.f32.gmra.mrb[0].mxu0 %v824
      %v1102 = vpop.f32.mrb[0].mxu0
      %v1103 = vadd.f32 %v706, %v1102
      %v1104 = vpop.f32.mrb[0].mxu0
      %1105 = vmatprep.mubr.f32.mxu0 0.0
      %1106 = vmatmul.mubr.f32.gmra.mrb[0].mxu0 %v827
      %v1107 = vpop.f32.mrb[0].mxu0
      %v1108 = vadd.f32 %v711, %v1107
      %v1109 = vpop.f32.mrb[0].mxu0
      %1110 = vmatprep.mubr.f32.mxu0 0.0
      %1111 = vmatmul.mubr.f32.gmra.mrb[0].mxu0 %v830
      %v1112 = vpop.f32.mrb[0].mxu0
      %v1113 = vadd.f32 %v716, %v1112
      %v1114 = vpop.f32.mrb[0].mxu0
      %1115 = vmatprep.mubr.f32.mxu0 0.0
      %1116 = vmatmul.mubr.f32.gmra.mrb[0].mxu0 %v833
      %v1117 = vpop.f32.mrb[0].mxu0
      %v1118 = vadd.f32 %v721, %v1117
      %v1119 = vpop.f32.mrb[0].mxu0
      %1120 = vmatprep.mubr.f32.mxu0 0.0
      %1121 = vmatmul.mubr.f32.gmra.mrb[0].mxu0 %v836
      %v1122 = vpop.f32.mrb[0].mxu0
      %v1123 = vadd.f32 %v726, %v1122
      %v1124 = vpop.f32.mrb[0].mxu0
      %1125 = vmatprep.mubr.f32.mxu0 0.0
      %1126 = vmatmul.mubr.f32.gmra.mrb[0].mxu0 %v839
      %v1127 = vpop.f32.mrb[0].mxu0
      %v1128 = vadd.f32 %v731, %v1127
      %v1129 = vpop.f32.mrb[0].mxu0
      %1130 = vmatprep.mubr.f32.mxu0 0.0
      %1131 = vmatmul.mubr.f32.gmra.mrb[0].mxu0 %v842
      %v1132 = vpop.f32.mrb[0].mxu0
      %v1133 = vadd.f32 %v736, %v1132
      %v1134 = vpop.f32.mrb[0].mxu0
      %1135 = vmatprep.mubr.f32.mxu0 0.0
      %1136 = vmatmul.mubr.f32.gmra.mrb[0].mxu0 %v845
      %v1137 = vpop.f32.mrb[0].mxu0
      %v1138 = vadd.f32 %v741, %v1137
      %v1139 = vpop.f32.mrb[0].mxu0
      %1140 = vmatprep.mubr.f32.mxu0 0.0
      %1141 = vmatmul.mubr.f32.gmra.mrb[0].mxu0 %v848
      %v1142 = vpop.f32.mrb[0].mxu0
      %v1143 = vadd.f32 %v746, %v1142
      %v1144 = vpop.f32.mrb[0].mxu0
      %1145 = vmatprep.mubr.f32.mxu0 0.0
      %1146 = vmatmul.mubr.f32.gmra.mrb[0].mxu0 %v851
      %v1147 = vpop.f32.mrb[0].mxu0
      %v1148 = vadd.f32 %v751, %v1147
      %v1149 = vpop.f32.mrb[0].mxu0
      %1150 = vmatprep.mubr.f32.mxu0 0.0
      %1151 = vmatmul.mubr.f32.gmra.mrb[0].mxu0 %v854
      %v1152 = vpop.f32.mrb[0].mxu0
      %v1153 = vadd.f32 %v756, %v1152
      %v1154 = vpop.f32.mrb[0].mxu0
      %1155 = vmatprep.mubr.f32.mxu0 0.0
      %1156 = vmatmul.mubr.f32.gmra.mrb[0].mxu0 %v857
      %v1157 = vpop.f32.mrb[0].mxu0
      %v1158 = vadd.f32 %v761, %v1157
      %v1159 = vpop.f32.mrb[0].mxu0
      %1160 = vmatprep.mubr.f32.mxu0 0.0
      %1161 = vmatmul.mubr.f32.gmra.mrb[0].mxu0 %v860
      %v1162 = vpop.f32.mrb[0].mxu0
      %v1163 = vadd.f32 %v766, %v1162
      %v1164 = vpop.f32.mrb[0].mxu0
      %1165 = vmatprep.mubr.f32.mxu0 0.0
      %1166 = vmatmul.mubr.f32.gmra.mrb[0].mxu0 %v863
      %v1167 = vpop.f32.mrb[0].mxu0
      %v1168 = vadd.f32 %v771, %v1167
      %v1169 = vpop.f32.mrb[0].mxu0
      %1170 = vdwg.mxu0
      %1171 = vrot.lane.b32.xlu0 %v310, 127
      %v1172 = vpop.permute.xlu0 %1171
      %v1173 = vsel %vm323, %v322, %v1172
      %s1174 = scalar_lea.vmem %s2, 256
      %v1175 = vld [vmem:[%s1174] sm:$0xff]
      %v1176 = vld [vmem:[%s1174 + $0x8] sm:$0xff]
      %v1177 = vld [vmem:[%s1174 + $0x10] sm:$0xff]
      %v1178 = vld [vmem:[%s1174 + $0x18] sm:$0xff]
      %v1179 = vld [vmem:[%s1174 + $0x20] sm:$0xff]
      %v1180 = vld [vmem:[%s1174 + $0x28] sm:$0xff]
      %v1181 = vld [vmem:[%s1174 + $0x30] sm:$0xff]
      %v1182 = vld [vmem:[%s1174 + $0x38] sm:$0xff]
      %v1183 = vld [vmem:[%s1174 + $0x40] sm:$0xff]
      %v1184 = vld [vmem:[%s1174 + $0x48] sm:$0xff]
      %v1185 = vld [vmem:[%s1174 + $0x50] sm:$0xff]
      %v1186 = vld [vmem:[%s1174 + $0x58] sm:$0xff]
      %v1187 = vld [vmem:[%s1174 + $0x60] sm:$0xff]
      %v1188 = vld [vmem:[%s1174 + $0x68] sm:$0xff]
      %v1189 = vld [vmem:[%s1174 + $0x70] sm:$0xff]
      %v1190 = vld [vmem:[%s1174 + $0x78] sm:$0xff]
      %1191 = vrot.lane.b32.xlu0 %v307, 111
      %v1192 = vpop.permute.xlu0 %1191
      %1193 = vrot.lane.b32.xlu0 %v308, 111
      %v1194 = vpop.permute.xlu0 %1193
      %1195 = vrot.lane.b32.xlu0 %v309, 111
      %v1196 = vpop.permute.xlu0 %1195
      %1197 = vrot.lane.b32.xlu0 %v310, 111
      %v1198 = vpop.permute.xlu0 %1197
      %1199 = vrot.lane.b32.xlu0 %v325, 111
      %v1200 = vpop.permute.xlu0 %1199
      %1201 = vrot.lane.b32.xlu0 %v326, 111
      %v1202 = vpop.permute.xlu0 %1201
      %1203 = vrot.lane.b32.xlu0 %v1173, 111
      %v1204 = vpop.permute.xlu0 %1203
      %1205 = vrot.lane.b32.xlu0 %v1172, 111
      %v1206 = vpop.permute.xlu0 %1205
      %1207 = vrot.lane.b32.xlu0 %v337, 111
      %v1208 = vpop.permute.xlu0 %1207
      %1209 = vrot.lane.b32.xlu0 %v338, 111
      %v1210 = vpop.permute.xlu0 %1209
      %1211 = vrot.lane.b32.xlu0 %v358, 111
      %v1212 = vpop.permute.xlu0 %1211
      %1213 = vrot.lane.b32.xlu0 %v357, 111
      %v1214 = vpop.permute.xlu0 %1213
      %vm1215 = vcmask 908288
      %v1216 = vsel %vm1215, %v1192, %v1194
      %v1217 = vsel %vm1215, %v1194, %v1196
      %v1218 = vsel %vm1215, %v1196, %v1198
      %v1219 = vsel %vm1215, %v1200, %v1202
      %v1220 = vsel %vm1215, %v1202, %v1204
      %v1221 = vsel %vm1215, %v1204, %v1206
      %v1222 = vsel %vm1215, %v1208, %v1210
      %v1223 = vsel %vm1215, %v1210, %v1212
      %v1224 = vsel %vm1215, %v1212, %v1214
      %v1235 = vsel %vm419, %v1175, 0
      %v1238 = vsel %vm419, %v1176, 0
      %v1241 = vsel %vm419, %v1177, 0
      %v1244 = vsel %vm419, %v1178, 0
      %v1247 = vsel %vm419, %v1179, 0
      %v1250 = vsel %vm419, %v1180, 0
      %v1253 = vsel %vm419, %v1181, 0
      %v1256 = vsel %vm419, %v1182, 0
      %v1259 = vsel %vm419, %v1183, 0
      %v1262 = vsel %vm419, %v1184, 0
      %v1265 = vsel %vm419, %v1185, 0
      %v1268 = vsel %vm419, %v1186, 0
      %v1271 = vsel %vm419, %v1187, 0
      %v1274 = vsel %vm419, %v1188, 0
      %v1277 = vsel %vm419, %v1189, 0
      %v1280 = vsel %vm419, %v1190, 0
      %1282 = vmatprep.subr.mxu0 %v1217
      %1283 = vmatpush1.msra.mxu0 %v1216
      %1284 = vmatprep.subr.mxu0 %v1220
      %1285 = vmatpush1.msra.mxu0 %v1219
      %1286 = vmatprep.subr.mxu0 %v1223
      %1287 = vmatpush1.msra.mxu0 %v1222
      %1288 = vmatprep.subr.mxu0 0.0
      %1289 = vmatpush1.msra.mxu0 0.0
      %1290 = vmatprep.subr.mxu0 0.0
      %1291 = vmatpush1.msra.mxu0 0.0
      %1292 = vmatprep.subr.mxu0 0.0
      %1293 = vmatpush1.msra.mxu0 0.0
      %1294 = vmatprep.subr.mxu0 0.0
      %1295 = vmatpush1.msra.mxu0 0.0
      %1296 = vmatprep.subr.mxu0 0.0
      %1297 = vmatpush1.msra.mxu0 0.0
      %1298 = vmatprep.subr.mxu0 0.0
      %1299 = vmatpush1.msra.mxu0 0.0
      %1300 = vmatprep.subr.mxu0 0.0
      %1301 = vmatpush1.msra.mxu0 0.0
      %1302 = vmatprep.subr.mxu0 0.0
      %1303 = vmatpush1.msra.mxu0 0.0
      %1304 = vmatprep.subr.mxu0 0.0
      %1305 = vmatpush1.msra.mxu0 0.0
      %1306 = vmatprep.subr.mxu0 0.0
      %1307 = vmatpush1.msra.mxu0 0.0
      %1308 = vmatprep.subr.mxu0 0.0
      %1309 = vmatpush1.msra.mxu0 0.0
      %1310 = vmatprep.subr.mxu0 0.0
      %1311 = vmatpush1.msra.mxu0 0.0
      %1312 = vmatprep.subr.mxu0 0.0
      %1313 = vmatpush1.msra.mxu0 0.0
      %1314 = vmatprep.subr.mxu0 0.0
      %1315 = vmatpush1.msra.mxu0 0.0
      %1316 = vmatprep.subr.mxu0 0.0
      %1317 = vmatpush1.msra.mxu0 0.0
      %1318 = vmatprep.subr.mxu0 0.0
      %1319 = vmatpush1.msra.mxu0 0.0
      %1320 = vmatprep.subr.mxu0 0.0
      %1321 = vmatpush1.msra.mxu0 0.0
      %1322 = vmatprep.subr.mxu0 0.0
      %1323 = vmatpush1.msra.mxu0 0.0
      %1324 = vmatprep.subr.mxu0 0.0
      %1325 = vmatpush1.msra.mxu0 0.0
      %1326 = vmatprep.subr.mxu0 0.0
      %1327 = vmatpush1.msra.mxu0 0.0
      %1328 = vmatprep.subr.mxu0 0.0
      %1329 = vmatpush1.msra.mxu0 0.0
      %1330 = vmatprep.subr.mxu0 0.0
      %1331 = vmatpush1.msra.mxu0 0.0
      %1332 = vmatprep.subr.mxu0 0.0
      %1333 = vmatpush1.msra.mxu0 0.0
      %1334 = vmatprep.subr.mxu0 0.0
      %1335 = vmatpush1.msra.mxu0 0.0
      %1336 = vmatprep.subr.mxu0 0.0
      %1337 = vmatpush1.msra.mxu0 0.0
      %1338 = vmatprep.subr.mxu0 0.0
      %1339 = vmatpush1.msra.mxu0 0.0
      %1340 = vmatprep.subr.mxu0 0.0
      %1341 = vmatpush1.msra.mxu0 0.0
      %1342 = vmatprep.subr.mxu0 0.0
      %1343 = vmatpush1.msra.mxu0 0.0
      %1344 = vmatprep.subr.mxu0 0.0
      %1345 = vmatpush1.msra.mxu0 0.0
      %1346 = vmatprep.mubr.f32.mxu0 0.0
      %1347 = vmatmul.mubr.f32.gmra.mrb[0].mxu0 %v1235
      %v1348 = vpop.f32.mrb[0].mxu0
      %v1349 = vadd.f32 0.0, %v1348
      %v1350 = vpop.f32.mrb[0].mxu0
      %v1351 = vadd.f32 0.0, %v1350
      %1352 = vmatprep.mubr.f32.mxu0 0.0
      %1353 = vmatmul.mubr.f32.gmra.mrb[0].mxu0 %v1238
      %v1354 = vpop.f32.mrb[0].mxu0
      %v1355 = vadd.f32 0.0, %v1354
      %v1356 = vpop.f32.mrb[0].mxu0
      %v1357 = vadd.f32 0.0, %v1356
      %1358 = vmatprep.mubr.f32.mxu0 0.0
      %1359 = vmatmul.mubr.f32.gmra.mrb[0].mxu0 %v1241
      %v1360 = vpop.f32.mrb[0].mxu0
      %v1361 = vadd.f32 0.0, %v1360
      %v1362 = vpop.f32.mrb[0].mxu0
      %v1363 = vadd.f32 0.0, %v1362
      %1364 = vmatprep.mubr.f32.mxu0 0.0
      %1365 = vmatmul.mubr.f32.gmra.mrb[0].mxu0 %v1244
      %v1366 = vpop.f32.mrb[0].mxu0
      %v1367 = vadd.f32 0.0, %v1366
      %v1368 = vpop.f32.mrb[0].mxu0
      %v1369 = vadd.f32 0.0, %v1368
      %1370 = vmatprep.mubr.f32.mxu0 0.0
      %1371 = vmatmul.mubr.f32.gmra.mrb[0].mxu0 %v1247
      %v1372 = vpop.f32.mrb[0].mxu0
      %v1373 = vadd.f32 0.0, %v1372
      %v1374 = vpop.f32.mrb[0].mxu0
      %v1375 = vadd.f32 0.0, %v1374
      %1376 = vmatprep.mubr.f32.mxu0 0.0
      %1377 = vmatmul.mubr.f32.gmra.mrb[0].mxu0 %v1250
      %v1378 = vpop.f32.mrb[0].mxu0
      %v1379 = vadd.f32 0.0, %v1378
      %v1380 = vpop.f32.mrb[0].mxu0
      %v1381 = vadd.f32 0.0, %v1380
      %1382 = vmatprep.mubr.f32.mxu0 0.0
      %1383 = vmatmul.mubr.f32.gmra.mrb[0].mxu0 %v1253
      %v1384 = vpop.f32.mrb[0].mxu0
      %v1385 = vadd.f32 0.0, %v1384
      %v1386 = vpop.f32.mrb[0].mxu0
      %v1387 = vadd.f32 0.0, %v1386
      %1388 = vmatprep.mubr.f32.mxu0 0.0
      %1389 = vmatmul.mubr.f32.gmra.mrb[0].mxu0 %v1256
      %v1390 = vpop.f32.mrb[0].mxu0
      %v1391 = vadd.f32 0.0, %v1390
      %v1392 = vpop.f32.mrb[0].mxu0
      %v1393 = vadd.f32 0.0, %v1392
      %1394 = vmatprep.mubr.f32.mxu0 0.0
      %1395 = vmatmul.mubr.f32.gmra.mrb[0].mxu0 %v1259
      %v1396 = vpop.f32.mrb[0].mxu0
      %v1397 = vadd.f32 0.0, %v1396
      %v1398 = vpop.f32.mrb[0].mxu0
      %v1399 = vadd.f32 0.0, %v1398
      %1400 = vmatprep.mubr.f32.mxu0 0.0
      %1401 = vmatmul.mubr.f32.gmra.mrb[0].mxu0 %v1262
      %v1402 = vpop.f32.mrb[0].mxu0
      %v1403 = vadd.f32 0.0, %v1402
      %v1404 = vpop.f32.mrb[0].mxu0
      %v1405 = vadd.f32 0.0, %v1404
      %1406 = vmatprep.mubr.f32.mxu0 0.0
      %1407 = vmatmul.mubr.f32.gmra.mrb[0].mxu0 %v1265
      %v1408 = vpop.f32.mrb[0].mxu0
      %v1409 = vadd.f32 0.0, %v1408
      %v1410 = vpop.f32.mrb[0].mxu0
      %v1411 = vadd.f32 0.0, %v1410
      %1412 = vmatprep.mubr.f32.mxu0 0.0
      %1413 = vmatmul.mubr.f32.gmra.mrb[0].mxu0 %v1268
      %v1414 = vpop.f32.mrb[0].mxu0
      %v1415 = vadd.f32 0.0, %v1414
      %v1416 = vpop.f32.mrb[0].mxu0
      %v1417 = vadd.f32 0.0, %v1416
      %1418 = vmatprep.mubr.f32.mxu0 0.0
      %1419 = vmatmul.mubr.f32.gmra.mrb[0].mxu0 %v1271
      %v1420 = vpop.f32.mrb[0].mxu0
      %v1421 = vadd.f32 0.0, %v1420
      %v1422 = vpop.f32.mrb[0].mxu0
      %v1423 = vadd.f32 0.0, %v1422
      %1424 = vmatprep.mubr.f32.mxu0 0.0
      %1425 = vmatmul.mubr.f32.gmra.mrb[0].mxu0 %v1274
      %v1426 = vpop.f32.mrb[0].mxu0
      %v1427 = vadd.f32 0.0, %v1426
      %v1428 = vpop.f32.mrb[0].mxu0
      %v1429 = vadd.f32 0.0, %v1428
      %1430 = vmatprep.mubr.f32.mxu0 0.0
      %1431 = vmatmul.mubr.f32.gmra.mrb[0].mxu0 %v1277
      %v1432 = vpop.f32.mrb[0].mxu0
      %v1433 = vadd.f32 0.0, %v1432
      %v1434 = vpop.f32.mrb[0].mxu0
      %v1435 = vadd.f32 0.0, %v1434
      %1436 = vmatprep.mubr.f32.mxu0 0.0
      %1437 = vmatmul.mubr.f32.gmra.mrb[0].mxu0 %v1280
      %v1438 = vpop.f32.mrb[0].mxu0
      %v1439 = vadd.f32 0.0, %v1438
      %v1440 = vpop.f32.mrb[0].mxu0
      %v1441 = vadd.f32 0.0, %v1440
      %1442 = vdwg.mxu0
      %1443 = vmatprep.subr.mxu0 0.0
      %1444 = vmatpush1.msra.mxu0 %v1218
      %1445 = vmatprep.subr.mxu0 0.0
      %1446 = vmatpush1.msra.mxu0 %v1221
      %1447 = vmatprep.subr.mxu0 0.0
      %1448 = vmatpush1.msra.mxu0 %v1224
      %1449 = vmatprep.subr.mxu0 0.0
      %1450 = vmatpush1.msra.mxu0 0.0
      %1451 = vmatprep.subr.mxu0 0.0
      %1452 = vmatpush1.msra.mxu0 0.0
      %1453 = vmatprep.subr.mxu0 0.0
      %1454 = vmatpush1.msra.mxu0 0.0
      %1455 = vmatprep.subr.mxu0 0.0
      %1456 = vmatpush1.msra.mxu0 0.0
      %1457 = vmatprep.subr.mxu0 0.0
      %1458 = vmatpush1.msra.mxu0 0.0
      %1459 = vmatprep.subr.mxu0 0.0
      %1460 = vmatpush1.msra.mxu0 0.0
      %1461 = vmatprep.subr.mxu0 0.0
      %1462 = vmatpush1.msra.mxu0 0.0
      %1463 = vmatprep.subr.mxu0 0.0
      %1464 = vmatpush1.msra.mxu0 0.0
      %1465 = vmatprep.subr.mxu0 0.0
      %1466 = vmatpush1.msra.mxu0 0.0
      %1467 = vmatprep.subr.mxu0 0.0
      %1468 = vmatpush1.msra.mxu0 0.0
      %1469 = vmatprep.subr.mxu0 0.0
      %1470 = vmatpush1.msra.mxu0 0.0
      %1471 = vmatprep.subr.mxu0 0.0
      %1472 = vmatpush1.msra.mxu0 0.0
      %1473 = vmatprep.subr.mxu0 0.0
      %1474 = vmatpush1.msra.mxu0 0.0
      %1475 = vmatprep.subr.mxu0 0.0
      %1476 = vmatpush1.msra.mxu0 0.0
      %1477 = vmatprep.subr.mxu0 0.0
      %1478 = vmatpush1.msra.mxu0 0.0
      %1479 = vmatprep.subr.mxu0 0.0
      %1480 = vmatpush1.msra.mxu0 0.0
      %1481 = vmatprep.subr.mxu0 0.0
      %1482 = vmatpush1.msra.mxu0 0.0
      %1483 = vmatprep.subr.mxu0 0.0
      %1484 = vmatpush1.msra.mxu0 0.0
      %1485 = vmatprep.subr.mxu0 0.0
      %1486 = vmatpush1.msra.mxu0 0.0
      %1487 = vmatprep.subr.mxu0 0.0
      %1488 = vmatpush1.msra.mxu0 0.0
      %1489 = vmatprep.subr.mxu0 0.0
      %1490 = vmatpush1.msra.mxu0 0.0
      %1491 = vmatprep.subr.mxu0 0.0
      %1492 = vmatpush1.msra.mxu0 0.0
      %1493 = vmatprep.subr.mxu0 0.0
      %1494 = vmatpush1.msra.mxu0 0.0
      %1495 = vmatprep.subr.mxu0 0.0
      %1496 = vmatpush1.msra.mxu0 0.0
      %1497 = vmatprep.subr.mxu0 0.0
      %1498 = vmatpush1.msra.mxu0 0.0
      %1499 = vmatprep.subr.mxu0 0.0
      %1500 = vmatpush1.msra.mxu0 0.0
      %1501 = vmatprep.subr.mxu0 0.0
      %1502 = vmatpush1.msra.mxu0 0.0
      %1503 = vmatprep.subr.mxu0 0.0
      %1504 = vmatpush1.msra.mxu0 0.0
      %1505 = vmatprep.subr.mxu0 0.0
      %1506 = vmatpush1.msra.mxu0 0.0
      %1507 = vmatprep.mubr.f32.mxu0 0.0
      %1508 = vmatmul.mubr.f32.gmra.mrb[0].mxu0 %v1235
      %v1509 = vpop.f32.mrb[0].mxu0
      %v1510 = vadd.f32 0.0, %v1509
      %v1511 = vpop.f32.mrb[0].mxu0
      %1512 = vmatprep.mubr.f32.mxu0 0.0
      %1513 = vmatmul.mubr.f32.gmra.mrb[0].mxu0 %v1238
      %v1514 = vpop.f32.mrb[0].mxu0
      %v1515 = vadd.f32 0.0, %v1514
      %v1516 = vpop.f32.mrb[0].mxu0
      %1517 = vmatprep.mubr.f32.mxu0 0.0
      %1518 = vmatmul.mubr.f32.gmra.mrb[0].mxu0 %v1241
      %v1519 = vpop.f32.mrb[0].mxu0
      %v1520 = vadd.f32 0.0, %v1519
      %v1521 = vpop.f32.mrb[0].mxu0
      %1522 = vmatprep.mubr.f32.mxu0 0.0
      %1523 = vmatmul.mubr.f32.gmra.mrb[0].mxu0 %v1244
      %v1524 = vpop.f32.mrb[0].mxu0
      %v1525 = vadd.f32 0.0, %v1524
      %v1526 = vpop.f32.mrb[0].mxu0
      %1527 = vmatprep.mubr.f32.mxu0 0.0
      %1528 = vmatmul.mubr.f32.gmra.mrb[0].mxu0 %v1247
      %v1529 = vpop.f32.mrb[0].mxu0
      %v1530 = vadd.f32 0.0, %v1529
      %v1531 = vpop.f32.mrb[0].mxu0
      %1532 = vmatprep.mubr.f32.mxu0 0.0
      %1533 = vmatmul.mubr.f32.gmra.mrb[0].mxu0 %v1250
      %v1534 = vpop.f32.mrb[0].mxu0
      %v1535 = vadd.f32 0.0, %v1534
      %v1536 = vpop.f32.mrb[0].mxu0
      %1537 = vmatprep.mubr.f32.mxu0 0.0
      %1538 = vmatmul.mubr.f32.gmra.mrb[0].mxu0 %v1253
      %v1539 = vpop.f32.mrb[0].mxu0
      %v1540 = vadd.f32 0.0, %v1539
      %v1541 = vpop.f32.mrb[0].mxu0
      %1542 = vmatprep.mubr.f32.mxu0 0.0
      %1543 = vmatmul.mubr.f32.gmra.mrb[0].mxu0 %v1256
      %v1544 = vpop.f32.mrb[0].mxu0
      %v1545 = vadd.f32 0.0, %v1544
      %v1546 = vpop.f32.mrb[0].mxu0
      %1547 = vmatprep.mubr.f32.mxu0 0.0
      %1548 = vmatmul.mubr.f32.gmra.mrb[0].mxu0 %v1259
      %v1549 = vpop.f32.mrb[0].mxu0
      %v1550 = vadd.f32 0.0, %v1549
      %v1551 = vpop.f32.mrb[0].mxu0
      %1552 = vmatprep.mubr.f32.mxu0 0.0
      %1553 = vmatmul.mubr.f32.gmra.mrb[0].mxu0 %v1262
      %v1554 = vpop.f32.mrb[0].mxu0
      %v1555 = vadd.f32 0.0, %v1554
      %v1556 = vpop.f32.mrb[0].mxu0
      %1557 = vmatprep.mubr.f32.mxu0 0.0
      %1558 = vmatmul.mubr.f32.gmra.mrb[0].mxu0 %v1265
      %v1559 = vpop.f32.mrb[0].mxu0
      %v1560 = vadd.f32 0.0, %v1559
      %v1561 = vpop.f32.mrb[0].mxu0
      %1562 = vmatprep.mubr.f32.mxu0 0.0
      %1563 = vmatmul.mubr.f32.gmra.mrb[0].mxu0 %v1268
      %v1564 = vpop.f32.mrb[0].mxu0
      %v1565 = vadd.f32 0.0, %v1564
      %v1566 = vpop.f32.mrb[0].mxu0
      %1567 = vmatprep.mubr.f32.mxu0 0.0
      %1568 = vmatmul.mubr.f32.gmra.mrb[0].mxu0 %v1271
      %v1569 = vpop.f32.mrb[0].mxu0
      %v1570 = vadd.f32 0.0, %v1569
      %v1571 = vpop.f32.mrb[0].mxu0
      %1572 = vmatprep.mubr.f32.mxu0 0.0
      %1573 = vmatmul.mubr.f32.gmra.mrb[0].mxu0 %v1274
      %v1574 = vpop.f32.mrb[0].mxu0
      %v1575 = vadd.f32 0.0, %v1574
      %v1576 = vpop.f32.mrb[0].mxu0
      %1577 = vmatprep.mubr.f32.mxu0 0.0
      %1578 = vmatmul.mubr.f32.gmra.mrb[0].mxu0 %v1277
      %v1579 = vpop.f32.mrb[0].mxu0
      %v1580 = vadd.f32 0.0, %v1579
      %v1581 = vpop.f32.mrb[0].mxu0
      %1582 = vmatprep.mubr.f32.mxu0 0.0
      %1583 = vmatmul.mubr.f32.gmra.mrb[0].mxu0 %v1280
      %v1584 = vpop.f32.mrb[0].mxu0
      %v1585 = vadd.f32 0.0, %v1584
      %v1586 = vpop.f32.mrb[0].mxu0
      %1587 = vdwg.mxu0
      %v1588 = vadd.f32 %v932, %v1349
      %v1589 = vadd.f32 %v934, %v1351
      %v1590 = vadd.f32 %v1093, %v1510
      %v1591 = vadd.f32 %v938, %v1355
      %v1592 = vadd.f32 %v940, %v1357
      %v1593 = vadd.f32 %v1098, %v1515
      %v1594 = vadd.f32 %v944, %v1361
      %v1595 = vadd.f32 %v946, %v1363
      %v1596 = vadd.f32 %v1103, %v1520
      %v1597 = vadd.f32 %v950, %v1367
      %v1598 = vadd.f32 %v952, %v1369
      %v1599 = vadd.f32 %v1108, %v1525
      %v1600 = vadd.f32 %v956, %v1373
      %v1601 = vadd.f32 %v958, %v1375
      %v1602 = vadd.f32 %v1113, %v1530
      %v1603 = vadd.f32 %v962, %v1379
      %v1604 = vadd.f32 %v964, %v1381
      %v1605 = vadd.f32 %v1118, %v1535
      %v1606 = vadd.f32 %v968, %v1385
      %v1607 = vadd.f32 %v970, %v1387
      %v1608 = vadd.f32 %v1123, %v1540
      %v1609 = vadd.f32 %v974, %v1391
      %v1610 = vadd.f32 %v976, %v1393
      %v1611 = vadd.f32 %v1128, %v1545
      %v1612 = vadd.f32 %v980, %v1397
      %v1613 = vadd.f32 %v982, %v1399
      %v1614 = vadd.f32 %v1133, %v1550
      %v1615 = vadd.f32 %v986, %v1403
      %v1616 = vadd.f32 %v988, %v1405
      %v1617 = vadd.f32 %v1138, %v1555
      %v1618 = vadd.f32 %v992, %v1409
      %v1619 = vadd.f32 %v994, %v1411
      %v1620 = vadd.f32 %v1143, %v1560
      %v1621 = vadd.f32 %v998, %v1415
      %v1622 = vadd.f32 %v1000, %v1417
      %v1623 = vadd.f32 %v1148, %v1565
      %v1624 = vadd.f32 %v1004, %v1421
      %v1625 = vadd.f32 %v1006, %v1423
      %v1626 = vadd.f32 %v1153, %v1570
      %v1627 = vadd.f32 %v1010, %v1427
      %v1628 = vadd.f32 %v1012, %v1429
      %v1629 = vadd.f32 %v1158, %v1575
      %v1630 = vadd.f32 %v1016, %v1433
      %v1631 = vadd.f32 %v1018, %v1435
      %v1632 = vadd.f32 %v1163, %v1580
      %v1633 = vadd.f32 %v1022, %v1439
      %v1634 = vadd.f32 %v1024, %v1441
      %v1635 = vadd.f32 %v1168, %v1585
      %v1636 = vld [vmem:[%s3] sm:$0xff]
      %v1637 = vld [vmem:[%s3 + $0x8] sm:$0xff]
      %v1638 = vld [vmem:[%s3 + $0x10] sm:$0xff]
      %v1639 = vld [vmem:[%s3 + $0x18] sm:$0xff]
      %v1640 = vld [vmem:[%s3 + $0x20] sm:$0xff]
      %v1641 = vld [vmem:[%s3 + $0x28] sm:$0xff]
      %v1642 = vld [vmem:[%s3 + $0x30] sm:$0xff]
      %v1643 = vld [vmem:[%s3 + $0x38] sm:$0xff]
      %v1644 = vld [vmem:[%s3 + $0x40] sm:$0xff]
      %v1645 = vld [vmem:[%s3 + $0x48] sm:$0xff]
      %v1646 = vld [vmem:[%s3 + $0x50] sm:$0xff]
      %v1647 = vld [vmem:[%s3 + $0x58] sm:$0xff]
      %v1648 = vld [vmem:[%s3 + $0x60] sm:$0xff]
      %v1649 = vld [vmem:[%s3 + $0x68] sm:$0xff]
      %v1650 = vld [vmem:[%s3 + $0x70] sm:$0xff]
      %v1651 = vld [vmem:[%s3 + $0x78] sm:$0xff]
      %1653 = vset.pattern.permute.xlu0 0
      %1654 = vperm.xlu0 %1653, %v1636
      %v1655 = vpop.permute.xlu0 %1654
      %1658 = vset.pattern.permute.xlu0 0
      %1659 = vperm.xlu0 %1658, %v1637
      %v1660 = vpop.permute.xlu0 %1659
      %1663 = vset.pattern.permute.xlu0 0
      %1664 = vperm.xlu0 %1663, %v1638
      %v1665 = vpop.permute.xlu0 %1664
      %1668 = vset.pattern.permute.xlu0 0
      %1669 = vperm.xlu0 %1668, %v1639
      %v1670 = vpop.permute.xlu0 %1669
      %1673 = vset.pattern.permute.xlu0 0
      %1674 = vperm.xlu0 %1673, %v1640
      %v1675 = vpop.permute.xlu0 %1674
      %1678 = vset.pattern.permute.xlu0 0
      %1679 = vperm.xlu0 %1678, %v1641
      %v1680 = vpop.permute.xlu0 %1679
      %1683 = vset.pattern.permute.xlu0 0
      %1684 = vperm.xlu0 %1683, %v1642
      %v1685 = vpop.permute.xlu0 %1684
      %1688 = vset.pattern.permute.xlu0 0
      %1689 = vperm.xlu0 %1688, %v1643
      %v1690 = vpop.permute.xlu0 %1689
      %1693 = vset.pattern.permute.xlu0 0
      %1694 = vperm.xlu0 %1693, %v1644
      %v1695 = vpop.permute.xlu0 %1694
      %1698 = vset.pattern.permute.xlu0 0
      %1699 = vperm.xlu0 %1698, %v1645
      %v1700 = vpop.permute.xlu0 %1699
      %1703 = vset.pattern.permute.xlu0 0
      %1704 = vperm.xlu0 %1703, %v1646
      %v1705 = vpop.permute.xlu0 %1704
      %1708 = vset.pattern.permute.xlu0 0
      %1709 = vperm.xlu0 %1708, %v1647
      %v1710 = vpop.permute.xlu0 %1709
      %1713 = vset.pattern.permute.xlu0 0
      %1714 = vperm.xlu0 %1713, %v1648
      %v1715 = vpop.permute.xlu0 %1714
      %1718 = vset.pattern.permute.xlu0 0
      %1719 = vperm.xlu0 %1718, %v1649
      %v1720 = vpop.permute.xlu0 %1719
      %1723 = vset.pattern.permute.xlu0 0
      %1724 = vperm.xlu0 %1723, %v1650
      %v1725 = vpop.permute.xlu0 %1724
      %1728 = vset.pattern.permute.xlu0 0
      %1729 = vperm.xlu0 %1728, %v1651
      %v1730 = vpop.permute.xlu0 %1729
      %v1732 = vadd.f32 %v1588, %v1655
      %v1733 = vadd.f32 %v1589, %v1655
      %v1734 = vadd.f32 %v1590, %v1655
      %v1735 = vadd.f32 %v1591, %v1660
      %v1736 = vadd.f32 %v1592, %v1660
      %v1737 = vadd.f32 %v1593, %v1660
      %v1738 = vadd.f32 %v1594, %v1665
      %v1739 = vadd.f32 %v1595, %v1665
      %v1740 = vadd.f32 %v1596, %v1665
      %v1741 = vadd.f32 %v1597, %v1670
      %v1742 = vadd.f32 %v1598, %v1670
      %v1743 = vadd.f32 %v1599, %v1670
      %v1744 = vadd.f32 %v1600, %v1675
      %v1745 = vadd.f32 %v1601, %v1675
      %v1746 = vadd.f32 %v1602, %v1675
      %v1747 = vadd.f32 %v1603, %v1680
      %v1748 = vadd.f32 %v1604, %v1680
      %v1749 = vadd.f32 %v1605, %v1680
      %v1750 = vadd.f32 %v1606, %v1685
      %v1751 = vadd.f32 %v1607, %v1685
      %v1752 = vadd.f32 %v1608, %v1685
      %v1753 = vadd.f32 %v1609, %v1690
      %v1754 = vadd.f32 %v1610, %v1690
      %v1755 = vadd.f32 %v1611, %v1690
      %v1756 = vadd.f32 %v1612, %v1695
      %v1757 = vadd.f32 %v1613, %v1695
      %v1758 = vadd.f32 %v1614, %v1695
      %v1759 = vadd.f32 %v1615, %v1700
      %v1760 = vadd.f32 %v1616, %v1700
      %v1761 = vadd.f32 %v1617, %v1700
      %v1762 = vadd.f32 %v1618, %v1705
      %v1763 = vadd.f32 %v1619, %v1705
      %v1764 = vadd.f32 %v1620, %v1705
      %v1765 = vadd.f32 %v1621, %v1710
      %v1766 = vadd.f32 %v1622, %v1710
      %v1767 = vadd.f32 %v1623, %v1710
      %v1768 = vadd.f32 %v1624, %v1715
      %v1769 = vadd.f32 %v1625, %v1715
      %v1770 = vadd.f32 %v1626, %v1715
      %v1771 = vadd.f32 %v1627, %v1720
      %v1772 = vadd.f32 %v1628, %v1720
      %v1773 = vadd.f32 %v1629, %v1720
      %v1774 = vadd.f32 %v1630, %v1725
      %v1775 = vadd.f32 %v1631, %v1725
      %v1776 = vadd.f32 %v1632, %v1725
      %v1777 = vadd.f32 %v1633, %v1730
      %v1778 = vadd.f32 %v1634, %v1730
      %v1779 = vadd.f32 %v1635, %v1730
      %vm1780 = vcmp.ge.f32.partialorder %v1732, 0.0
      %vm1781 = vcmp.ge.f32.partialorder %v1733, 0.0
      %vm1782 = vcmp.ge.f32.partialorder %v1734, 0.0
      %vm1783 = vcmp.ge.f32.partialorder %v1735, 0.0
      %vm1784 = vcmp.ge.f32.partialorder %v1736, 0.0
      %vm1785 = vcmp.ge.f32.partialorder %v1737, 0.0
      %vm1786 = vcmp.ge.f32.partialorder %v1738, 0.0
      %vm1787 = vcmp.ge.f32.partialorder %v1739, 0.0
      %vm1788 = vcmp.ge.f32.partialorder %v1740, 0.0
      %vm1789 = vcmp.ge.f32.partialorder %v1741, 0.0
      %vm1790 = vcmp.ge.f32.partialorder %v1742, 0.0
      %vm1791 = vcmp.ge.f32.partialorder %v1743, 0.0
      %vm1792 = vcmp.ge.f32.partialorder %v1744, 0.0
      %vm1793 = vcmp.ge.f32.partialorder %v1745, 0.0
      %vm1794 = vcmp.ge.f32.partialorder %v1746, 0.0
      %vm1795 = vcmp.ge.f32.partialorder %v1747, 0.0
      %vm1796 = vcmp.ge.f32.partialorder %v1748, 0.0
      %vm1797 = vcmp.ge.f32.partialorder %v1749, 0.0
      %vm1798 = vcmp.ge.f32.partialorder %v1750, 0.0
      %vm1799 = vcmp.ge.f32.partialorder %v1751, 0.0
      %vm1800 = vcmp.ge.f32.partialorder %v1752, 0.0
      %vm1801 = vcmp.ge.f32.partialorder %v1753, 0.0
      %vm1802 = vcmp.ge.f32.partialorder %v1754, 0.0
      %vm1803 = vcmp.ge.f32.partialorder %v1755, 0.0
      %v1804 = vmul.f32 %v1732, 0.01
      %v1805 = vmul.f32 %v1733, 0.01
      %v1806 = vmul.f32 %v1734, 0.01
      %v1807 = vmul.f32 %v1735, 0.01
      %v1808 = vmul.f32 %v1736, 0.01
      %v1809 = vmul.f32 %v1737, 0.01
      %v1810 = vmul.f32 %v1738, 0.01
      %v1811 = vmul.f32 %v1739, 0.01
      %v1812 = vmul.f32 %v1740, 0.01
      %v1813 = vmul.f32 %v1741, 0.01
      %v1814 = vmul.f32 %v1742, 0.01
      %v1815 = vmul.f32 %v1743, 0.01
      %v1816 = vmul.f32 %v1744, 0.01
      %v1817 = vmul.f32 %v1745, 0.01
      %v1818 = vmul.f32 %v1746, 0.01
      %v1819 = vmul.f32 %v1747, 0.01
      %v1820 = vmul.f32 %v1748, 0.01
      %v1821 = vmul.f32 %v1749, 0.01
      %v1822 = vmul.f32 %v1750, 0.01
      %v1823 = vmul.f32 %v1751, 0.01
      %v1824 = vmul.f32 %v1752, 0.01
      %v1825 = vmul.f32 %v1753, 0.01
      %v1826 = vmul.f32 %v1754, 0.01
      %v1827 = vmul.f32 %v1755, 0.01
      %v1828 = vsel %vm1780, %v1732, %v1804
      %v1829 = vsel %vm1781, %v1733, %v1805
      %v1830 = vsel %vm1782, %v1734, %v1806
      %v1831 = vsel %vm1783, %v1735, %v1807
      %v1832 = vsel %vm1784, %v1736, %v1808
      %v1833 = vsel %vm1785, %v1737, %v1809
      %v1834 = vsel %vm1786, %v1738, %v1810
      %v1835 = vsel %vm1787, %v1739, %v1811
      %v1836 = vsel %vm1788, %v1740, %v1812
      %v1837 = vsel %vm1789, %v1741, %v1813
      %v1838 = vsel %vm1790, %v1742, %v1814
      %v1839 = vsel %vm1791, %v1743, %v1815
      %v1840 = vsel %vm1792, %v1744, %v1816
      %v1841 = vsel %vm1793, %v1745, %v1817
      %v1842 = vsel %vm1794, %v1746, %v1818
      %v1843 = vsel %vm1795, %v1747, %v1819
      %v1844 = vsel %vm1796, %v1748, %v1820
      %v1845 = vsel %vm1797, %v1749, %v1821
      %v1846 = vsel %vm1798, %v1750, %v1822
      %v1847 = vsel %vm1799, %v1751, %v1823
      %v1848 = vsel %vm1800, %v1752, %v1824
      %v1849 = vsel %vm1801, %v1753, %v1825
      %v1850 = vsel %vm1802, %v1754, %v1826
      %v1851 = vsel %vm1803, %v1755, %v1827
      %v1852 = vld [vmem:[%s0] sm:$0x7]
      %v1854 = vlaneseq
      %v1855 = vshrl.u32 %v1854, 7
      %v1856 = vsub.s32 0, %v1855
      %v1857 = vrot.slane %v1852, %v1856
      %v1858 = vlaneseq
      %v1859 = vshrl.u32 %v1858, 7
      %v1860 = vsub.s32 1, %v1859
      %v1861 = vrot.slane %v1852, %v1860
      %v1862 = vlaneseq
      %v1863 = vshrl.u32 %v1862, 7
      %v1864 = vsub.s32 2, %v1863
      %v1865 = vrot.slane %v1852, %v1864
      %v1869 = vmul.f32 %v1828, %v1857
      %v1870 = vmul.f32 %v1829, %v1861
      %v1871 = vmul.f32 %v1830, %v1865
      %v1872 = vmul.f32 %v1831, %v1857
      %v1873 = vmul.f32 %v1832, %v1861
      %v1874 = vmul.f32 %v1833, %v1865
      %v1875 = vmul.f32 %v1834, %v1857
      %v1876 = vmul.f32 %v1835, %v1861
      %v1877 = vmul.f32 %v1836, %v1865
      %v1878 = vmul.f32 %v1837, %v1857
      %v1879 = vmul.f32 %v1838, %v1861
      %v1880 = vmul.f32 %v1839, %v1865
      %v1881 = vmul.f32 %v1840, %v1857
      %v1882 = vmul.f32 %v1841, %v1861
      %v1883 = vmul.f32 %v1842, %v1865
      %v1884 = vmul.f32 %v1843, %v1857
      %v1885 = vmul.f32 %v1844, %v1861
      %v1886 = vmul.f32 %v1845, %v1865
      %v1887 = vmul.f32 %v1846, %v1857
      %v1888 = vmul.f32 %v1847, %v1861
      %v1889 = vmul.f32 %v1848, %v1865
      %v1890 = vmul.f32 %v1849, %v1857
      %v1891 = vmul.f32 %v1850, %v1861
      %v1892 = vmul.f32 %v1851, %v1865
      %1893 = vst [vmem:[#allocation2] sm:$0xff] 0.0
      %1894 = vst [vmem:[#allocation2 + $0x28] sm:$0xff] 0.0
      %1895 = vst [vmem:[#allocation2 + $0x50] sm:$0xff] 0.0
      %1896 = vst [vmem:[#allocation2 + $0x78] sm:$0xff] 0.0
      %1897 = vst [vmem:[#allocation2 + $0xa0] sm:$0xff] 0.0
      %1898 = vst [vmem:[#allocation2 + $0xc8] sm:$0xff] 0.0
      %1899 = vst [vmem:[#allocation2 + $0xf0] sm:$0xff] 0.0
      %1900 = vst [vmem:[#allocation2 + $0x118] sm:$0xff] 0.0
      %1901 = vst [vmem:[#allocation2 + $0x8] sm:$0xff] %v1869
      %1902 = vst [vmem:[#allocation2 + $0x10] sm:$0xff] %v1870
      %1903 = vst [vmem:[#allocation2 + $0x18] sm:$0xff] %v1871
      %1904 = vst [vmem:[#allocation2 + $0x30] sm:$0xff] %v1872
      %1905 = vst [vmem:[#allocation2 + $0x38] sm:$0xff] %v1873
      %1906 = vst [vmem:[#allocation2 + $0x40] sm:$0xff] %v1874
      %1907 = vst [vmem:[#allocation2 + $0x58] sm:$0xff] %v1875
      %1908 = vst [vmem:[#allocation2 + $0x60] sm:$0xff] %v1876
      %1909 = vst [vmem:[#allocation2 + $0x68] sm:$0xff] %v1877
      %1910 = vst [vmem:[#allocation2 + $0x80] sm:$0xff] %v1878
      %1911 = vst [vmem:[#allocation2 + $0x88] sm:$0xff] %v1879
      %1912 = vst [vmem:[#allocation2 + $0x90] sm:$0xff] %v1880
      %1913 = vst [vmem:[#allocation2 + $0xa8] sm:$0xff] %v1881
      %1914 = vst [vmem:[#allocation2 + $0xb0] sm:$0xff] %v1882
      %1915 = vst [vmem:[#allocation2 + $0xb8] sm:$0xff] %v1883
      %1916 = vst [vmem:[#allocation2 + $0xd0] sm:$0xff] %v1884
      %1917 = vst [vmem:[#allocation2 + $0xd8] sm:$0xff] %v1885
      %1918 = vst [vmem:[#allocation2 + $0xe0] sm:$0xff] %v1886
      %1919 = vst [vmem:[#allocation2 + $0xf8] sm:$0xff] %v1887
      %1920 = vst [vmem:[#allocation2 + $0x100] sm:$0xff] %v1888
      %1921 = vst [vmem:[#allocation2 + $0x108] sm:$0xff] %v1889
      %1922 = vst [vmem:[#allocation2 + $0x120] sm:$0xff] %v1890
      %1923 = vst [vmem:[#allocation2 + $0x128] sm:$0xff] %v1891
      %1924 = vst [vmem:[#allocation2 + $0x130] sm:$0xff] %v1892
      %1925 = vst [vmem:[#allocation2 + $0x20] sm:$0xff] 0.0
      %1926 = vst [vmem:[#allocation2 + $0x48] sm:$0xff] 0.0
      %1927 = vst [vmem:[#allocation2 + $0x70] sm:$0xff] 0.0
      %1928 = vst [vmem:[#allocation2 + $0x98] sm:$0xff] 0.0
      %1929 = vst [vmem:[#allocation2 + $0xc0] sm:$0xff] 0.0
      %1930 = vst [vmem:[#allocation2 + $0xe8] sm:$0xff] 0.0
      %1931 = vst [vmem:[#allocation2 + $0x110] sm:$0xff] 0.0
      %1932 = vst [vmem:[#allocation2 + $0x138] sm:$0xff] 0.0
      %v1933 = vld [vmem:[%s4] sm:$0xff]
      %v1934 = vld [vmem:[%s4 + $0x8] sm:$0xff]
      %v1935 = vld [vmem:[%s4 + $0x10] sm:$0xff]
      %v1936 = vld [vmem:[%s4 + $0x18] sm:$0xff]
      %v1937 = vld [vmem:[%s4 + $0x20] sm:$0xff]
      %v1938 = vld [vmem:[%s4 + $0x28] sm:$0xff]
      %v1939 = vld [vmem:[%s4 + $0x30] sm:$0xff]
      %v1940 = vld [vmem:[%s4 + $0x38] sm:$0xff]
      %v1941 = vld [vmem:[#allocation2] sm:$0xff]
      %v1942 = vld [vmem:[#allocation2 + $0x8] sm:$0xff]
      %v1943 = vld [vmem:[#allocation2 + $0x10] sm:$0xff]
      %v1944 = vld [vmem:[#allocation2 + $0x18] sm:$0xff]
      %v1945 = vld [vmem:[#allocation2 + $0x28] sm:$0xff]
      %v1946 = vld [vmem:[#allocation2 + $0x30] sm:$0xff]
      %v1947 = vld [vmem:[#allocation2 + $0x38] sm:$0xff]
      %v1948 = vld [vmem:[#allocation2 + $0x40] sm:$0xff]
      %v1949 = vld [vmem:[#allocation2 + $0x50] sm:$0xff]
      %v1950 = vld [vmem:[#allocation2 + $0x58] sm:$0xff]
      %v1951 = vld [vmem:[#allocation2 + $0x60] sm:$0xff]
      %v1952 = vld [vmem:[#allocation2 + $0x68] sm:$0xff]
      %v1953 = vld [vmem:[#allocation2 + $0x78] sm:$0xff]
      %v1954 = vld [vmem:[#allocation2 + $0x80] sm:$0xff]
      %v1955 = vld [vmem:[#allocation2 + $0x88] sm:$0xff]
      %v1956 = vld [vmem:[#allocation2 + $0x90] sm:$0xff]
      %v1957 = vld [vmem:[#allocation2 + $0xa0] sm:$0xff]
      %v1958 = vld [vmem:[#allocation2 + $0xa8] sm:$0xff]
      %v1959 = vld [vmem:[#allocation2 + $0xb0] sm:$0xff]
      %v1960 = vld [vmem:[#allocation2 + $0xb8] sm:$0xff]
      %v1961 = vld [vmem:[#allocation2 + $0xc8] sm:$0xff]
      %v1962 = vld [vmem:[#allocation2 + $0xd0] sm:$0xff]
      %v1963 = vld [vmem:[#allocation2 + $0xd8] sm:$0xff]
      %v1964 = vld [vmem:[#allocation2 + $0xe0] sm:$0xff]
      %v1965 = vld [vmem:[#allocation2 + $0xf0] sm:$0xff]
      %v1966 = vld [vmem:[#allocation2 + $0xf8] sm:$0xff]
      %v1967 = vld [vmem:[#allocation2 + $0x100] sm:$0xff]
      %v1968 = vld [vmem:[#allocation2 + $0x108] sm:$0xff]
      %v1969 = vld [vmem:[#allocation2 + $0x118] sm:$0xff]
      %v1970 = vld [vmem:[#allocation2 + $0x120] sm:$0xff]
      %v1971 = vld [vmem:[#allocation2 + $0x128] sm:$0xff]
      %v1972 = vld [vmem:[#allocation2 + $0x130] sm:$0xff]
      %s1973 = scalar_lea.vmem %s4, 64
      %v1974 = vld [vmem:[%s1973] sm:$0xff]
      %v1975 = vld [vmem:[%s1973 + $0x8] sm:$0xff]
      %v1976 = vld [vmem:[%s1973 + $0x10] sm:$0xff]
      %v1977 = vld [vmem:[%s1973 + $0x18] sm:$0xff]
      %v1978 = vld [vmem:[%s1973 + $0x20] sm:$0xff]
      %v1979 = vld [vmem:[%s1973 + $0x28] sm:$0xff]
      %v1980 = vld [vmem:[%s1973 + $0x30] sm:$0xff]
      %v1981 = vld [vmem:[%s1973 + $0x38] sm:$0xff]
      %2014 = vrot.lane.b32.xlu0 %v1941, 18
      %v2015 = vpop.permute.xlu0 %2014
      %2016 = vrot.lane.b32.xlu0 %v1942, 18
      %v2017 = vpop.permute.xlu0 %2016
      %2018 = vrot.lane.b32.xlu0 %v1943, 18
      %v2019 = vpop.permute.xlu0 %2018
      %2020 = vrot.lane.b32.xlu0 %v1944, 18
      %v2021 = vpop.permute.xlu0 %2020
      %2022 = vrot.lane.b32.xlu0 %v1945, 18
      %v2023 = vpop.permute.xlu0 %2022
      %2024 = vrot.lane.b32.xlu0 %v1946, 18
      %v2025 = vpop.permute.xlu0 %2024
      %2026 = vrot.lane.b32.xlu0 %v1947, 18
      %v2027 = vpop.permute.xlu0 %2026
      %2028 = vrot.lane.b32.xlu0 %v1948, 18
      %v2029 = vpop.permute.xlu0 %2028
      %2030 = vrot.lane.b32.xlu0 %v1949, 18
      %v2031 = vpop.permute.xlu0 %2030
      %2032 = vrot.lane.b32.xlu0 %v1950, 18
      %v2033 = vpop.permute.xlu0 %2032
      %2034 = vrot.lane.b32.xlu0 %v1951, 18
      %v2035 = vpop.permute.xlu0 %2034
      %2036 = vrot.lane.b32.xlu0 %v1952, 18
      %v2037 = vpop.permute.xlu0 %2036
      %2038 = vrot.lane.b32.xlu0 %v1953, 18
      %v2039 = vpop.permute.xlu0 %2038
      %2040 = vrot.lane.b32.xlu0 %v1954, 18
      %v2041 = vpop.permute.xlu0 %2040
      %2042 = vrot.lane.b32.xlu0 %v1955, 18
      %v2043 = vpop.permute.xlu0 %2042
      %2044 = vrot.lane.b32.xlu0 %v1956, 18
      %v2045 = vpop.permute.xlu0 %2044
      %2046 = vrot.lane.b32.xlu0 %v1957, 18
      %v2047 = vpop.permute.xlu0 %2046
      %2048 = vrot.lane.b32.xlu0 %v1958, 18
      %v2049 = vpop.permute.xlu0 %2048
      %2050 = vrot.lane.b32.xlu0 %v1959, 18
      %v2051 = vpop.permute.xlu0 %2050
      %2052 = vrot.lane.b32.xlu0 %v1960, 18
      %v2053 = vpop.permute.xlu0 %2052
      %2054 = vrot.lane.b32.xlu0 %v1961, 18
      %v2055 = vpop.permute.xlu0 %2054
      %2056 = vrot.lane.b32.xlu0 %v1962, 18
      %v2057 = vpop.permute.xlu0 %2056
      %2058 = vrot.lane.b32.xlu0 %v1963, 18
      %v2059 = vpop.permute.xlu0 %2058
      %2060 = vrot.lane.b32.xlu0 %v1964, 18
      %v2061 = vpop.permute.xlu0 %2060
      %2062 = vrot.lane.b32.xlu0 %v1965, 18
      %v2063 = vpop.permute.xlu0 %2062
      %2064 = vrot.lane.b32.xlu0 %v1966, 18
      %v2065 = vpop.permute.xlu0 %2064
      %2066 = vrot.lane.b32.xlu0 %v1967, 18
      %v2067 = vpop.permute.xlu0 %2066
      %2068 = vrot.lane.b32.xlu0 %v1968, 18
      %v2069 = vpop.permute.xlu0 %2068
      %2070 = vrot.lane.b32.xlu0 %v1969, 18
      %v2071 = vpop.permute.xlu0 %2070
      %2072 = vrot.lane.b32.xlu0 %v1970, 18
      %v2073 = vpop.permute.xlu0 %2072
      %2074 = vrot.lane.b32.xlu0 %v1971, 18
      %v2075 = vpop.permute.xlu0 %2074
      %2076 = vrot.lane.b32.xlu0 %v1972, 18
      %v2077 = vpop.permute.xlu0 %2076
      %vm2078 = vcmask 146432
      %v2079 = vsel %vm2078, %v2015, %v2017
      %v2080 = vsel %vm2078, %v2017, %v2019
      %v2081 = vsel %vm2078, %v2019, %v2021
      %v2082 = vsel %vm2078, %v2023, %v2025
      %v2083 = vsel %vm2078, %v2025, %v2027
      %v2084 = vsel %vm2078, %v2027, %v2029
      %v2085 = vsel %vm2078, %v2031, %v2033
      %v2086 = vsel %vm2078, %v2033, %v2035
      %v2087 = vsel %vm2078, %v2035, %v2037
      %v2088 = vsel %vm2078, %v2039, %v2041
      %v2089 = vsel %vm2078, %v2041, %v2043
      %v2090 = vsel %vm2078, %v2043, %v2045
      %v2091 = vsel %vm2078, %v2047, %v2049
      %v2092 = vsel %vm2078, %v2049, %v2051
      %v2093 = vsel %vm2078, %v2051, %v2053
      %v2094 = vsel %vm2078, %v2055, %v2057
      %v2095 = vsel %vm2078, %v2057, %v2059
      %v2096 = vsel %vm2078, %v2059, %v2061
      %v2097 = vsel %vm2078, %v2063, %v2065
      %v2098 = vsel %vm2078, %v2065, %v2067
      %v2099 = vsel %vm2078, %v2067, %v2069
      %v2100 = vsel %vm2078, %v2071, %v2073
      %v2101 = vsel %vm2078, %v2073, %v2075
      %v2102 = vsel %vm2078, %v2075, %v2077
      %vm2127 = vcmask 523264
      %v2129 = vsel %vm2127, %v1974, 0
      %v2132 = vsel %vm2127, %v1975, 0
      %v2135 = vsel %vm2127, %v1976, 0
      %v2138 = vsel %vm2127, %v1977, 0
      %v2141 = vsel %vm2127, %v1978, 0
      %v2144 = vsel %vm2127, %v1979, 0
      %v2147 = vsel %vm2127, %v1980, 0
      %v2150 = vsel %vm2127, %v1981, 0
      %2152 = vmatprep.subr.mxu0 %v2080
      %2153 = vmatpush1.msra.mxu0 %v2079
      %2154 = vmatprep.subr.mxu0 %v2083
      %2155 = vmatpush1.msra.mxu0 %v2082
      %2156 = vmatprep.subr.mxu0 %v2086
      %2157 = vmatpush1.msra.mxu0 %v2085
      %2158 = vmatprep.subr.mxu0 %v2089
      %2159 = vmatpush1.msra.mxu0 %v2088
      %2160 = vmatprep.subr.mxu0 %v2092
      %2161 = vmatpush1.msra.mxu0 %v2091
      %2162 = vmatprep.subr.mxu0 %v2095
      %2163 = vmatpush1.msra.mxu0 %v2094
      %2164 = vmatprep.subr.mxu0 %v2098
      %2165 = vmatpush1.msra.mxu0 %v2097
      %2166 = vmatprep.subr.mxu0 %v2101
      %2167 = vmatpush1.msra.mxu0 %v2100
      %2168 = vmatprep.subr.mxu0 0.0
      %2169 = vmatpush1.msra.mxu0 0.0
      %2170 = vmatprep.subr.mxu0 0.0
      %2171 = vmatpush1.msra.mxu0 0.0
      %2172 = vmatprep.subr.mxu0 0.0
      %2173 = vmatpush1.msra.mxu0 0.0
      %2174 = vmatprep.subr.mxu0 0.0
      %2175 = vmatpush1.msra.mxu0 0.0
      %2176 = vmatprep.subr.mxu0 0.0
      %2177 = vmatpush1.msra.mxu0 0.0
      %2178 = vmatprep.subr.mxu0 0.0
      %2179 = vmatpush1.msra.mxu0 0.0
      %2180 = vmatprep.subr.mxu0 0.0
      %2181 = vmatpush1.msra.mxu0 0.0
      %2182 = vmatprep.subr.mxu0 0.0
      %2183 = vmatpush1.msra.mxu0 0.0
      %2184 = vmatprep.subr.mxu0 0.0
      %2185 = vmatpush1.msra.mxu0 0.0
      %2186 = vmatprep.subr.mxu0 0.0
      %2187 = vmatpush1.msra.mxu0 0.0
      %2188 = vmatprep.subr.mxu0 0.0
      %2189 = vmatpush1.msra.mxu0 0.0
      %2190 = vmatprep.subr.mxu0 0.0
      %2191 = vmatpush1.msra.mxu0 0.0
      %2192 = vmatprep.subr.mxu0 0.0
      %2193 = vmatpush1.msra.mxu0 0.0
      %2194 = vmatprep.subr.mxu0 0.0
      %2195 = vmatpush1.msra.mxu0 0.0
      %2196 = vmatprep.subr.mxu0 0.0
      %2197 = vmatpush1.msra.mxu0 0.0
      %2198 = vmatprep.subr.mxu0 0.0
      %2199 = vmatpush1.msra.mxu0 0.0
      %2200 = vmatprep.subr.mxu0 0.0
      %2201 = vmatpush1.msra.mxu0 0.0
      %2202 = vmatprep.subr.mxu0 0.0
      %2203 = vmatpush1.msra.mxu0 0.0
      %2204 = vmatprep.subr.mxu0 0.0
      %2205 = vmatpush1.msra.mxu0 0.0
      %2206 = vmatprep.subr.mxu0 0.0
      %2207 = vmatpush1.msra.mxu0 0.0
      %2208 = vmatprep.subr.mxu0 0.0
      %2209 = vmatpush1.msra.mxu0 0.0
      %2210 = vmatprep.subr.mxu0 0.0
      %2211 = vmatpush1.msra.mxu0 0.0
      %2212 = vmatprep.subr.mxu0 0.0
      %2213 = vmatpush1.msra.mxu0 0.0
      %2214 = vmatprep.subr.mxu0 0.0
      %2215 = vmatpush1.msra.mxu0 0.0
      %2216 = vmatprep.mubr.f32.mxu0 0.0
      %2217 = vmatmul.mubr.f32.gmra.mrb[0].mxu0 %v2129
      %v2218 = vpop.f32.mrb[0].mxu0
      %v2219 = vadd.f32 0.0, %v2218
      %v2220 = vpop.f32.mrb[0].mxu0
      %v2221 = vadd.f32 0.0, %v2220
      %2222 = vmatprep.mubr.f32.mxu0 0.0
      %2223 = vmatmul.mubr.f32.gmra.mrb[0].mxu0 %v2132
      %v2224 = vpop.f32.mrb[0].mxu0
      %v2225 = vadd.f32 0.0, %v2224
      %v2226 = vpop.f32.mrb[0].mxu0
      %v2227 = vadd.f32 0.0, %v2226
      %2228 = vmatprep.mubr.f32.mxu0 0.0
      %2229 = vmatmul.mubr.f32.gmra.mrb[0].mxu0 %v2135
      %v2230 = vpop.f32.mrb[0].mxu0
      %v2231 = vadd.f32 0.0, %v2230
      %v2232 = vpop.f32.mrb[0].mxu0
      %v2233 = vadd.f32 0.0, %v2232
      %2234 = vmatprep.mubr.f32.mxu0 0.0
      %2235 = vmatmul.mubr.f32.gmra.mrb[0].mxu0 %v2138
      %v2236 = vpop.f32.mrb[0].mxu0
      %v2237 = vadd.f32 0.0, %v2236
      %v2238 = vpop.f32.mrb[0].mxu0
      %v2239 = vadd.f32 0.0, %v2238
      %2240 = vmatprep.mubr.f32.mxu0 0.0
      %2241 = vmatmul.mubr.f32.gmra.mrb[0].mxu0 %v2141
      %v2242 = vpop.f32.mrb[0].mxu0
      %v2243 = vadd.f32 0.0, %v2242
      %v2244 = vpop.f32.mrb[0].mxu0
      %v2245 = vadd.f32 0.0, %v2244
      %2246 = vmatprep.mubr.f32.mxu0 0.0
      %2247 = vmatmul.mubr.f32.gmra.mrb[0].mxu0 %v2144
      %v2248 = vpop.f32.mrb[0].mxu0
      %v2249 = vadd.f32 0.0, %v2248
      %v2250 = vpop.f32.mrb[0].mxu0
      %v2251 = vadd.f32 0.0, %v2250
      %2252 = vmatprep.mubr.f32.mxu0 0.0
      %2253 = vmatmul.mubr.f32.gmra.mrb[0].mxu0 %v2147
      %v2254 = vpop.f32.mrb[0].mxu0
      %v2255 = vadd.f32 0.0, %v2254
      %v2256 = vpop.f32.mrb[0].mxu0
      %v2257 = vadd.f32 0.0, %v2256
      %2258 = vmatprep.mubr.f32.mxu0 0.0
      %2259 = vmatmul.mubr.f32.gmra.mrb[0].mxu0 %v2150
      %v2260 = vpop.f32.mrb[0].mxu0
      %v2261 = vadd.f32 0.0, %v2260
      %v2262 = vpop.f32.mrb[0].mxu0
      %v2263 = vadd.f32 0.0, %v2262
      %2264 = vdwg.mxu0
      %2265 = vmatprep.subr.mxu0 0.0
      %2266 = vmatpush1.msra.mxu0 %v2081
      %2267 = vmatprep.subr.mxu0 0.0
      %2268 = vmatpush1.msra.mxu0 %v2084
      %2269 = vmatprep.subr.mxu0 0.0
      %2270 = vmatpush1.msra.mxu0 %v2087
      %2271 = vmatprep.subr.mxu0 0.0
      %2272 = vmatpush1.msra.mxu0 %v2090
      %2273 = vmatprep.subr.mxu0 0.0
      %2274 = vmatpush1.msra.mxu0 %v2093
      %2275 = vmatprep.subr.mxu0 0.0
      %2276 = vmatpush1.msra.mxu0 %v2096
      %2277 = vmatprep.subr.mxu0 0.0
      %2278 = vmatpush1.msra.mxu0 %v2099
      %2279 = vmatprep.subr.mxu0 0.0
      %2280 = vmatpush1.msra.mxu0 %v2102
      %2281 = vmatprep.subr.mxu0 0.0
      %2282 = vmatpush1.msra.mxu0 0.0
      %2283 = vmatprep.subr.mxu0 0.0
      %2284 = vmatpush1.msra.mxu0 0.0
      %2285 = vmatprep.subr.mxu0 0.0
      %2286 = vmatpush1.msra.mxu0 0.0
      %2287 = vmatprep.subr.mxu0 0.0
      %2288 = vmatpush1.msra.mxu0 0.0
      %2289 = vmatprep.subr.mxu0 0.0
      %2290 = vmatpush1.msra.mxu0 0.0
      %2291 = vmatprep.subr.mxu0 0.0
      %2292 = vmatpush1.msra.mxu0 0.0
      %2293 = vmatprep.subr.mxu0 0.0
      %2294 = vmatpush1.msra.mxu0 0.0
      %2295 = vmatprep.subr.mxu0 0.0
      %2296 = vmatpush1.msra.mxu0 0.0
      %2297 = vmatprep.subr.mxu0 0.0
      %2298 = vmatpush1.msra.mxu0 0.0
      %2299 = vmatprep.subr.mxu0 0.0
      %2300 = vmatpush1.msra.mxu0 0.0
      %2301 = vmatprep.subr.mxu0 0.0
      %2302 = vmatpush1.msra.mxu0 0.0
      %2303 = vmatprep.subr.mxu0 0.0
      %2304 = vmatpush1.msra.mxu0 0.0
      %2305 = vmatprep.subr.mxu0 0.0
      %2306 = vmatpush1.msra.mxu0 0.0
      %2307 = vmatprep.subr.mxu0 0.0
      %2308 = vmatpush1.msra.mxu0 0.0
      %2309 = vmatprep.subr.mxu0 0.0
      %2310 = vmatpush1.msra.mxu0 0.0
      %2311 = vmatprep.subr.mxu0 0.0
      %2312 = vmatpush1.msra.mxu0 0.0
      %2313 = vmatprep.subr.mxu0 0.0
      %2314 = vmatpush1.msra.mxu0 0.0
      %2315 = vmatprep.subr.mxu0 0.0
      %2316 = vmatpush1.msra.mxu0 0.0
      %2317 = vmatprep.subr.mxu0 0.0
      %2318 = vmatpush1.msra.mxu0 0.0
      %2319 = vmatprep.subr.mxu0 0.0
      %2320 = vmatpush1.msra.mxu0 0.0
      %2321 = vmatprep.subr.mxu0 0.0
      %2322 = vmatpush1.msra.mxu0 0.0
      %2323 = vmatprep.subr.mxu0 0.0
      %2324 = vmatpush1.msra.mxu0 0.0
      %2325 = vmatprep.subr.mxu0 0.0
      %2326 = vmatpush1.msra.mxu0 0.0
      %2327 = vmatprep.subr.mxu0 0.0
      %2328 = vmatpush1.msra.mxu0 0.0
      %2329 = vmatprep.mubr.f32.mxu0 0.0
      %2330 = vmatmul.mubr.f32.gmra.mrb[0].mxu0 %v2129
      %v2331 = vpop.f32.mrb[0].mxu0
      %v2332 = vadd.f32 0.0, %v2331
      %v2333 = vpop.f32.mrb[0].mxu0
      %2334 = vmatprep.mubr.f32.mxu0 0.0
      %2335 = vmatmul.mubr.f32.gmra.mrb[0].mxu0 %v2132
      %v2336 = vpop.f32.mrb[0].mxu0
      %v2337 = vadd.f32 0.0, %v2336
      %v2338 = vpop.f32.mrb[0].mxu0
      %2339 = vmatprep.mubr.f32.mxu0 0.0
      %2340 = vmatmul.mubr.f32.gmra.mrb[0].mxu0 %v2135
      %v2341 = vpop.f32.mrb[0].mxu0
      %v2342 = vadd.f32 0.0, %v2341
      %v2343 = vpop.f32.mrb[0].mxu0
      %2344 = vmatprep.mubr.f32.mxu0 0.0
      %2345 = vmatmul.mubr.f32.gmra.mrb[0].mxu0 %v2138
      %v2346 = vpop.f32.mrb[0].mxu0
      %v2347 = vadd.f32 0.0, %v2346
      %v2348 = vpop.f32.mrb[0].mxu0
      %2349 = vmatprep.mubr.f32.mxu0 0.0
      %2350 = vmatmul.mubr.f32.gmra.mrb[0].mxu0 %v2141
      %v2351 = vpop.f32.mrb[0].mxu0
      %v2352 = vadd.f32 0.0, %v2351
      %v2353 = vpop.f32.mrb[0].mxu0
      %2354 = vmatprep.mubr.f32.mxu0 0.0
      %2355 = vmatmul.mubr.f32.gmra.mrb[0].mxu0 %v2144
      %v2356 = vpop.f32.mrb[0].mxu0
      %v2357 = vadd.f32 0.0, %v2356
      %v2358 = vpop.f32.mrb[0].mxu0
      %2359 = vmatprep.mubr.f32.mxu0 0.0
      %2360 = vmatmul.mubr.f32.gmra.mrb[0].mxu0 %v2147
      %v2361 = vpop.f32.mrb[0].mxu0
      %v2362 = vadd.f32 0.0, %v2361
      %v2363 = vpop.f32.mrb[0].mxu0
      %2364 = vmatprep.mubr.f32.mxu0 0.0
      %2365 = vmatmul.mubr.f32.gmra.mrb[0].mxu0 %v2150
      %v2366 = vpop.f32.mrb[0].mxu0
      %v2367 = vadd.f32 0.0, %v2366
      %v2368 = vpop.f32.mrb[0].mxu0
      %2369 = vdwg.mxu0
      %2370 = vrot.lane.b32.xlu0 %v1941, 19
      %v2371 = vpop.permute.xlu0 %2370
      %2372 = vrot.lane.b32.xlu0 %v1942, 19
      %v2373 = vpop.permute.xlu0 %2372
      %2374 = vrot.lane.b32.xlu0 %v1943, 19
      %v2375 = vpop.permute.xlu0 %2374
      %2376 = vrot.lane.b32.xlu0 %v1944, 19
      %v2377 = vpop.permute.xlu0 %2376
      %2378 = vrot.lane.b32.xlu0 %v1945, 19
      %v2379 = vpop.permute.xlu0 %2378
      %2380 = vrot.lane.b32.xlu0 %v1946, 19
      %v2381 = vpop.permute.xlu0 %2380
      %2382 = vrot.lane.b32.xlu0 %v1947, 19
      %v2383 = vpop.permute.xlu0 %2382
      %2384 = vrot.lane.b32.xlu0 %v1948, 19
      %v2385 = vpop.permute.xlu0 %2384
      %2386 = vrot.lane.b32.xlu0 %v1949, 19
      %v2387 = vpop.permute.xlu0 %2386
      %2388 = vrot.lane.b32.xlu0 %v1950, 19
      %v2389 = vpop.permute.xlu0 %2388
      %2390 = vrot.lane.b32.xlu0 %v1951, 19
      %v2391 = vpop.permute.xlu0 %2390
      %2392 = vrot.lane.b32.xlu0 %v1952, 19
      %v2393 = vpop.permute.xlu0 %2392
      %2394 = vrot.lane.b32.xlu0 %v1953, 19
      %v2395 = vpop.permute.xlu0 %2394
      %2396 = vrot.lane.b32.xlu0 %v1954, 19
      %v2397 = vpop.permute.xlu0 %2396
      %2398 = vrot.lane.b32.xlu0 %v1955, 19
      %v2399 = vpop.permute.xlu0 %2398
      %2400 = vrot.lane.b32.xlu0 %v1956, 19
      %v2401 = vpop.permute.xlu0 %2400
      %2402 = vrot.lane.b32.xlu0 %v1957, 19
      %v2403 = vpop.permute.xlu0 %2402
      %2404 = vrot.lane.b32.xlu0 %v1958, 19
      %v2405 = vpop.permute.xlu0 %2404
      %2406 = vrot.lane.b32.xlu0 %v1959, 19
      %v2407 = vpop.permute.xlu0 %2406
      %2408 = vrot.lane.b32.xlu0 %v1960, 19
      %v2409 = vpop.permute.xlu0 %2408
      %2410 = vrot.lane.b32.xlu0 %v1961, 19
      %v2411 = vpop.permute.xlu0 %2410
      %2412 = vrot.lane.b32.xlu0 %v1962, 19
      %v2413 = vpop.permute.xlu0 %2412
      %2414 = vrot.lane.b32.xlu0 %v1963, 19
      %v2415 = vpop.permute.xlu0 %2414
      %2416 = vrot.lane.b32.xlu0 %v1964, 19
      %v2417 = vpop.permute.xlu0 %2416
      %2418 = vrot.lane.b32.xlu0 %v1965, 19
      %v2419 = vpop.permute.xlu0 %2418
      %2420 = vrot.lane.b32.xlu0 %v1966, 19
      %v2421 = vpop.permute.xlu0 %2420
      %2422 = vrot.lane.b32.xlu0 %v1967, 19
      %v2423 = vpop.permute.xlu0 %2422
      %2424 = vrot.lane.b32.xlu0 %v1968, 19
      %v2425 = vpop.permute.xlu0 %2424
      %2426 = vrot.lane.b32.xlu0 %v1969, 19
      %v2427 = vpop.permute.xlu0 %2426
      %2428 = vrot.lane.b32.xlu0 %v1970, 19
      %v2429 = vpop.permute.xlu0 %2428
      %2430 = vrot.lane.b32.xlu0 %v1971, 19
      %v2431 = vpop.permute.xlu0 %2430
      %2432 = vrot.lane.b32.xlu0 %v1972, 19
      %v2433 = vpop.permute.xlu0 %2432
      %v2434 = vsel %vm798, %v2371, %v2373
      %v2435 = vsel %vm798, %v2373, %v2375
      %v2436 = vsel %vm798, %v2375, %v2377
      %v2437 = vsel %vm798, %v2379, %v2381
      %v2438 = vsel %vm798, %v2381, %v2383
      %v2439 = vsel %vm798, %v2383, %v2385
      %v2440 = vsel %vm798, %v2387, %v2389
      %v2441 = vsel %vm798, %v2389, %v2391
      %v2442 = vsel %vm798, %v2391, %v2393
      %v2443 = vsel %vm798, %v2395, %v2397
      %v2444 = vsel %vm798, %v2397, %v2399
      %v2445 = vsel %vm798, %v2399, %v2401
      %v2446 = vsel %vm798, %v2403, %v2405
      %v2447 = vsel %vm798, %v2405, %v2407
      %v2448 = vsel %vm798, %v2407, %v2409
      %v2449 = vsel %vm798, %v2411, %v2413
      %v2450 = vsel %vm798, %v2413, %v2415
      %v2451 = vsel %vm798, %v2415, %v2417
      %v2452 = vsel %vm798, %v2419, %v2421
      %v2453 = vsel %vm798, %v2421, %v2423
      %v2454 = vsel %vm798, %v2423, %v2425
      %v2455 = vsel %vm798, %v2427, %v2429
      %v2456 = vsel %vm798, %v2429, %v2431
      %v2457 = vsel %vm798, %v2431, %v2433
      %v2483 = vsel %vm2127, %v1933, 0
      %v2486 = vsel %vm2127, %v1934, 0
      %v2489 = vsel %vm2127, %v1935, 0
      %v2492 = vsel %vm2127, %v1936, 0
      %v2495 = vsel %vm2127, %v1937, 0
      %v2498 = vsel %vm2127, %v1938, 0
      %v2501 = vsel %vm2127, %v1939, 0
      %v2504 = vsel %vm2127, %v1940, 0
      %2506 = vmatprep.subr.mxu0 %v2435
      %2507 = vmatpush1.msra.mxu0 %v2434
      %2508 = vmatprep.subr.mxu0 %v2438
      %2509 = vmatpush1.msra.mxu0 %v2437
      %2510 = vmatprep.subr.mxu0 %v2441
      %2511 = vmatpush1.msra.mxu0 %v2440
      %2512 = vmatprep.subr.mxu0 %v2444
      %2513 = vmatpush1.msra.mxu0 %v2443
      %2514 = vmatprep.subr.mxu0 %v2447
      %2515 = vmatpush1.msra.mxu0 %v2446
      %2516 = vmatprep.subr.mxu0 %v2450
      %2517 = vmatpush1.msra.mxu0 %v2449
      %2518 = vmatprep.subr.mxu0 %v2453
      %2519 = vmatpush1.msra.mxu0 %v2452
      %2520 = vmatprep.subr.mxu0 %v2456
      %2521 = vmatpush1.msra.mxu0 %v2455
      %2522 = vmatprep.subr.mxu0 0.0
      %2523 = vmatpush1.msra.mxu0 0.0
      %2524 = vmatprep.subr.mxu0 0.0
      %2525 = vmatpush1.msra.mxu0 0.0
      %2526 = vmatprep.subr.mxu0 0.0
      %2527 = vmatpush1.msra.mxu0 0.0
      %2528 = vmatprep.subr.mxu0 0.0
      %2529 = vmatpush1.msra.mxu0 0.0
      %2530 = vmatprep.subr.mxu0 0.0
      %2531 = vmatpush1.msra.mxu0 0.0
      %2532 = vmatprep.subr.mxu0 0.0
      %2533 = vmatpush1.msra.mxu0 0.0
      %2534 = vmatprep.subr.mxu0 0.0
      %2535 = vmatpush1.msra.mxu0 0.0
      %2536 = vmatprep.subr.mxu0 0.0
      %2537 = vmatpush1.msra.mxu0 0.0
      %2538 = vmatprep.subr.mxu0 0.0
      %2539 = vmatpush1.msra.mxu0 0.0
      %2540 = vmatprep.subr.mxu0 0.0
      %2541 = vmatpush1.msra.mxu0 0.0
      %2542 = vmatprep.subr.mxu0 0.0
      %2543 = vmatpush1.msra.mxu0 0.0
      %2544 = vmatprep.subr.mxu0 0.0
      %2545 = vmatpush1.msra.mxu0 0.0
      %2546 = vmatprep.subr.mxu0 0.0
      %2547 = vmatpush1.msra.mxu0 0.0
      %2548 = vmatprep.subr.mxu0 0.0
      %2549 = vmatpush1.msra.mxu0 0.0
      %2550 = vmatprep.subr.mxu0 0.0
      %2551 = vmatpush1.msra.mxu0 0.0
      %2552 = vmatprep.subr.mxu0 0.0
      %2553 = vmatpush1.msra.mxu0 0.0
      %2554 = vmatprep.subr.mxu0 0.0
      %2555 = vmatpush1.msra.mxu0 0.0
      %2556 = vmatprep.subr.mxu0 0.0
      %2557 = vmatpush1.msra.mxu0 0.0
      %2558 = vmatprep.subr.mxu0 0.0
      %2559 = vmatpush1.msra.mxu0 0.0
      %2560 = vmatprep.subr.mxu0 0.0
      %2561 = vmatpush1.msra.mxu0 0.0
      %2562 = vmatprep.subr.mxu0 0.0
      %2563 = vmatpush1.msra.mxu0 0.0
      %2564 = vmatprep.subr.mxu0 0.0
      %2565 = vmatpush1.msra.mxu0 0.0
      %2566 = vmatprep.subr.mxu0 0.0
      %2567 = vmatpush1.msra.mxu0 0.0
      %2568 = vmatprep.subr.mxu0 0.0
      %2569 = vmatpush1.msra.mxu0 0.0
      %2570 = vmatprep.mubr.f32.mxu0 0.0
      %2571 = vmatmul.mubr.f32.gmra.mrb[0].mxu0 %v2483
      %v2572 = vpop.f32.mrb[0].mxu0
      %v2573 = vadd.f32 %v2219, %v2572
      %v2574 = vpop.f32.mrb[0].mxu0
      %v2575 = vadd.f32 %v2221, %v2574
      %2576 = vmatprep.mubr.f32.mxu0 0.0
      %2577 = vmatmul.mubr.f32.gmra.mrb[0].mxu0 %v2486
      %v2578 = vpop.f32.mrb[0].mxu0
      %v2579 = vadd.f32 %v2225, %v2578
      %v2580 = vpop.f32.mrb[0].mxu0
      %v2581 = vadd.f32 %v2227, %v2580
      %2582 = vmatprep.mubr.f32.mxu0 0.0
      %2583 = vmatmul.mubr.f32.gmra.mrb[0].mxu0 %v2489
      %v2584 = vpop.f32.mrb[0].mxu0
      %v2585 = vadd.f32 %v2231, %v2584
      %v2586 = vpop.f32.mrb[0].mxu0
      %v2587 = vadd.f32 %v2233, %v2586
      %2588 = vmatprep.mubr.f32.mxu0 0.0
      %2589 = vmatmul.mubr.f32.gmra.mrb[0].mxu0 %v2492
      %v2590 = vpop.f32.mrb[0].mxu0
      %v2591 = vadd.f32 %v2237, %v2590
      %v2592 = vpop.f32.mrb[0].mxu0
      %v2593 = vadd.f32 %v2239, %v2592
      %2594 = vmatprep.mubr.f32.mxu0 0.0
      %2595 = vmatmul.mubr.f32.gmra.mrb[0].mxu0 %v2495
      %v2596 = vpop.f32.mrb[0].mxu0
      %v2597 = vadd.f32 %v2243, %v2596
      %v2598 = vpop.f32.mrb[0].mxu0
      %v2599 = vadd.f32 %v2245, %v2598
      %2600 = vmatprep.mubr.f32.mxu0 0.0
      %2601 = vmatmul.mubr.f32.gmra.mrb[0].mxu0 %v2498
      %v2602 = vpop.f32.mrb[0].mxu0
      %v2603 = vadd.f32 %v2249, %v2602
      %v2604 = vpop.f32.mrb[0].mxu0
      %v2605 = vadd.f32 %v2251, %v2604
      %2606 = vmatprep.mubr.f32.mxu0 0.0
      %2607 = vmatmul.mubr.f32.gmra.mrb[0].mxu0 %v2501
      %v2608 = vpop.f32.mrb[0].mxu0
      %v2609 = vadd.f32 %v2255, %v2608
      %v2610 = vpop.f32.mrb[0].mxu0
      %v2611 = vadd.f32 %v2257, %v2610
      %2612 = vmatprep.mubr.f32.mxu0 0.0
      %2613 = vmatmul.mubr.f32.gmra.mrb[0].mxu0 %v2504
      %v2614 = vpop.f32.mrb[0].mxu0
      %v2615 = vadd.f32 %v2261, %v2614
      %v2616 = vpop.f32.mrb[0].mxu0
      %v2617 = vadd.f32 %v2263, %v2616
      %2618 = vdwg.mxu0
      %2619 = vmatprep.subr.mxu0 0.0
      %2620 = vmatpush1.msra.mxu0 %v2436
      %2621 = vmatprep.subr.mxu0 0.0
      %2622 = vmatpush1.msra.mxu0 %v2439
      %2623 = vmatprep.subr.mxu0 0.0
      %2624 = vmatpush1.msra.mxu0 %v2442
      %2625 = vmatprep.subr.mxu0 0.0
      %2626 = vmatpush1.msra.mxu0 %v2445
      %2627 = vmatprep.subr.mxu0 0.0
      %2628 = vmatpush1.msra.mxu0 %v2448
      %2629 = vmatprep.subr.mxu0 0.0
      %2630 = vmatpush1.msra.mxu0 %v2451
      %2631 = vmatprep.subr.mxu0 0.0
      %2632 = vmatpush1.msra.mxu0 %v2454
      %2633 = vmatprep.subr.mxu0 0.0
      %2634 = vmatpush1.msra.mxu0 %v2457
      %2635 = vmatprep.subr.mxu0 0.0
      %2636 = vmatpush1.msra.mxu0 0.0
      %2637 = vmatprep.subr.mxu0 0.0
      %2638 = vmatpush1.msra.mxu0 0.0
      %2639 = vmatprep.subr.mxu0 0.0
      %2640 = vmatpush1.msra.mxu0 0.0
      %2641 = vmatprep.subr.mxu0 0.0
      %2642 = vmatpush1.msra.mxu0 0.0
      %2643 = vmatprep.subr.mxu0 0.0
      %2644 = vmatpush1.msra.mxu0 0.0
      %2645 = vmatprep.subr.mxu0 0.0
      %2646 = vmatpush1.msra.mxu0 0.0
      %2647 = vmatprep.subr.mxu0 0.0
      %2648 = vmatpush1.msra.mxu0 0.0
      %2649 = vmatprep.subr.mxu0 0.0
      %2650 = vmatpush1.msra.mxu0 0.0
      %2651 = vmatprep.subr.mxu0 0.0
      %2652 = vmatpush1.msra.mxu0 0.0
      %2653 = vmatprep.subr.mxu0 0.0
      %2654 = vmatpush1.msra.mxu0 0.0
      %2655 = vmatprep.subr.mxu0 0.0
      %2656 = vmatpush1.msra.mxu0 0.0
      %2657 = vmatprep.subr.mxu0 0.0
      %2658 = vmatpush1.msra.mxu0 0.0
      %2659 = vmatprep.subr.mxu0 0.0
      %2660 = vmatpush1.msra.mxu0 0.0
      %2661 = vmatprep.subr.mxu0 0.0
      %2662 = vmatpush1.msra.mxu0 0.0
      %2663 = vmatprep.subr.mxu0 0.0
      %2664 = vmatpush1.msra.mxu0 0.0
      %2665 = vmatprep.subr.mxu0 0.0
      %2666 = vmatpush1.msra.mxu0 0.0
      %2667 = vmatprep.subr.mxu0 0.0
      %2668 = vmatpush1.msra.mxu0 0.0
      %2669 = vmatprep.subr.mxu0 0.0
      %2670 = vmatpush1.msra.mxu0 0.0
      %2671 = vmatprep.subr.mxu0 0.0
      %2672 = vmatpush1.msra.mxu0 0.0
      %2673 = vmatprep.subr.mxu0 0.0
      %2674 = vmatpush1.msra.mxu0 0.0
      %2675 = vmatprep.subr.mxu0 0.0
      %2676 = vmatpush1.msra.mxu0 0.0
      %2677 = vmatprep.subr.mxu0 0.0
      %2678 = vmatpush1.msra.mxu0 0.0
      %2679 = vmatprep.subr.mxu0 0.0
      %2680 = vmatpush1.msra.mxu0 0.0
      %2681 = vmatprep.subr.mxu0 0.0
      %2682 = vmatpush1.msra.mxu0 0.0
      %2683 = vmatprep.mubr.f32.mxu0 0.0
      %2684 = vmatmul.mubr.f32.gmra.mrb[0].mxu0 %v2483
      %v2685 = vpop.f32.mrb[0].mxu0
      %v2686 = vadd.f32 %v2332, %v2685
      %v2687 = vpop.f32.mrb[0].mxu0
      %2688 = vmatprep.mubr.f32.mxu0 0.0
      %2689 = vmatmul.mubr.f32.gmra.mrb[0].mxu0 %v2486
      %v2690 = vpop.f32.mrb[0].mxu0
      %v2691 = vadd.f32 %v2337, %v2690
      %v2692 = vpop.f32.mrb[0].mxu0
      %2693 = vmatprep.mubr.f32.mxu0 0.0
      %2694 = vmatmul.mubr.f32.gmra.mrb[0].mxu0 %v2489
      %v2695 = vpop.f32.mrb[0].mxu0
      %v2696 = vadd.f32 %v2342, %v2695
      %v2697 = vpop.f32.mrb[0].mxu0
      %2698 = vmatprep.mubr.f32.mxu0 0.0
      %2699 = vmatmul.mubr.f32.gmra.mrb[0].mxu0 %v2492
      %v2700 = vpop.f32.mrb[0].mxu0
      %v2701 = vadd.f32 %v2347, %v2700
      %v2702 = vpop.f32.mrb[0].mxu0
      %2703 = vmatprep.mubr.f32.mxu0 0.0
      %2704 = vmatmul.mubr.f32.gmra.mrb[0].mxu0 %v2495
      %v2705 = vpop.f32.mrb[0].mxu0
      %v2706 = vadd.f32 %v2352, %v2705
      %v2707 = vpop.f32.mrb[0].mxu0
      %2708 = vmatprep.mubr.f32.mxu0 0.0
      %2709 = vmatmul.mubr.f32.gmra.mrb[0].mxu0 %v2498
      %v2710 = vpop.f32.mrb[0].mxu0
      %v2711 = vadd.f32 %v2357, %v2710
      %v2712 = vpop.f32.mrb[0].mxu0
      %2713 = vmatprep.mubr.f32.mxu0 0.0
      %2714 = vmatmul.mubr.f32.gmra.mrb[0].mxu0 %v2501
      %v2715 = vpop.f32.mrb[0].mxu0
      %v2716 = vadd.f32 %v2362, %v2715
      %v2717 = vpop.f32.mrb[0].mxu0
      %2718 = vmatprep.mubr.f32.mxu0 0.0
      %2719 = vmatmul.mubr.f32.gmra.mrb[0].mxu0 %v2504
      %v2720 = vpop.f32.mrb[0].mxu0
      %v2721 = vadd.f32 %v2367, %v2720
      %v2722 = vpop.f32.mrb[0].mxu0
      %2723 = vdwg.mxu0
      %s2724 = scalar_lea.vmem %s4, 128
      %v2725 = vld [vmem:[%s2724] sm:$0xff]
      %v2726 = vld [vmem:[%s2724 + $0x8] sm:$0xff]
      %v2727 = vld [vmem:[%s2724 + $0x10] sm:$0xff]
      %v2728 = vld [vmem:[%s2724 + $0x18] sm:$0xff]
      %v2729 = vld [vmem:[%s2724 + $0x20] sm:$0xff]
      %v2730 = vld [vmem:[%s2724 + $0x28] sm:$0xff]
      %v2731 = vld [vmem:[%s2724 + $0x30] sm:$0xff]
      %v2732 = vld [vmem:[%s2724 + $0x38] sm:$0xff]
      %2733 = vrot.lane.b32.xlu0 %v1941, 17
      %v2734 = vpop.permute.xlu0 %2733
      %2735 = vrot.lane.b32.xlu0 %v1942, 17
      %v2736 = vpop.permute.xlu0 %2735
      %2737 = vrot.lane.b32.xlu0 %v1943, 17
      %v2738 = vpop.permute.xlu0 %2737
      %2739 = vrot.lane.b32.xlu0 %v1944, 17
      %v2740 = vpop.permute.xlu0 %2739
      %2741 = vrot.lane.b32.xlu0 %v1945, 17
      %v2742 = vpop.permute.xlu0 %2741
      %2743 = vrot.lane.b32.xlu0 %v1946, 17
      %v2744 = vpop.permute.xlu0 %2743
      %2745 = vrot.lane.b32.xlu0 %v1947, 17
      %v2746 = vpop.permute.xlu0 %2745
      %2747 = vrot.lane.b32.xlu0 %v1948, 17
      %v2748 = vpop.permute.xlu0 %2747
      %2749 = vrot.lane.b32.xlu0 %v1949, 17
      %v2750 = vpop.permute.xlu0 %2749
      %2751 = vrot.lane.b32.xlu0 %v1950, 17
      %v2752 = vpop.permute.xlu0 %2751
      %2753 = vrot.lane.b32.xlu0 %v1951, 17
      %v2754 = vpop.permute.xlu0 %2753
      %2755 = vrot.lane.b32.xlu0 %v1952, 17
      %v2756 = vpop.permute.xlu0 %2755
      %2757 = vrot.lane.b32.xlu0 %v1953, 17
      %v2758 = vpop.permute.xlu0 %2757
      %2759 = vrot.lane.b32.xlu0 %v1954, 17
      %v2760 = vpop.permute.xlu0 %2759
      %2761 = vrot.lane.b32.xlu0 %v1955, 17
      %v2762 = vpop.permute.xlu0 %2761
      %2763 = vrot.lane.b32.xlu0 %v1956, 17
      %v2764 = vpop.permute.xlu0 %2763
      %2765 = vrot.lane.b32.xlu0 %v1957, 17
      %v2766 = vpop.permute.xlu0 %2765
      %2767 = vrot.lane.b32.xlu0 %v1958, 17
      %v2768 = vpop.permute.xlu0 %2767
      %2769 = vrot.lane.b32.xlu0 %v1959, 17
      %v2770 = vpop.permute.xlu0 %2769
      %2771 = vrot.lane.b32.xlu0 %v1960, 17
      %v2772 = vpop.permute.xlu0 %2771
      %2773 = vrot.lane.b32.xlu0 %v1961, 17
      %v2774 = vpop.permute.xlu0 %2773
      %2775 = vrot.lane.b32.xlu0 %v1962, 17
      %v2776 = vpop.permute.xlu0 %2775
      %2777 = vrot.lane.b32.xlu0 %v1963, 17
      %v2778 = vpop.permute.xlu0 %2777
      %2779 = vrot.lane.b32.xlu0 %v1964, 17
      %v2780 = vpop.permute.xlu0 %2779
      %2781 = vrot.lane.b32.xlu0 %v1965, 17
      %v2782 = vpop.permute.xlu0 %2781
      %2783 = vrot.lane.b32.xlu0 %v1966, 17
      %v2784 = vpop.permute.xlu0 %2783
      %2785 = vrot.lane.b32.xlu0 %v1967, 17
      %v2786 = vpop.permute.xlu0 %2785
      %2787 = vrot.lane.b32.xlu0 %v1968, 17
      %v2788 = vpop.permute.xlu0 %2787
      %2789 = vrot.lane.b32.xlu0 %v1969, 17
      %v2790 = vpop.permute.xlu0 %2789
      %2791 = vrot.lane.b32.xlu0 %v1970, 17
      %v2792 = vpop.permute.xlu0 %2791
      %2793 = vrot.lane.b32.xlu0 %v1971, 17
      %v2794 = vpop.permute.xlu0 %2793
      %2795 = vrot.lane.b32.xlu0 %v1972, 17
      %v2796 = vpop.permute.xlu0 %2795
      %vm2797 = vcmask 138240
      %v2798 = vsel %vm2797, %v2734, %v2736
      %v2799 = vsel %vm2797, %v2736, %v2738
      %v2800 = vsel %vm2797, %v2738, %v2740
      %v2801 = vsel %vm2797, %v2742, %v2744
      %v2802 = vsel %vm2797, %v2744, %v2746
      %v2803 = vsel %vm2797, %v2746, %v2748
      %v2804 = vsel %vm2797, %v2750, %v2752
      %v2805 = vsel %vm2797, %v2752, %v2754
      %v2806 = vsel %vm2797, %v2754, %v2756
      %v2807 = vsel %vm2797, %v2758, %v2760
      %v2808 = vsel %vm2797, %v2760, %v2762
      %v2809 = vsel %vm2797, %v2762, %v2764
      %v2810 = vsel %vm2797, %v2766, %v2768
      %v2811 = vsel %vm2797, %v2768, %v2770
      %v2812 = vsel %vm2797, %v2770, %v2772
      %v2813 = vsel %vm2797, %v2774, %v2776
      %v2814 = vsel %vm2797, %v2776, %v2778
      %v2815 = vsel %vm2797, %v2778, %v2780
      %v2816 = vsel %vm2797, %v2782, %v2784
      %v2817 = vsel %vm2797, %v2784, %v2786
      %v2818 = vsel %vm2797, %v2786, %v2788
      %v2819 = vsel %vm2797, %v2790, %v2792
      %v2820 = vsel %vm2797, %v2792, %v2794
      %v2821 = vsel %vm2797, %v2794, %v2796
      %v2847 = vsel %vm2127, %v2725, 0
      %v2850 = vsel %vm2127, %v2726, 0
      %v2853 = vsel %vm2127, %v2727, 0
      %v2856 = vsel %vm2127, %v2728, 0
      %v2859 = vsel %vm2127, %v2729, 0
      %v2862 = vsel %vm2127, %v2730, 0
      %v2865 = vsel %vm2127, %v2731, 0
      %v2868 = vsel %vm2127, %v2732, 0
      %2870 = vmatprep.subr.mxu0 %v2799
      %2871 = vmatpush1.msra.mxu0 %v2798
      %2872 = vmatprep.subr.mxu0 %v2802
      %2873 = vmatpush1.msra.mxu0 %v2801
      %2874 = vmatprep.subr.mxu0 %v2805
      %2875 = vmatpush1.msra.mxu0 %v2804
      %2876 = vmatprep.subr.mxu0 %v2808
      %2877 = vmatpush1.msra.mxu0 %v2807
      %2878 = vmatprep.subr.mxu0 %v2811
      %2879 = vmatpush1.msra.mxu0 %v2810
      %2880 = vmatprep.subr.mxu0 %v2814
      %2881 = vmatpush1.msra.mxu0 %v2813
      %2882 = vmatprep.subr.mxu0 %v2817
      %2883 = vmatpush1.msra.mxu0 %v2816
      %2884 = vmatprep.subr.mxu0 %v2820
      %2885 = vmatpush1.msra.mxu0 %v2819
      %2886 = vmatprep.subr.mxu0 0.0
      %2887 = vmatpush1.msra.mxu0 0.0
      %2888 = vmatprep.subr.mxu0 0.0
      %2889 = vmatpush1.msra.mxu0 0.0
      %2890 = vmatprep.subr.mxu0 0.0
      %2891 = vmatpush1.msra.mxu0 0.0
      %2892 = vmatprep.subr.mxu0 0.0
      %2893 = vmatpush1.msra.mxu0 0.0
      %2894 = vmatprep.subr.mxu0 0.0
      %2895 = vmatpush1.msra.mxu0 0.0
      %2896 = vmatprep.subr.mxu0 0.0
      %2897 = vmatpush1.msra.mxu0 0.0
      %2898 = vmatprep.subr.mxu0 0.0
      %2899 = vmatpush1.msra.mxu0 0.0
      %2900 = vmatprep.subr.mxu0 0.0
      %2901 = vmatpush1.msra.mxu0 0.0
      %2902 = vmatprep.subr.mxu0 0.0
      %2903 = vmatpush1.msra.mxu0 0.0
      %2904 = vmatprep.subr.mxu0 0.0
      %2905 = vmatpush1.msra.mxu0 0.0
      %2906 = vmatprep.subr.mxu0 0.0
      %2907 = vmatpush1.msra.mxu0 0.0
      %2908 = vmatprep.subr.mxu0 0.0
      %2909 = vmatpush1.msra.mxu0 0.0
      %2910 = vmatprep.subr.mxu0 0.0
      %2911 = vmatpush1.msra.mxu0 0.0
      %2912 = vmatprep.subr.mxu0 0.0
      %2913 = vmatpush1.msra.mxu0 0.0
      %2914 = vmatprep.subr.mxu0 0.0
      %2915 = vmatpush1.msra.mxu0 0.0
      %2916 = vmatprep.subr.mxu0 0.0
      %2917 = vmatpush1.msra.mxu0 0.0
      %2918 = vmatprep.subr.mxu0 0.0
      %2919 = vmatpush1.msra.mxu0 0.0
      %2920 = vmatprep.subr.mxu0 0.0
      %2921 = vmatpush1.msra.mxu0 0.0
      %2922 = vmatprep.subr.mxu0 0.0
      %2923 = vmatpush1.msra.mxu0 0.0
      %2924 = vmatprep.subr.mxu0 0.0
      %2925 = vmatpush1.msra.mxu0 0.0
      %2926 = vmatprep.subr.mxu0 0.0
      %2927 = vmatpush1.msra.mxu0 0.0
      %2928 = vmatprep.subr.mxu0 0.0
      %2929 = vmatpush1.msra.mxu0 0.0
      %2930 = vmatprep.subr.mxu0 0.0
      %2931 = vmatpush1.msra.mxu0 0.0
      %2932 = vmatprep.subr.mxu0 0.0
      %2933 = vmatpush1.msra.mxu0 0.0
      %2934 = vmatprep.mubr.f32.mxu0 0.0
      %2935 = vmatmul.mubr.f32.gmra.mrb[0].mxu0 %v2847
      %v2936 = vpop.f32.mrb[0].mxu0
      %v2937 = vadd.f32 0.0, %v2936
      %v2938 = vpop.f32.mrb[0].mxu0
      %v2939 = vadd.f32 0.0, %v2938
      %2940 = vmatprep.mubr.f32.mxu0 0.0
      %2941 = vmatmul.mubr.f32.gmra.mrb[0].mxu0 %v2850
      %v2942 = vpop.f32.mrb[0].mxu0
      %v2943 = vadd.f32 0.0, %v2942
      %v2944 = vpop.f32.mrb[0].mxu0
      %v2945 = vadd.f32 0.0, %v2944
      %2946 = vmatprep.mubr.f32.mxu0 0.0
      %2947 = vmatmul.mubr.f32.gmra.mrb[0].mxu0 %v2853
      %v2948 = vpop.f32.mrb[0].mxu0
      %v2949 = vadd.f32 0.0, %v2948
      %v2950 = vpop.f32.mrb[0].mxu0
      %v2951 = vadd.f32 0.0, %v2950
      %2952 = vmatprep.mubr.f32.mxu0 0.0
      %2953 = vmatmul.mubr.f32.gmra.mrb[0].mxu0 %v2856
      %v2954 = vpop.f32.mrb[0].mxu0
      %v2955 = vadd.f32 0.0, %v2954
      %v2956 = vpop.f32.mrb[0].mxu0
      %v2957 = vadd.f32 0.0, %v2956
      %2958 = vmatprep.mubr.f32.mxu0 0.0
      %2959 = vmatmul.mubr.f32.gmra.mrb[0].mxu0 %v2859
      %v2960 = vpop.f32.mrb[0].mxu0
      %v2961 = vadd.f32 0.0, %v2960
      %v2962 = vpop.f32.mrb[0].mxu0
      %v2963 = vadd.f32 0.0, %v2962
      %2964 = vmatprep.mubr.f32.mxu0 0.0
      %2965 = vmatmul.mubr.f32.gmra.mrb[0].mxu0 %v2862
      %v2966 = vpop.f32.mrb[0].mxu0
      %v2967 = vadd.f32 0.0, %v2966
      %v2968 = vpop.f32.mrb[0].mxu0
      %v2969 = vadd.f32 0.0, %v2968
      %2970 = vmatprep.mubr.f32.mxu0 0.0
      %2971 = vmatmul.mubr.f32.gmra.mrb[0].mxu0 %v2865
      %v2972 = vpop.f32.mrb[0].mxu0
      %v2973 = vadd.f32 0.0, %v2972
      %v2974 = vpop.f32.mrb[0].mxu0
      %v2975 = vadd.f32 0.0, %v2974
      %2976 = vmatprep.mubr.f32.mxu0 0.0
      %2977 = vmatmul.mubr.f32.gmra.mrb[0].mxu0 %v2868
      %v2978 = vpop.f32.mrb[0].mxu0
      %v2979 = vadd.f32 0.0, %v2978
      %v2980 = vpop.f32.mrb[0].mxu0
      %v2981 = vadd.f32 0.0, %v2980
      %2982 = vdwg.mxu0
      %2983 = vmatprep.subr.mxu0 0.0
      %2984 = vmatpush1.msra.mxu0 %v2800
      %2985 = vmatprep.subr.mxu0 0.0
      %2986 = vmatpush1.msra.mxu0 %v2803
      %2987 = vmatprep.subr.mxu0 0.0
      %2988 = vmatpush1.msra.mxu0 %v2806
      %2989 = vmatprep.subr.mxu0 0.0
      %2990 = vmatpush1.msra.mxu0 %v2809
      %2991 = vmatprep.subr.mxu0 0.0
      %2992 = vmatpush1.msra.mxu0 %v2812
      %2993 = vmatprep.subr.mxu0 0.0
      %2994 = vmatpush1.msra.mxu0 %v2815
      %2995 = vmatprep.subr.mxu0 0.0
      %2996 = vmatpush1.msra.mxu0 %v2818
      %2997 = vmatprep.subr.mxu0 0.0
      %2998 = vmatpush1.msra.mxu0 %v2821
      %2999 = vmatprep.subr.mxu0 0.0
      %3000 = vmatpush1.msra.mxu0 0.0
      %3001 = vmatprep.subr.mxu0 0.0
      %3002 = vmatpush1.msra.mxu0 0.0
      %3003 = vmatprep.subr.mxu0 0.0
      %3004 = vmatpush1.msra.mxu0 0.0
      %3005 = vmatprep.subr.mxu0 0.0
      %3006 = vmatpush1.msra.mxu0 0.0
      %3007 = vmatprep.subr.mxu0 0.0
      %3008 = vmatpush1.msra.mxu0 0.0
      %3009 = vmatprep.subr.mxu0 0.0
      %3010 = vmatpush1.msra.mxu0 0.0
      %3011 = vmatprep.subr.mxu0 0.0
      %3012 = vmatpush1.msra.mxu0 0.0
      %3013 = vmatprep.subr.mxu0 0.0
      %3014 = vmatpush1.msra.mxu0 0.0
      %3015 = vmatprep.subr.mxu0 0.0
      %3016 = vmatpush1.msra.mxu0 0.0
      %3017 = vmatprep.subr.mxu0 0.0
      %3018 = vmatpush1.msra.mxu0 0.0
      %3019 = vmatprep.subr.mxu0 0.0
      %3020 = vmatpush1.msra.mxu0 0.0
      %3021 = vmatprep.subr.mxu0 0.0
      %3022 = vmatpush1.msra.mxu0 0.0
      %3023 = vmatprep.subr.mxu0 0.0
      %3024 = vmatpush1.msra.mxu0 0.0
      %3025 = vmatprep.subr.mxu0 0.0
      %3026 = vmatpush1.msra.mxu0 0.0
      %3027 = vmatprep.subr.mxu0 0.0
      %3028 = vmatpush1.msra.mxu0 0.0
      %3029 = vmatprep.subr.mxu0 0.0
      %3030 = vmatpush1.msra.mxu0 0.0
      %3031 = vmatprep.subr.mxu0 0.0
      %3032 = vmatpush1.msra.mxu0 0.0
      %3033 = vmatprep.subr.mxu0 0.0
      %3034 = vmatpush1.msra.mxu0 0.0
      %3035 = vmatprep.subr.mxu0 0.0
      %3036 = vmatpush1.msra.mxu0 0.0
      %3037 = vmatprep.subr.mxu0 0.0
      %3038 = vmatpush1.msra.mxu0 0.0
      %3039 = vmatprep.subr.mxu0 0.0
      %3040 = vmatpush1.msra.mxu0 0.0
      %3041 = vmatprep.subr.mxu0 0.0
      %3042 = vmatpush1.msra.mxu0 0.0
      %3043 = vmatprep.subr.mxu0 0.0
      %3044 = vmatpush1.msra.mxu0 0.0
      %3045 = vmatprep.subr.mxu0 0.0
      %3046 = vmatpush1.msra.mxu0 0.0
      %3047 = vmatprep.mubr.f32.mxu0 0.0
      %3048 = vmatmul.mubr.f32.gmra.mrb[0].mxu0 %v2847
      %v3049 = vpop.f32.mrb[0].mxu0
      %v3050 = vadd.f32 0.0, %v3049
      %v3051 = vpop.f32.mrb[0].mxu0
      %3052 = vmatprep.mubr.f32.mxu0 0.0
      %3053 = vmatmul.mubr.f32.gmra.mrb[0].mxu0 %v2850
      %v3054 = vpop.f32.mrb[0].mxu0
      %v3055 = vadd.f32 0.0, %v3054
      %v3056 = vpop.f32.mrb[0].mxu0
      %3057 = vmatprep.mubr.f32.mxu0 0.0
      %3058 = vmatmul.mubr.f32.gmra.mrb[0].mxu0 %v2853
      %v3059 = vpop.f32.mrb[0].mxu0
      %v3060 = vadd.f32 0.0, %v3059
      %v3061 = vpop.f32.mrb[0].mxu0
      %3062 = vmatprep.mubr.f32.mxu0 0.0
      %3063 = vmatmul.mubr.f32.gmra.mrb[0].mxu0 %v2856
      %v3064 = vpop.f32.mrb[0].mxu0
      %v3065 = vadd.f32 0.0, %v3064
      %v3066 = vpop.f32.mrb[0].mxu0
      %3067 = vmatprep.mubr.f32.mxu0 0.0
      %3068 = vmatmul.mubr.f32.gmra.mrb[0].mxu0 %v2859
      %v3069 = vpop.f32.mrb[0].mxu0
      %v3070 = vadd.f32 0.0, %v3069
      %v3071 = vpop.f32.mrb[0].mxu0
      %3072 = vmatprep.mubr.f32.mxu0 0.0
      %3073 = vmatmul.mubr.f32.gmra.mrb[0].mxu0 %v2862
      %v3074 = vpop.f32.mrb[0].mxu0
      %v3075 = vadd.f32 0.0, %v3074
      %v3076 = vpop.f32.mrb[0].mxu0
      %3077 = vmatprep.mubr.f32.mxu0 0.0
      %3078 = vmatmul.mubr.f32.gmra.mrb[0].mxu0 %v2865
      %v3079 = vpop.f32.mrb[0].mxu0
      %v3080 = vadd.f32 0.0, %v3079
      %v3081 = vpop.f32.mrb[0].mxu0
      %3082 = vmatprep.mubr.f32.mxu0 0.0
      %3083 = vmatmul.mubr.f32.gmra.mrb[0].mxu0 %v2868
      %v3084 = vpop.f32.mrb[0].mxu0
      %v3085 = vadd.f32 0.0, %v3084
      %v3086 = vpop.f32.mrb[0].mxu0
      %3087 = vdwg.mxu0
      %v3088 = vadd.f32 %v2573, %v2937
      %v3089 = vadd.f32 %v2575, %v2939
      %v3090 = vadd.f32 %v2686, %v3050
      %v3091 = vadd.f32 %v2579, %v2943
      %v3092 = vadd.f32 %v2581, %v2945
      %v3093 = vadd.f32 %v2691, %v3055
      %v3094 = vadd.f32 %v2585, %v2949
      %v3095 = vadd.f32 %v2587, %v2951
      %v3096 = vadd.f32 %v2696, %v3060
      %v3097 = vadd.f32 %v2591, %v2955
      %v3098 = vadd.f32 %v2593, %v2957
      %v3099 = vadd.f32 %v2701, %v3065
      %v3100 = vadd.f32 %v2597, %v2961
      %v3101 = vadd.f32 %v2599, %v2963
      %v3102 = vadd.f32 %v2706, %v3070
      %v3103 = vadd.f32 %v2603, %v2967
      %v3104 = vadd.f32 %v2605, %v2969
      %v3105 = vadd.f32 %v2711, %v3075
      %v3106 = vadd.f32 %v2609, %v2973
      %v3107 = vadd.f32 %v2611, %v2975
      %v3108 = vadd.f32 %v2716, %v3080
      %v3109 = vadd.f32 %v2615, %v2979
      %v3110 = vadd.f32 %v2617, %v2981
      %v3111 = vadd.f32 %v2721, %v3085
      %s3112 = scalar_lea.vmem %s4, 192
      %v3113 = vld [vmem:[%s3112] sm:$0xff]
      %v3114 = vld [vmem:[%s3112 + $0x8] sm:$0xff]
      %v3115 = vld [vmem:[%s3112 + $0x10] sm:$0xff]
      %v3116 = vld [vmem:[%s3112 + $0x18] sm:$0xff]
      %v3117 = vld [vmem:[%s3112 + $0x20] sm:$0xff]
      %v3118 = vld [vmem:[%s3112 + $0x28] sm:$0xff]
      %v3119 = vld [vmem:[%s3112 + $0x30] sm:$0xff]
      %v3120 = vld [vmem:[%s3112 + $0x38] sm:$0xff]
      %3121 = vrot.lane.b32.xlu0 %v1941, 1
      %v3122 = vpop.permute.xlu0 %3121
      %3123 = vrot.lane.b32.xlu0 %v1942, 1
      %v3124 = vpop.permute.xlu0 %3123
      %3125 = vrot.lane.b32.xlu0 %v1943, 1
      %v3126 = vpop.permute.xlu0 %3125
      %3127 = vrot.lane.b32.xlu0 %v1944, 1
      %v3128 = vpop.permute.xlu0 %3127
      %3129 = vrot.lane.b32.xlu0 %v1945, 1
      %v3130 = vpop.permute.xlu0 %3129
      %3131 = vrot.lane.b32.xlu0 %v1946, 1
      %v3132 = vpop.permute.xlu0 %3131
      %3133 = vrot.lane.b32.xlu0 %v1947, 1
      %v3134 = vpop.permute.xlu0 %3133
      %3135 = vrot.lane.b32.xlu0 %v1948, 1
      %v3136 = vpop.permute.xlu0 %3135
      %3137 = vrot.lane.b32.xlu0 %v1949, 1
      %v3138 = vpop.permute.xlu0 %3137
      %3139 = vrot.lane.b32.xlu0 %v1950, 1
      %v3140 = vpop.permute.xlu0 %3139
      %3141 = vrot.lane.b32.xlu0 %v1951, 1
      %v3142 = vpop.permute.xlu0 %3141
      %3143 = vrot.lane.b32.xlu0 %v1952, 1
      %v3144 = vpop.permute.xlu0 %3143
      %3145 = vrot.lane.b32.xlu0 %v1953, 1
      %v3146 = vpop.permute.xlu0 %3145
      %3147 = vrot.lane.b32.xlu0 %v1954, 1
      %v3148 = vpop.permute.xlu0 %3147
      %3149 = vrot.lane.b32.xlu0 %v1955, 1
      %v3150 = vpop.permute.xlu0 %3149
      %3151 = vrot.lane.b32.xlu0 %v1956, 1
      %v3152 = vpop.permute.xlu0 %3151
      %3153 = vrot.lane.b32.xlu0 %v1957, 1
      %v3154 = vpop.permute.xlu0 %3153
      %3155 = vrot.lane.b32.xlu0 %v1958, 1
      %v3156 = vpop.permute.xlu0 %3155
      %3157 = vrot.lane.b32.xlu0 %v1959, 1
      %v3158 = vpop.permute.xlu0 %3157
      %3159 = vrot.lane.b32.xlu0 %v1960, 1
      %v3160 = vpop.permute.xlu0 %3159
      %3161 = vrot.lane.b32.xlu0 %v1961, 1
      %v3162 = vpop.permute.xlu0 %3161
      %3163 = vrot.lane.b32.xlu0 %v1962, 1
      %v3164 = vpop.permute.xlu0 %3163
      %3165 = vrot.lane.b32.xlu0 %v1963, 1
      %v3166 = vpop.permute.xlu0 %3165
      %3167 = vrot.lane.b32.xlu0 %v1964, 1
      %v3168 = vpop.permute.xlu0 %3167
      %3169 = vrot.lane.b32.xlu0 %v1965, 1
      %v3170 = vpop.permute.xlu0 %3169
      %3171 = vrot.lane.b32.xlu0 %v1966, 1
      %v3172 = vpop.permute.xlu0 %3171
      %3173 = vrot.lane.b32.xlu0 %v1967, 1
      %v3174 = vpop.permute.xlu0 %3173
      %3175 = vrot.lane.b32.xlu0 %v1968, 1
      %v3176 = vpop.permute.xlu0 %3175
      %3177 = vrot.lane.b32.xlu0 %v1969, 1
      %v3178 = vpop.permute.xlu0 %3177
      %3179 = vrot.lane.b32.xlu0 %v1970, 1
      %v3180 = vpop.permute.xlu0 %3179
      %3181 = vrot.lane.b32.xlu0 %v1971, 1
      %v3182 = vpop.permute.xlu0 %3181
      %3183 = vrot.lane.b32.xlu0 %v1972, 1
      %v3184 = vpop.permute.xlu0 %3183
      %v3185 = vsel %vm400, %v3122, %v3124
      %v3186 = vsel %vm400, %v3124, %v3126
      %v3187 = vsel %vm400, %v3126, %v3128
      %v3188 = vsel %vm400, %v3130, %v3132
      %v3189 = vsel %vm400, %v3132, %v3134
      %v3190 = vsel %vm400, %v3134, %v3136
      %v3191 = vsel %vm400, %v3138, %v3140
      %v3192 = vsel %vm400, %v3140, %v3142
      %v3193 = vsel %vm400, %v3142, %v3144
      %v3194 = vsel %vm400, %v3146, %v3148
      %v3195 = vsel %vm400, %v3148, %v3150
      %v3196 = vsel %vm400, %v3150, %v3152
      %v3197 = vsel %vm400, %v3154, %v3156
      %v3198 = vsel %vm400, %v3156, %v3158
      %v3199 = vsel %vm400, %v3158, %v3160
      %v3200 = vsel %vm400, %v3162, %v3164
      %v3201 = vsel %vm400, %v3164, %v3166
      %v3202 = vsel %vm400, %v3166, %v3168
      %v3203 = vsel %vm400, %v3170, %v3172
      %v3204 = vsel %vm400, %v3172, %v3174
      %v3205 = vsel %vm400, %v3174, %v3176
      %v3206 = vsel %vm400, %v3178, %v3180
      %v3207 = vsel %vm400, %v3180, %v3182
      %v3208 = vsel %vm400, %v3182, %v3184
      %v3234 = vsel %vm2127, %v3113, 0
      %v3237 = vsel %vm2127, %v3114, 0
      %v3240 = vsel %vm2127, %v3115, 0
      %v3243 = vsel %vm2127, %v3116, 0
      %v3246 = vsel %vm2127, %v3117, 0
      %v3249 = vsel %vm2127, %v3118, 0
      %v3252 = vsel %vm2127, %v3119, 0
      %v3255 = vsel %vm2127, %v3120, 0
      %3257 = vmatprep.subr.mxu0 %v3186
      %3258 = vmatpush1.msra.mxu0 %v3185
      %3259 = vmatprep.subr.mxu0 %v3189
      %3260 = vmatpush1.msra.mxu0 %v3188
      %3261 = vmatprep.subr.mxu0 %v3192
      %3262 = vmatpush1.msra.mxu0 %v3191
      %3263 = vmatprep.subr.mxu0 %v3195
      %3264 = vmatpush1.msra.mxu0 %v3194
      %3265 = vmatprep.subr.mxu0 %v3198
      %3266 = vmatpush1.msra.mxu0 %v3197
      %3267 = vmatprep.subr.mxu0 %v3201
      %3268 = vmatpush1.msra.mxu0 %v3200
      %3269 = vmatprep.subr.mxu0 %v3204
      %3270 = vmatpush1.msra.mxu0 %v3203
      %3271 = vmatprep.subr.mxu0 %v3207
      %3272 = vmatpush1.msra.mxu0 %v3206
      %3273 = vmatprep.subr.mxu0 0.0
      %3274 = vmatpush1.msra.mxu0 0.0
      %3275 = vmatprep.subr.mxu0 0.0
      %3276 = vmatpush1.msra.mxu0 0.0
      %3277 = vmatprep.subr.mxu0 0.0
      %3278 = vmatpush1.msra.mxu0 0.0
      %3279 = vmatprep.subr.mxu0 0.0
      %3280 = vmatpush1.msra.mxu0 0.0
      %3281 = vmatprep.subr.mxu0 0.0
      %3282 = vmatpush1.msra.mxu0 0.0
      %3283 = vmatprep.subr.mxu0 0.0
      %3284 = vmatpush1.msra.mxu0 0.0
      %3285 = vmatprep.subr.mxu0 0.0
      %3286 = vmatpush1.msra.mxu0 0.0
      %3287 = vmatprep.subr.mxu0 0.0
      %3288 = vmatpush1.msra.mxu0 0.0
      %3289 = vmatprep.subr.mxu0 0.0
      %3290 = vmatpush1.msra.mxu0 0.0
      %3291 = vmatprep.subr.mxu0 0.0
      %3292 = vmatpush1.msra.mxu0 0.0
      %3293 = vmatprep.subr.mxu0 0.0
      %3294 = vmatpush1.msra.mxu0 0.0
      %3295 = vmatprep.subr.mxu0 0.0
      %3296 = vmatpush1.msra.mxu0 0.0
      %3297 = vmatprep.subr.mxu0 0.0
      %3298 = vmatpush1.msra.mxu0 0.0
      %3299 = vmatprep.subr.mxu0 0.0
      %3300 = vmatpush1.msra.mxu0 0.0
      %3301 = vmatprep.subr.mxu0 0.0
      %3302 = vmatpush1.msra.mxu0 0.0
      %3303 = vmatprep.subr.mxu0 0.0
      %3304 = vmatpush1.msra.mxu0 0.0
      %3305 = vmatprep.subr.mxu0 0.0
      %3306 = vmatpush1.msra.mxu0 0.0
      %3307 = vmatprep.subr.mxu0 0.0
      %3308 = vmatpush1.msra.mxu0 0.0
      %3309 = vmatprep.subr.mxu0 0.0
      %3310 = vmatpush1.msra.mxu0 0.0
      %3311 = vmatprep.subr.mxu0 0.0
      %3312 = vmatpush1.msra.mxu0 0.0
      %3313 = vmatprep.subr.mxu0 0.0
      %3314 = vmatpush1.msra.mxu0 0.0
      %3315 = vmatprep.subr.mxu0 0.0
      %3316 = vmatpush1.msra.mxu0 0.0
      %3317 = vmatprep.subr.mxu0 0.0
      %3318 = vmatpush1.msra.mxu0 0.0
      %3319 = vmatprep.subr.mxu0 0.0
      %3320 = vmatpush1.msra.mxu0 0.0
      %3321 = vmatprep.mubr.f32.mxu0 0.0
      %3322 = vmatmul.mubr.f32.gmra.mrb[0].mxu0 %v3234
      %v3323 = vpop.f32.mrb[0].mxu0
      %v3324 = vadd.f32 0.0, %v3323
      %v3325 = vpop.f32.mrb[0].mxu0
      %v3326 = vadd.f32 0.0, %v3325
      %3327 = vmatprep.mubr.f32.mxu0 0.0
      %3328 = vmatmul.mubr.f32.gmra.mrb[0].mxu0 %v3237
      %v3329 = vpop.f32.mrb[0].mxu0
      %v3330 = vadd.f32 0.0, %v3329
      %v3331 = vpop.f32.mrb[0].mxu0
      %v3332 = vadd.f32 0.0, %v3331
      %3333 = vmatprep.mubr.f32.mxu0 0.0
      %3334 = vmatmul.mubr.f32.gmra.mrb[0].mxu0 %v3240
      %v3335 = vpop.f32.mrb[0].mxu0
      %v3336 = vadd.f32 0.0, %v3335
      %v3337 = vpop.f32.mrb[0].mxu0
      %v3338 = vadd.f32 0.0, %v3337
      %3339 = vmatprep.mubr.f32.mxu0 0.0
      %3340 = vmatmul.mubr.f32.gmra.mrb[0].mxu0 %v3243
      %v3341 = vpop.f32.mrb[0].mxu0
      %v3342 = vadd.f32 0.0, %v3341
      %v3343 = vpop.f32.mrb[0].mxu0
      %v3344 = vadd.f32 0.0, %v3343
      %3345 = vmatprep.mubr.f32.mxu0 0.0
      %3346 = vmatmul.mubr.f32.gmra.mrb[0].mxu0 %v3246
      %v3347 = vpop.f32.mrb[0].mxu0
      %v3348 = vadd.f32 0.0, %v3347
      %v3349 = vpop.f32.mrb[0].mxu0
      %v3350 = vadd.f32 0.0, %v3349
      %3351 = vmatprep.mubr.f32.mxu0 0.0
      %3352 = vmatmul.mubr.f32.gmra.mrb[0].mxu0 %v3249
      %v3353 = vpop.f32.mrb[0].mxu0
      %v3354 = vadd.f32 0.0, %v3353
      %v3355 = vpop.f32.mrb[0].mxu0
      %v3356 = vadd.f32 0.0, %v3355
      %3357 = vmatprep.mubr.f32.mxu0 0.0
      %3358 = vmatmul.mubr.f32.gmra.mrb[0].mxu0 %v3252
      %v3359 = vpop.f32.mrb[0].mxu0
      %v3360 = vadd.f32 0.0, %v3359
      %v3361 = vpop.f32.mrb[0].mxu0
      %v3362 = vadd.f32 0.0, %v3361
      %3363 = vmatprep.mubr.f32.mxu0 0.0
      %3364 = vmatmul.mubr.f32.gmra.mrb[0].mxu0 %v3255
      %v3365 = vpop.f32.mrb[0].mxu0
      %v3366 = vadd.f32 0.0, %v3365
      %v3367 = vpop.f32.mrb[0].mxu0
      %v3368 = vadd.f32 0.0, %v3367
      %3369 = vdwg.mxu0
      %3370 = vmatprep.subr.mxu0 0.0
      %3371 = vmatpush1.msra.mxu0 %v3187
      %3372 = vmatprep.subr.mxu0 0.0
      %3373 = vmatpush1.msra.mxu0 %v3190
      %3374 = vmatprep.subr.mxu0 0.0
      %3375 = vmatpush1.msra.mxu0 %v3193
      %3376 = vmatprep.subr.mxu0 0.0
      %3377 = vmatpush1.msra.mxu0 %v3196
      %3378 = vmatprep.subr.mxu0 0.0
      %3379 = vmatpush1.msra.mxu0 %v3199
      %3380 = vmatprep.subr.mxu0 0.0
      %3381 = vmatpush1.msra.mxu0 %v3202
      %3382 = vmatprep.subr.mxu0 0.0
      %3383 = vmatpush1.msra.mxu0 %v3205
      %3384 = vmatprep.subr.mxu0 0.0
      %3385 = vmatpush1.msra.mxu0 %v3208
      %3386 = vmatprep.subr.mxu0 0.0
      %3387 = vmatpush1.msra.mxu0 0.0
      %3388 = vmatprep.subr.mxu0 0.0
      %3389 = vmatpush1.msra.mxu0 0.0
      %3390 = vmatprep.subr.mxu0 0.0
      %3391 = vmatpush1.msra.mxu0 0.0
      %3392 = vmatprep.subr.mxu0 0.0
      %3393 = vmatpush1.msra.mxu0 0.0
      %3394 = vmatprep.subr.mxu0 0.0
      %3395 = vmatpush1.msra.mxu0 0.0
      %3396 = vmatprep.subr.mxu0 0.0
      %3397 = vmatpush1.msra.mxu0 0.0
      %3398 = vmatprep.subr.mxu0 0.0
      %3399 = vmatpush1.msra.mxu0 0.0
      %3400 = vmatprep.subr.mxu0 0.0
      %3401 = vmatpush1.msra.mxu0 0.0
      %3402 = vmatprep.subr.mxu0 0.0
      %3403 = vmatpush1.msra.mxu0 0.0
      %3404 = vmatprep.subr.mxu0 0.0
      %3405 = vmatpush1.msra.mxu0 0.0
      %3406 = vmatprep.subr.mxu0 0.0
      %3407 = vmatpush1.msra.mxu0 0.0
      %3408 = vmatprep.subr.mxu0 0.0
      %3409 = vmatpush1.msra.mxu0 0.0
      %3410 = vmatprep.subr.mxu0 0.0
      %3411 = vmatpush1.msra.mxu0 0.0
      %3412 = vmatprep.subr.mxu0 0.0
      %3413 = vmatpush1.msra.mxu0 0.0
      %3414 = vmatprep.subr.mxu0 0.0
      %3415 = vmatpush1.msra.mxu0 0.0
      %3416 = vmatprep.subr.mxu0 0.0
      %3417 = vmatpush1.msra.mxu0 0.0
      %3418 = vmatprep.subr.mxu0 0.0
      %3419 = vmatpush1.msra.mxu0 0.0
      %3420 = vmatprep.subr.mxu0 0.0
      %3421 = vmatpush1.msra.mxu0 0.0
      %3422 = vmatprep.subr.mxu0 0.0
      %3423 = vmatpush1.msra.mxu0 0.0
      %3424 = vmatprep.subr.mxu0 0.0
      %3425 = vmatpush1.msra.mxu0 0.0
      %3426 = vmatprep.subr.mxu0 0.0
      %3427 = vmatpush1.msra.mxu0 0.0
      %3428 = vmatprep.subr.mxu0 0.0
      %3429 = vmatpush1.msra.mxu0 0.0
      %3430 = vmatprep.subr.mxu0 0.0
      %3431 = vmatpush1.msra.mxu0 0.0
      %3432 = vmatprep.subr.mxu0 0.0
      %3433 = vmatpush1.msra.mxu0 0.0
      %3434 = vmatprep.mubr.f32.mxu0 0.0
      %3435 = vmatmul.mubr.f32.gmra.mrb[0].mxu0 %v3234
      %v3436 = vpop.f32.mrb[0].mxu0
      %v3437 = vadd.f32 0.0, %v3436
      %v3438 = vpop.f32.mrb[0].mxu0
      %3439 = vmatprep.mubr.f32.mxu0 0.0
      %3440 = vmatmul.mubr.f32.gmra.mrb[0].mxu0 %v3237
      %v3441 = vpop.f32.mrb[0].mxu0
      %v3442 = vadd.f32 0.0, %v3441
      %v3443 = vpop.f32.mrb[0].mxu0
      %3444 = vmatprep.mubr.f32.mxu0 0.0
      %3445 = vmatmul.mubr.f32.gmra.mrb[0].mxu0 %v3240
      %v3446 = vpop.f32.mrb[0].mxu0
      %v3447 = vadd.f32 0.0, %v3446
      %v3448 = vpop.f32.mrb[0].mxu0
      %3449 = vmatprep.mubr.f32.mxu0 0.0
      %3450 = vmatmul.mubr.f32.gmra.mrb[0].mxu0 %v3243
      %v3451 = vpop.f32.mrb[0].mxu0
      %v3452 = vadd.f32 0.0, %v3451
      %v3453 = vpop.f32.mrb[0].mxu0
      %3454 = vmatprep.mubr.f32.mxu0 0.0
      %3455 = vmatmul.mubr.f32.gmra.mrb[0].mxu0 %v3246
      %v3456 = vpop.f32.mrb[0].mxu0
      %v3457 = vadd.f32 0.0, %v3456
      %v3458 = vpop.f32.mrb[0].mxu0
      %3459 = vmatprep.mubr.f32.mxu0 0.0
      %3460 = vmatmul.mubr.f32.gmra.mrb[0].mxu0 %v3249
      %v3461 = vpop.f32.mrb[0].mxu0
      %v3462 = vadd.f32 0.0, %v3461
      %v3463 = vpop.f32.mrb[0].mxu0
      %3464 = vmatprep.mubr.f32.mxu0 0.0
      %3465 = vmatmul.mubr.f32.gmra.mrb[0].mxu0 %v3252
      %v3466 = vpop.f32.mrb[0].mxu0
      %v3467 = vadd.f32 0.0, %v3466
      %v3468 = vpop.f32.mrb[0].mxu0
      %3469 = vmatprep.mubr.f32.mxu0 0.0
      %3470 = vmatmul.mubr.f32.gmra.mrb[0].mxu0 %v3255
      %v3471 = vpop.f32.mrb[0].mxu0
      %v3472 = vadd.f32 0.0, %v3471
      %v3473 = vpop.f32.mrb[0].mxu0
      %3474 = vdwg.mxu0
      %v3475 = vadd.f32 %v3088, %v3324
      %v3476 = vadd.f32 %v3089, %v3326
      %v3477 = vadd.f32 %v3090, %v3437
      %v3478 = vadd.f32 %v3091, %v3330
      %v3479 = vadd.f32 %v3092, %v3332
      %v3480 = vadd.f32 %v3093, %v3442
      %v3481 = vadd.f32 %v3094, %v3336
      %v3482 = vadd.f32 %v3095, %v3338
      %v3483 = vadd.f32 %v3096, %v3447
      %v3484 = vadd.f32 %v3097, %v3342
      %v3485 = vadd.f32 %v3098, %v3344
      %v3486 = vadd.f32 %v3099, %v3452
      %v3487 = vadd.f32 %v3100, %v3348
      %v3488 = vadd.f32 %v3101, %v3350
      %v3489 = vadd.f32 %v3102, %v3457
      %v3490 = vadd.f32 %v3103, %v3354
      %v3491 = vadd.f32 %v3104, %v3356
      %v3492 = vadd.f32 %v3105, %v3462
      %v3493 = vadd.f32 %v3106, %v3360
      %v3494 = vadd.f32 %v3107, %v3362
      %v3495 = vadd.f32 %v3108, %v3467
      %v3496 = vadd.f32 %v3109, %v3366
      %v3497 = vadd.f32 %v3110, %v3368
      %v3498 = vadd.f32 %v3111, %v3472
      %s3499 = scalar_lea.vmem %s4, 256
      %v3500 = vld [vmem:[%s3499] sm:$0xff]
      %v3501 = vld [vmem:[%s3499 + $0x8] sm:$0xff]
      %v3502 = vld [vmem:[%s3499 + $0x10] sm:$0xff]
      %v3503 = vld [vmem:[%s3499 + $0x18] sm:$0xff]
      %v3504 = vld [vmem:[%s3499 + $0x20] sm:$0xff]
      %v3505 = vld [vmem:[%s3499 + $0x28] sm:$0xff]
      %v3506 = vld [vmem:[%s3499 + $0x30] sm:$0xff]
      %v3507 = vld [vmem:[%s3499 + $0x38] sm:$0xff]
      %v3509 = vsel %vm2127, %v3500, 0
      %v3512 = vsel %vm2127, %v3501, 0
      %v3515 = vsel %vm2127, %v3502, 0
      %v3518 = vsel %vm2127, %v3503, 0
      %v3521 = vsel %vm2127, %v3504, 0
      %v3524 = vsel %vm2127, %v3505, 0
      %v3527 = vsel %vm2127, %v3506, 0
      %v3530 = vsel %vm2127, %v3507, 0
      %3532 = vmatprep.subr.mxu0 %v1943
      %3533 = vmatpush1.msra.mxu0 %v1942
      %3534 = vmatprep.subr.mxu0 %v1947
      %3535 = vmatpush1.msra.mxu0 %v1946
      %3536 = vmatprep.subr.mxu0 %v1951
      %3537 = vmatpush1.msra.mxu0 %v1950
      %3538 = vmatprep.subr.mxu0 %v1955
      %3539 = vmatpush1.msra.mxu0 %v1954
      %3540 = vmatprep.subr.mxu0 %v1959
      %3541 = vmatpush1.msra.mxu0 %v1958
      %3542 = vmatprep.subr.mxu0 %v1963
      %3543 = vmatpush1.msra.mxu0 %v1962
      %3544 = vmatprep.subr.mxu0 %v1967
      %3545 = vmatpush1.msra.mxu0 %v1966
      %3546 = vmatprep.subr.mxu0 %v1971
      %3547 = vmatpush1.msra.mxu0 %v1970
      %3548 = vmatprep.subr.mxu0 0.0
      %3549 = vmatpush1.msra.mxu0 0.0
      %3550 = vmatprep.subr.mxu0 0.0
      %3551 = vmatpush1.msra.mxu0 0.0
      %3552 = vmatprep.subr.mxu0 0.0
      %3553 = vmatpush1.msra.mxu0 0.0
      %3554 = vmatprep.subr.mxu0 0.0
      %3555 = vmatpush1.msra.mxu0 0.0
      %3556 = vmatprep.subr.mxu0 0.0
      %3557 = vmatpush1.msra.mxu0 0.0
      %3558 = vmatprep.subr.mxu0 0.0
      %3559 = vmatpush1.msra.mxu0 0.0
      %3560 = vmatprep.subr.mxu0 0.0
      %3561 = vmatpush1.msra.mxu0 0.0
      %3562 = vmatprep.subr.mxu0 0.0
      %3563 = vmatpush1.msra.mxu0 0.0
      %3564 = vmatprep.subr.mxu0 0.0
      %3565 = vmatpush1.msra.mxu0 0.0
      %3566 = vmatprep.subr.mxu0 0.0
      %3567 = vmatpush1.msra.mxu0 0.0
      %3568 = vmatprep.subr.mxu0 0.0
      %3569 = vmatpush1.msra.mxu0 0.0
      %3570 = vmatprep.subr.mxu0 0.0
      %3571 = vmatpush1.msra.mxu0 0.0
      %3572 = vmatprep.subr.mxu0 0.0
      %3573 = vmatpush1.msra.mxu0 0.0
      %3574 = vmatprep.subr.mxu0 0.0
      %3575 = vmatpush1.msra.mxu0 0.0
      %3576 = vmatprep.subr.mxu0 0.0
      %3577 = vmatpush1.msra.mxu0 0.0
      %3578 = vmatprep.subr.mxu0 0.0
      %3579 = vmatpush1.msra.mxu0 0.0
      %3580 = vmatprep.subr.mxu0 0.0
      %3581 = vmatpush1.msra.mxu0 0.0
      %3582 = vmatprep.subr.mxu0 0.0
      %3583 = vmatpush1.msra.mxu0 0.0
      %3584 = vmatprep.subr.mxu0 0.0
      %3585 = vmatpush1.msra.mxu0 0.0
      %3586 = vmatprep.subr.mxu0 0.0
      %3587 = vmatpush1.msra.mxu0 0.0
      %3588 = vmatprep.subr.mxu0 0.0
      %3589 = vmatpush1.msra.mxu0 0.0
      %3590 = vmatprep.subr.mxu0 0.0
      %3591 = vmatpush1.msra.mxu0 0.0
      %3592 = vmatprep.subr.mxu0 0.0
      %3593 = vmatpush1.msra.mxu0 0.0
      %3594 = vmatprep.subr.mxu0 0.0
      %3595 = vmatpush1.msra.mxu0 0.0
      %3596 = vmatprep.mubr.f32.mxu0 0.0
      %3597 = vmatmul.mubr.f32.gmra.mrb[0].mxu0 %v3509
      %v3598 = vpop.f32.mrb[0].mxu0
      %v3599 = vadd.f32 0.0, %v3598
      %v3600 = vpop.f32.mrb[0].mxu0
      %v3601 = vadd.f32 0.0, %v3600
      %3602 = vmatprep.mubr.f32.mxu0 0.0
      %3603 = vmatmul.mubr.f32.gmra.mrb[0].mxu0 %v3512
      %v3604 = vpop.f32.mrb[0].mxu0
      %v3605 = vadd.f32 0.0, %v3604
      %v3606 = vpop.f32.mrb[0].mxu0
      %v3607 = vadd.f32 0.0, %v3606
      %3608 = vmatprep.mubr.f32.mxu0 0.0
      %3609 = vmatmul.mubr.f32.gmra.mrb[0].mxu0 %v3515
      %v3610 = vpop.f32.mrb[0].mxu0
      %v3611 = vadd.f32 0.0, %v3610
      %v3612 = vpop.f32.mrb[0].mxu0
      %v3613 = vadd.f32 0.0, %v3612
      %3614 = vmatprep.mubr.f32.mxu0 0.0
      %3615 = vmatmul.mubr.f32.gmra.mrb[0].mxu0 %v3518
      %v3616 = vpop.f32.mrb[0].mxu0
      %v3617 = vadd.f32 0.0, %v3616
      %v3618 = vpop.f32.mrb[0].mxu0
      %v3619 = vadd.f32 0.0, %v3618
      %3620 = vmatprep.mubr.f32.mxu0 0.0
      %3621 = vmatmul.mubr.f32.gmra.mrb[0].mxu0 %v3521
      %v3622 = vpop.f32.mrb[0].mxu0
      %v3623 = vadd.f32 0.0, %v3622
      %v3624 = vpop.f32.mrb[0].mxu0
      %v3625 = vadd.f32 0.0, %v3624
      %3626 = vmatprep.mubr.f32.mxu0 0.0
      %3627 = vmatmul.mubr.f32.gmra.mrb[0].mxu0 %v3524
      %v3628 = vpop.f32.mrb[0].mxu0
      %v3629 = vadd.f32 0.0, %v3628
      %v3630 = vpop.f32.mrb[0].mxu0
      %v3631 = vadd.f32 0.0, %v3630
      %3632 = vmatprep.mubr.f32.mxu0 0.0
      %3633 = vmatmul.mubr.f32.gmra.mrb[0].mxu0 %v3527
      %v3634 = vpop.f32.mrb[0].mxu0
      %v3635 = vadd.f32 0.0, %v3634
      %v3636 = vpop.f32.mrb[0].mxu0
      %v3637 = vadd.f32 0.0, %v3636
      %3638 = vmatprep.mubr.f32.mxu0 0.0
      %3639 = vmatmul.mubr.f32.gmra.mrb[0].mxu0 %v3530
      %v3640 = vpop.f32.mrb[0].mxu0
      %v3641 = vadd.f32 0.0, %v3640
      %v3642 = vpop.f32.mrb[0].mxu0
      %v3643 = vadd.f32 0.0, %v3642
      %3644 = vdwg.mxu0
      %3645 = vmatprep.subr.mxu0 0.0
      %3646 = vmatpush1.msra.mxu0 %v1944
      %3647 = vmatprep.subr.mxu0 0.0
      %3648 = vmatpush1.msra.mxu0 %v1948
      %3649 = vmatprep.subr.mxu0 0.0
      %3650 = vmatpush1.msra.mxu0 %v1952
      %3651 = vmatprep.subr.mxu0 0.0
      %3652 = vmatpush1.msra.mxu0 %v1956
      %3653 = vmatprep.subr.mxu0 0.0
      %3654 = vmatpush1.msra.mxu0 %v1960
      %3655 = vmatprep.subr.mxu0 0.0
      %3656 = vmatpush1.msra.mxu0 %v1964
      %3657 = vmatprep.subr.mxu0 0.0
      %3658 = vmatpush1.msra.mxu0 %v1968
      %3659 = vmatprep.subr.mxu0 0.0
      %3660 = vmatpush1.msra.mxu0 %v1972
      %3661 = vmatprep.subr.mxu0 0.0
      %3662 = vmatpush1.msra.mxu0 0.0
      %3663 = vmatprep.subr.mxu0 0.0
      %3664 = vmatpush1.msra.mxu0 0.0
      %3665 = vmatprep.subr.mxu0 0.0
      %3666 = vmatpush1.msra.mxu0 0.0
      %3667 = vmatprep.subr.mxu0 0.0
      %3668 = vmatpush1.msra.mxu0 0.0
      %3669 = vmatprep.subr.mxu0 0.0
      %3670 = vmatpush1.msra.mxu0 0.0
      %3671 = vmatprep.subr.mxu0 0.0
      %3672 = vmatpush1.msra.mxu0 0.0
      %3673 = vmatprep.subr.mxu0 0.0
      %3674 = vmatpush1.msra.mxu0 0.0
      %3675 = vmatprep.subr.mxu0 0.0
      %3676 = vmatpush1.msra.mxu0 0.0
      %3677 = vmatprep.subr.mxu0 0.0
      %3678 = vmatpush1.msra.mxu0 0.0
      %3679 = vmatprep.subr.mxu0 0.0
      %3680 = vmatpush1.msra.mxu0 0.0
      %3681 = vmatprep.subr.mxu0 0.0
      %3682 = vmatpush1.msra.mxu0 0.0
      %3683 = vmatprep.subr.mxu0 0.0
      %3684 = vmatpush1.msra.mxu0 0.0
      %3685 = vmatprep.subr.mxu0 0.0
      %3686 = vmatpush1.msra.mxu0 0.0
      %3687 = vmatprep.subr.mxu0 0.0
      %3688 = vmatpush1.msra.mxu0 0.0
      %3689 = vmatprep.subr.mxu0 0.0
      %3690 = vmatpush1.msra.mxu0 0.0
      %3691 = vmatprep.subr.mxu0 0.0
      %3692 = vmatpush1.msra.mxu0 0.0
      %3693 = vmatprep.subr.mxu0 0.0
      %3694 = vmatpush1.msra.mxu0 0.0
      %3695 = vmatprep.subr.mxu0 0.0
      %3696 = vmatpush1.msra.mxu0 0.0
      %3697 = vmatprep.subr.mxu0 0.0
      %3698 = vmatpush1.msra.mxu0 0.0
      %3699 = vmatprep.subr.mxu0 0.0
      %3700 = vmatpush1.msra.mxu0 0.0
      %3701 = vmatprep.subr.mxu0 0.0
      %3702 = vmatpush1.msra.mxu0 0.0
      %3703 = vmatprep.subr.mxu0 0.0
      %3704 = vmatpush1.msra.mxu0 0.0
      %3705 = vmatprep.subr.mxu0 0.0
      %3706 = vmatpush1.msra.mxu0 0.0
      %3707 = vmatprep.subr.mxu0 0.0
      %3708 = vmatpush1.msra.mxu0 0.0
      %3709 = vmatprep.mubr.f32.mxu0 0.0
      %3710 = vmatmul.mubr.f32.gmra.mrb[0].mxu0 %v3509
      %v3711 = vpop.f32.mrb[0].mxu0
      %v3712 = vadd.f32 0.0, %v3711
      %v3713 = vpop.f32.mrb[0].mxu0
      %3714 = vmatprep.mubr.f32.mxu0 0.0
      %3715 = vmatmul.mubr.f32.gmra.mrb[0].mxu0 %v3512
      %v3716 = vpop.f32.mrb[0].mxu0
      %v3717 = vadd.f32 0.0, %v3716
      %v3718 = vpop.f32.mrb[0].mxu0
      %3719 = vmatprep.mubr.f32.mxu0 0.0
      %3720 = vmatmul.mubr.f32.gmra.mrb[0].mxu0 %v3515
      %v3721 = vpop.f32.mrb[0].mxu0
      %v3722 = vadd.f32 0.0, %v3721
      %v3723 = vpop.f32.mrb[0].mxu0
      %3724 = vmatprep.mubr.f32.mxu0 0.0
      %3725 = vmatmul.mubr.f32.gmra.mrb[0].mxu0 %v3518
      %v3726 = vpop.f32.mrb[0].mxu0
      %v3727 = vadd.f32 0.0, %v3726
      %v3728 = vpop.f32.mrb[0].mxu0
      %3729 = vmatprep.mubr.f32.mxu0 0.0
      %3730 = vmatmul.mubr.f32.gmra.mrb[0].mxu0 %v3521
      %v3731 = vpop.f32.mrb[0].mxu0
      %v3732 = vadd.f32 0.0, %v3731
      %v3733 = vpop.f32.mrb[0].mxu0
      %3734 = vmatprep.mubr.f32.mxu0 0.0
      %3735 = vmatmul.mubr.f32.gmra.mrb[0].mxu0 %v3524
      %v3736 = vpop.f32.mrb[0].mxu0
      %v3737 = vadd.f32 0.0, %v3736
      %v3738 = vpop.f32.mrb[0].mxu0
      %3739 = vmatprep.mubr.f32.mxu0 0.0
      %3740 = vmatmul.mubr.f32.gmra.mrb[0].mxu0 %v3527
      %v3741 = vpop.f32.mrb[0].mxu0
      %v3742 = vadd.f32 0.0, %v3741
      %v3743 = vpop.f32.mrb[0].mxu0
      %3744 = vmatprep.mubr.f32.mxu0 0.0
      %3745 = vmatmul.mubr.f32.gmra.mrb[0].mxu0 %v3530
      %v3746 = vpop.f32.mrb[0].mxu0
      %v3747 = vadd.f32 0.0, %v3746
      %v3748 = vpop.f32.mrb[0].mxu0
      %3749 = vdwg.mxu0
      %v3750 = vadd.f32 %v3475, %v3599
      %v3751 = vadd.f32 %v3476, %v3601
      %v3752 = vadd.f32 %v3477, %v3712
      %v3753 = vadd.f32 %v3478, %v3605
      %v3754 = vadd.f32 %v3479, %v3607
      %v3755 = vadd.f32 %v3480, %v3717
      %v3756 = vadd.f32 %v3481, %v3611
      %v3757 = vadd.f32 %v3482, %v3613
      %v3758 = vadd.f32 %v3483, %v3722
      %v3759 = vadd.f32 %v3484, %v3617
      %v3760 = vadd.f32 %v3485, %v3619
      %v3761 = vadd.f32 %v3486, %v3727
      %v3762 = vadd.f32 %v3487, %v3623
      %v3763 = vadd.f32 %v3488, %v3625
      %v3764 = vadd.f32 %v3489, %v3732
      %v3765 = vadd.f32 %v3490, %v3629
      %v3766 = vadd.f32 %v3491, %v3631
      %v3767 = vadd.f32 %v3492, %v3737
      %v3768 = vadd.f32 %v3493, %v3635
      %v3769 = vadd.f32 %v3494, %v3637
      %v3770 = vadd.f32 %v3495, %v3742
      %v3771 = vadd.f32 %v3496, %v3641
      %v3772 = vadd.f32 %v3497, %v3643
      %v3773 = vadd.f32 %v3498, %v3747
      %s3774 = scalar_lea.vmem %s4, 320
      %v3775 = vld [vmem:[%s3774] sm:$0xff]
      %v3776 = vld [vmem:[%s3774 + $0x8] sm:$0xff]
      %v3777 = vld [vmem:[%s3774 + $0x10] sm:$0xff]
      %v3778 = vld [vmem:[%s3774 + $0x18] sm:$0xff]
      %v3779 = vld [vmem:[%s3774 + $0x20] sm:$0xff]
      %v3780 = vld [vmem:[%s3774 + $0x28] sm:$0xff]
      %v3781 = vld [vmem:[%s3774 + $0x30] sm:$0xff]
      %v3782 = vld [vmem:[%s3774 + $0x38] sm:$0xff]
      %v3783 = vld [vmem:[#allocation2 + $0x8] sm:$0xff]
      %v3784 = vld [vmem:[#allocation2 + $0x10] sm:$0xff]
      %v3785 = vld [vmem:[#allocation2 + $0x18] sm:$0xff]
      %v3786 = vld [vmem:[#allocation2 + $0x20] sm:$0xff]
      %v3787 = vld [vmem:[#allocation2 + $0x30] sm:$0xff]
      %v3788 = vld [vmem:[#allocation2 + $0x38] sm:$0xff]
      %v3789 = vld [vmem:[#allocation2 + $0x40] sm:$0xff]
      %v3790 = vld [vmem:[#allocation2 + $0x48] sm:$0xff]
      %v3791 = vld [vmem:[#allocation2 + $0x58] sm:$0xff]
      %v3792 = vld [vmem:[#allocation2 + $0x60] sm:$0xff]
      %v3793 = vld [vmem:[#allocation2 + $0x68] sm:$0xff]
      %v3794 = vld [vmem:[#allocation2 + $0x70] sm:$0xff]
      %v3795 = vld [vmem:[#allocation2 + $0x80] sm:$0xff]
      %v3796 = vld [vmem:[#allocation2 + $0x88] sm:$0xff]
      %v3797 = vld [vmem:[#allocation2 + $0x90] sm:$0xff]
      %v3798 = vld [vmem:[#allocation2 + $0x98] sm:$0xff]
      %v3799 = vld [vmem:[#allocation2 + $0xa8] sm:$0xff]
      %v3800 = vld [vmem:[#allocation2 + $0xb0] sm:$0xff]
      %v3801 = vld [vmem:[#allocation2 + $0xb8] sm:$0xff]
      %v3802 = vld [vmem:[#allocation2 + $0xc0] sm:$0xff]
      %v3803 = vld [vmem:[#allocation2 + $0xd0] sm:$0xff]
      %v3804 = vld [vmem:[#allocation2 + $0xd8] sm:$0xff]
      %v3805 = vld [vmem:[#allocation2 + $0xe0] sm:$0xff]
      %v3806 = vld [vmem:[#allocation2 + $0xe8] sm:$0xff]
      %v3807 = vld [vmem:[#allocation2 + $0xf8] sm:$0xff]
      %v3808 = vld [vmem:[#allocation2 + $0x100] sm:$0xff]
      %v3809 = vld [vmem:[#allocation2 + $0x108] sm:$0xff]
      %v3810 = vld [vmem:[#allocation2 + $0x110] sm:$0xff]
      %v3811 = vld [vmem:[#allocation2 + $0x120] sm:$0xff]
      %v3812 = vld [vmem:[#allocation2 + $0x128] sm:$0xff]
      %v3813 = vld [vmem:[#allocation2 + $0x130] sm:$0xff]
      %v3814 = vld [vmem:[#allocation2 + $0x138] sm:$0xff]
      %3847 = vrot.lane.b32.xlu0 %v3783, 127
      %v3848 = vpop.permute.xlu0 %3847
      %3849 = vrot.lane.b32.xlu0 %v3784, 127
      %v3850 = vpop.permute.xlu0 %3849
      %3851 = vrot.lane.b32.xlu0 %v3785, 127
      %v3852 = vpop.permute.xlu0 %3851
      %3853 = vrot.lane.b32.xlu0 %v3786, 127
      %v3854 = vpop.permute.xlu0 %3853
      %3855 = vrot.lane.b32.xlu0 %v3787, 127
      %v3856 = vpop.permute.xlu0 %3855
      %3857 = vrot.lane.b32.xlu0 %v3788, 127
      %v3858 = vpop.permute.xlu0 %3857
      %3859 = vrot.lane.b32.xlu0 %v3789, 127
      %v3860 = vpop.permute.xlu0 %3859
      %3861 = vrot.lane.b32.xlu0 %v3790, 127
      %v3862 = vpop.permute.xlu0 %3861
      %3863 = vrot.lane.b32.xlu0 %v3791, 127
      %v3864 = vpop.permute.xlu0 %3863
      %3865 = vrot.lane.b32.xlu0 %v3792, 127
      %v3866 = vpop.permute.xlu0 %3865
      %3867 = vrot.lane.b32.xlu0 %v3793, 127
      %v3868 = vpop.permute.xlu0 %3867
      %3869 = vrot.lane.b32.xlu0 %v3794, 127
      %v3870 = vpop.permute.xlu0 %3869
      %3871 = vrot.lane.b32.xlu0 %v3795, 127
      %v3872 = vpop.permute.xlu0 %3871
      %3873 = vrot.lane.b32.xlu0 %v3796, 127
      %v3874 = vpop.permute.xlu0 %3873
      %3875 = vrot.lane.b32.xlu0 %v3797, 127
      %v3876 = vpop.permute.xlu0 %3875
      %3877 = vrot.lane.b32.xlu0 %v3798, 127
      %v3878 = vpop.permute.xlu0 %3877
      %3879 = vrot.lane.b32.xlu0 %v3799, 127
      %v3880 = vpop.permute.xlu0 %3879
      %3881 = vrot.lane.b32.xlu0 %v3800, 127
      %v3882 = vpop.permute.xlu0 %3881
      %3883 = vrot.lane.b32.xlu0 %v3801, 127
      %v3884 = vpop.permute.xlu0 %3883
      %3885 = vrot.lane.b32.xlu0 %v3802, 127
      %v3886 = vpop.permute.xlu0 %3885
      %3887 = vrot.lane.b32.xlu0 %v3803, 127
      %v3888 = vpop.permute.xlu0 %3887
      %3889 = vrot.lane.b32.xlu0 %v3804, 127
      %v3890 = vpop.permute.xlu0 %3889
      %3891 = vrot.lane.b32.xlu0 %v3805, 127
      %v3892 = vpop.permute.xlu0 %3891
      %3893 = vrot.lane.b32.xlu0 %v3806, 127
      %v3894 = vpop.permute.xlu0 %3893
      %3895 = vrot.lane.b32.xlu0 %v3807, 127
      %v3896 = vpop.permute.xlu0 %3895
      %3897 = vrot.lane.b32.xlu0 %v3808, 127
      %v3898 = vpop.permute.xlu0 %3897
      %3899 = vrot.lane.b32.xlu0 %v3809, 127
      %v3900 = vpop.permute.xlu0 %3899
      %3901 = vrot.lane.b32.xlu0 %v3810, 127
      %v3902 = vpop.permute.xlu0 %3901
      %3903 = vrot.lane.b32.xlu0 %v3811, 127
      %v3904 = vpop.permute.xlu0 %3903
      %3905 = vrot.lane.b32.xlu0 %v3812, 127
      %v3906 = vpop.permute.xlu0 %3905
      %3907 = vrot.lane.b32.xlu0 %v3813, 127
      %v3908 = vpop.permute.xlu0 %3907
      %3909 = vrot.lane.b32.xlu0 %v3814, 127
      %v3910 = vpop.permute.xlu0 %3909
      %v3911 = vsel %vm323, %v3848, %v3850
      %v3912 = vsel %vm323, %v3850, %v3852
      %v3913 = vsel %vm323, %v3852, %v3854
      %v3914 = vsel %vm323, %v3856, %v3858
      %v3915 = vsel %vm323, %v3858, %v3860
      %v3916 = vsel %vm323, %v3860, %v3862
      %v3917 = vsel %vm323, %v3864, %v3866
      %v3918 = vsel %vm323, %v3866, %v3868
      %v3919 = vsel %vm323, %v3868, %v3870
      %v3920 = vsel %vm323, %v3872, %v3874
      %v3921 = vsel %vm323, %v3874, %v3876
      %v3922 = vsel %vm323, %v3876, %v3878
      %v3923 = vsel %vm323, %v3880, %v3882
      %v3924 = vsel %vm323, %v3882, %v3884
      %v3925 = vsel %vm323, %v3884, %v3886
      %v3926 = vsel %vm323, %v3888, %v3890
      %v3927 = vsel %vm323, %v3890, %v3892
      %v3928 = vsel %vm323, %v3892, %v3894
      %v3929 = vsel %vm323, %v3896, %v3898
      %v3930 = vsel %vm323, %v3898, %v3900
      %v3931 = vsel %vm323, %v3900, %v3902
      %v3932 = vsel %vm323, %v3904, %v3906
      %v3933 = vsel %vm323, %v3906, %v3908
      %v3934 = vsel %vm323, %v3908, %v3910
      %v3960 = vsel %vm2127, %v3775, 0
      %v3963 = vsel %vm2127, %v3776, 0
      %v3966 = vsel %vm2127, %v3777, 0
      %v3969 = vsel %vm2127, %v3778, 0
      %v3972 = vsel %vm2127, %v3779, 0
      %v3975 = vsel %vm2127, %v3780, 0
      %v3978 = vsel %vm2127, %v3781, 0
      %v3981 = vsel %vm2127, %v3782, 0
      %3983 = vmatprep.subr.mxu0 %v3912
      %3984 = vmatpush1.msra.mxu0 %v3911
      %3985 = vmatprep.subr.mxu0 %v3915
      %3986 = vmatpush1.msra.mxu0 %v3914
      %3987 = vmatprep.subr.mxu0 %v3918
      %3988 = vmatpush1.msra.mxu0 %v3917
      %3989 = vmatprep.subr.mxu0 %v3921
      %3990 = vmatpush1.msra.mxu0 %v3920
      %3991 = vmatprep.subr.mxu0 %v3924
      %3992 = vmatpush1.msra.mxu0 %v3923
      %3993 = vmatprep.subr.mxu0 %v3927
      %3994 = vmatpush1.msra.mxu0 %v3926
      %3995 = vmatprep.subr.mxu0 %v3930
      %3996 = vmatpush1.msra.mxu0 %v3929
      %3997 = vmatprep.subr.mxu0 %v3933
      %3998 = vmatpush1.msra.mxu0 %v3932
      %3999 = vmatprep.subr.mxu0 0.0
      %4000 = vmatpush1.msra.mxu0 0.0
      %4001 = vmatprep.subr.mxu0 0.0
      %4002 = vmatpush1.msra.mxu0 0.0
      %4003 = vmatprep.subr.mxu0 0.0
      %4004 = vmatpush1.msra.mxu0 0.0
      %4005 = vmatprep.subr.mxu0 0.0
      %4006 = vmatpush1.msra.mxu0 0.0
      %4007 = vmatprep.subr.mxu0 0.0
      %4008 = vmatpush1.msra.mxu0 0.0
      %4009 = vmatprep.subr.mxu0 0.0
      %4010 = vmatpush1.msra.mxu0 0.0
      %4011 = vmatprep.subr.mxu0 0.0
      %4012 = vmatpush1.msra.mxu0 0.0
      %4013 = vmatprep.subr.mxu0 0.0
      %4014 = vmatpush1.msra.mxu0 0.0
      %4015 = vmatprep.subr.mxu0 0.0
      %4016 = vmatpush1.msra.mxu0 0.0
      %4017 = vmatprep.subr.mxu0 0.0
      %4018 = vmatpush1.msra.mxu0 0.0
      %4019 = vmatprep.subr.mxu0 0.0
      %4020 = vmatpush1.msra.mxu0 0.0
      %4021 = vmatprep.subr.mxu0 0.0
      %4022 = vmatpush1.msra.mxu0 0.0
      %4023 = vmatprep.subr.mxu0 0.0
      %4024 = vmatpush1.msra.mxu0 0.0
      %4025 = vmatprep.subr.mxu0 0.0
      %4026 = vmatpush1.msra.mxu0 0.0
      %4027 = vmatprep.subr.mxu0 0.0
      %4028 = vmatpush1.msra.mxu0 0.0
      %4029 = vmatprep.subr.mxu0 0.0
      %4030 = vmatpush1.msra.mxu0 0.0
      %4031 = vmatprep.subr.mxu0 0.0
      %4032 = vmatpush1.msra.mxu0 0.0
      %4033 = vmatprep.subr.mxu0 0.0
      %4034 = vmatpush1.msra.mxu0 0.0
      %4035 = vmatprep.subr.mxu0 0.0
      %4036 = vmatpush1.msra.mxu0 0.0
      %4037 = vmatprep.subr.mxu0 0.0
      %4038 = vmatpush1.msra.mxu0 0.0
      %4039 = vmatprep.subr.mxu0 0.0
      %4040 = vmatpush1.msra.mxu0 0.0
      %4041 = vmatprep.subr.mxu0 0.0
      %4042 = vmatpush1.msra.mxu0 0.0
      %4043 = vmatprep.subr.mxu0 0.0
      %4044 = vmatpush1.msra.mxu0 0.0
      %4045 = vmatprep.subr.mxu0 0.0
      %4046 = vmatpush1.msra.mxu0 0.0
      %4047 = vmatprep.mubr.f32.mxu0 0.0
      %4048 = vmatmul.mubr.f32.gmra.mrb[0].mxu0 %v3960
      %v4049 = vpop.f32.mrb[0].mxu0
      %v4050 = vadd.f32 0.0, %v4049
      %v4051 = vpop.f32.mrb[0].mxu0
      %v4052 = vadd.f32 0.0, %v4051
      %4053 = vmatprep.mubr.f32.mxu0 0.0
      %4054 = vmatmul.mubr.f32.gmra.mrb[0].mxu0 %v3963
      %v4055 = vpop.f32.mrb[0].mxu0
      %v4056 = vadd.f32 0.0, %v4055
      %v4057 = vpop.f32.mrb[0].mxu0
      %v4058 = vadd.f32 0.0, %v4057
      %4059 = vmatprep.mubr.f32.mxu0 0.0
      %4060 = vmatmul.mubr.f32.gmra.mrb[0].mxu0 %v3966
      %v4061 = vpop.f32.mrb[0].mxu0
      %v4062 = vadd.f32 0.0, %v4061
      %v4063 = vpop.f32.mrb[0].mxu0
      %v4064 = vadd.f32 0.0, %v4063
      %4065 = vmatprep.mubr.f32.mxu0 0.0
      %4066 = vmatmul.mubr.f32.gmra.mrb[0].mxu0 %v3969
      %v4067 = vpop.f32.mrb[0].mxu0
      %v4068 = vadd.f32 0.0, %v4067
      %v4069 = vpop.f32.mrb[0].mxu0
      %v4070 = vadd.f32 0.0, %v4069
      %4071 = vmatprep.mubr.f32.mxu0 0.0
      %4072 = vmatmul.mubr.f32.gmra.mrb[0].mxu0 %v3972
      %v4073 = vpop.f32.mrb[0].mxu0
      %v4074 = vadd.f32 0.0, %v4073
      %v4075 = vpop.f32.mrb[0].mxu0
      %v4076 = vadd.f32 0.0, %v4075
      %4077 = vmatprep.mubr.f32.mxu0 0.0
      %4078 = vmatmul.mubr.f32.gmra.mrb[0].mxu0 %v3975
      %v4079 = vpop.f32.mrb[0].mxu0
      %v4080 = vadd.f32 0.0, %v4079
      %v4081 = vpop.f32.mrb[0].mxu0
      %v4082 = vadd.f32 0.0, %v4081
      %4083 = vmatprep.mubr.f32.mxu0 0.0
      %4084 = vmatmul.mubr.f32.gmra.mrb[0].mxu0 %v3978
      %v4085 = vpop.f32.mrb[0].mxu0
      %v4086 = vadd.f32 0.0, %v4085
      %v4087 = vpop.f32.mrb[0].mxu0
      %v4088 = vadd.f32 0.0, %v4087
      %4089 = vmatprep.mubr.f32.mxu0 0.0
      %4090 = vmatmul.mubr.f32.gmra.mrb[0].mxu0 %v3981
      %v4091 = vpop.f32.mrb[0].mxu0
      %v4092 = vadd.f32 0.0, %v4091
      %v4093 = vpop.f32.mrb[0].mxu0
      %v4094 = vadd.f32 0.0, %v4093
      %4095 = vdwg.mxu0
      %4096 = vmatprep.subr.mxu0 0.0
      %4097 = vmatpush1.msra.mxu0 %v3913
      %4098 = vmatprep.subr.mxu0 0.0
      %4099 = vmatpush1.msra.mxu0 %v3916
      %4100 = vmatprep.subr.mxu0 0.0
      %4101 = vmatpush1.msra.mxu0 %v3919
      %4102 = vmatprep.subr.mxu0 0.0
      %4103 = vmatpush1.msra.mxu0 %v3922
      %4104 = vmatprep.subr.mxu0 0.0
      %4105 = vmatpush1.msra.mxu0 %v3925
      %4106 = vmatprep.subr.mxu0 0.0
      %4107 = vmatpush1.msra.mxu0 %v3928
      %4108 = vmatprep.subr.mxu0 0.0
      %4109 = vmatpush1.msra.mxu0 %v3931
      %4110 = vmatprep.subr.mxu0 0.0
      %4111 = vmatpush1.msra.mxu0 %v3934
      %4112 = vmatprep.subr.mxu0 0.0
      %4113 = vmatpush1.msra.mxu0 0.0
      %4114 = vmatprep.subr.mxu0 0.0
      %4115 = vmatpush1.msra.mxu0 0.0
      %4116 = vmatprep.subr.mxu0 0.0
      %4117 = vmatpush1.msra.mxu0 0.0
      %4118 = vmatprep.subr.mxu0 0.0
      %4119 = vmatpush1.msra.mxu0 0.0
      %4120 = vmatprep.subr.mxu0 0.0
      %4121 = vmatpush1.msra.mxu0 0.0
      %4122 = vmatprep.subr.mxu0 0.0
      %4123 = vmatpush1.msra.mxu0 0.0
      %4124 = vmatprep.subr.mxu0 0.0
      %4125 = vmatpush1.msra.mxu0 0.0
      %4126 = vmatprep.subr.mxu0 0.0
      %4127 = vmatpush1.msra.mxu0 0.0
      %4128 = vmatprep.subr.mxu0 0.0
      %4129 = vmatpush1.msra.mxu0 0.0
      %4130 = vmatprep.subr.mxu0 0.0
      %4131 = vmatpush1.msra.mxu0 0.0
      %4132 = vmatprep.subr.mxu0 0.0
      %4133 = vmatpush1.msra.mxu0 0.0
      %4134 = vmatprep.subr.mxu0 0.0
      %4135 = vmatpush1.msra.mxu0 0.0
      %4136 = vmatprep.subr.mxu0 0.0
      %4137 = vmatpush1.msra.mxu0 0.0
      %4138 = vmatprep.subr.mxu0 0.0
      %4139 = vmatpush1.msra.mxu0 0.0
      %4140 = vmatprep.subr.mxu0 0.0
      %4141 = vmatpush1.msra.mxu0 0.0
      %4142 = vmatprep.subr.mxu0 0.0
      %4143 = vmatpush1.msra.mxu0 0.0
      %4144 = vmatprep.subr.mxu0 0.0
      %4145 = vmatpush1.msra.mxu0 0.0
      %4146 = vmatprep.subr.mxu0 0.0
      %4147 = vmatpush1.msra.mxu0 0.0
      %4148 = vmatprep.subr.mxu0 0.0
      %4149 = vmatpush1.msra.mxu0 0.0
      %4150 = vmatprep.subr.mxu0 0.0
      %4151 = vmatpush1.msra.mxu0 0.0
      %4152 = vmatprep.subr.mxu0 0.0
      %4153 = vmatpush1.msra.mxu0 0.0
      %4154 = vmatprep.subr.mxu0 0.0
      %4155 = vmatpush1.msra.mxu0 0.0
      %4156 = vmatprep.subr.mxu0 0.0
      %4157 = vmatpush1.msra.mxu0 0.0
      %4158 = vmatprep.subr.mxu0 0.0
      %4159 = vmatpush1.msra.mxu0 0.0
      %4160 = vmatprep.mubr.f32.mxu0 0.0
      %4161 = vmatmul.mubr.f32.gmra.mrb[0].mxu0 %v3960
      %v4162 = vpop.f32.mrb[0].mxu0
      %v4163 = vadd.f32 0.0, %v4162
      %v4164 = vpop.f32.mrb[0].mxu0
      %4165 = vmatprep.mubr.f32.mxu0 0.0
      %4166 = vmatmul.mubr.f32.gmra.mrb[0].mxu0 %v3963
      %v4167 = vpop.f32.mrb[0].mxu0
      %v4168 = vadd.f32 0.0, %v4167
      %v4169 = vpop.f32.mrb[0].mxu0
      %4170 = vmatprep.mubr.f32.mxu0 0.0
      %4171 = vmatmul.mubr.f32.gmra.mrb[0].mxu0 %v3966
      %v4172 = vpop.f32.mrb[0].mxu0
      %v4173 = vadd.f32 0.0, %v4172
      %v4174 = vpop.f32.mrb[0].mxu0
      %4175 = vmatprep.mubr.f32.mxu0 0.0
      %4176 = vmatmul.mubr.f32.gmra.mrb[0].mxu0 %v3969
      %v4177 = vpop.f32.mrb[0].mxu0
      %v4178 = vadd.f32 0.0, %v4177
      %v4179 = vpop.f32.mrb[0].mxu0
      %4180 = vmatprep.mubr.f32.mxu0 0.0
      %4181 = vmatmul.mubr.f32.gmra.mrb[0].mxu0 %v3972
      %v4182 = vpop.f32.mrb[0].mxu0
      %v4183 = vadd.f32 0.0, %v4182
      %v4184 = vpop.f32.mrb[0].mxu0
      %4185 = vmatprep.mubr.f32.mxu0 0.0
      %4186 = vmatmul.mubr.f32.gmra.mrb[0].mxu0 %v3975
      %v4187 = vpop.f32.mrb[0].mxu0
      %v4188 = vadd.f32 0.0, %v4187
      %v4189 = vpop.f32.mrb[0].mxu0
      %4190 = vmatprep.mubr.f32.mxu0 0.0
      %4191 = vmatmul.mubr.f32.gmra.mrb[0].mxu0 %v3978
      %v4192 = vpop.f32.mrb[0].mxu0
      %v4193 = vadd.f32 0.0, %v4192
      %v4194 = vpop.f32.mrb[0].mxu0
      %4195 = vmatprep.mubr.f32.mxu0 0.0
      %4196 = vmatmul.mubr.f32.gmra.mrb[0].mxu0 %v3981
      %v4197 = vpop.f32.mrb[0].mxu0
      %v4198 = vadd.f32 0.0, %v4197
      %v4199 = vpop.f32.mrb[0].mxu0
      %4200 = vdwg.mxu0
      %v4201 = vadd.f32 %v3750, %v4050
      %v4202 = vadd.f32 %v3751, %v4052
      %v4203 = vadd.f32 %v3752, %v4163
      %v4204 = vadd.f32 %v3753, %v4056
      %v4205 = vadd.f32 %v3754, %v4058
      %v4206 = vadd.f32 %v3755, %v4168
      %v4207 = vadd.f32 %v3756, %v4062
      %v4208 = vadd.f32 %v3757, %v4064
      %v4209 = vadd.f32 %v3758, %v4173
      %v4210 = vadd.f32 %v3759, %v4068
      %v4211 = vadd.f32 %v3760, %v4070
      %v4212 = vadd.f32 %v3761, %v4178
      %v4213 = vadd.f32 %v3762, %v4074
      %v4214 = vadd.f32 %v3763, %v4076
      %v4215 = vadd.f32 %v3764, %v4183
      %v4216 = vadd.f32 %v3765, %v4080
      %v4217 = vadd.f32 %v3766, %v4082
      %v4218 = vadd.f32 %v3767, %v4188
      %v4219 = vadd.f32 %v3768, %v4086
      %v4220 = vadd.f32 %v3769, %v4088
      %v4221 = vadd.f32 %v3770, %v4193
      %v4222 = vadd.f32 %v3771, %v4092
      %v4223 = vadd.f32 %v3772, %v4094
      %v4224 = vadd.f32 %v3773, %v4198
      %s4225 = scalar_lea.vmem %s4, 384
      %v4226 = vld [vmem:[%s4225] sm:$0xff]
      %v4227 = vld [vmem:[%s4225 + $0x8] sm:$0xff]
      %v4228 = vld [vmem:[%s4225 + $0x10] sm:$0xff]
      %v4229 = vld [vmem:[%s4225 + $0x18] sm:$0xff]
      %v4230 = vld [vmem:[%s4225 + $0x20] sm:$0xff]
      %v4231 = vld [vmem:[%s4225 + $0x28] sm:$0xff]
      %v4232 = vld [vmem:[%s4225 + $0x30] sm:$0xff]
      %v4233 = vld [vmem:[%s4225 + $0x38] sm:$0xff]
      %4234 = vrot.lane.b32.xlu0 %v3783, 111
      %v4235 = vpop.permute.xlu0 %4234
      %4236 = vrot.lane.b32.xlu0 %v3784, 111
      %v4237 = vpop.permute.xlu0 %4236
      %4238 = vrot.lane.b32.xlu0 %v3785, 111
      %v4239 = vpop.permute.xlu0 %4238
      %4240 = vrot.lane.b32.xlu0 %v3786, 111
      %v4241 = vpop.permute.xlu0 %4240
      %4242 = vrot.lane.b32.xlu0 %v3787, 111
      %v4243 = vpop.permute.xlu0 %4242
      %4244 = vrot.lane.b32.xlu0 %v3788, 111
      %v4245 = vpop.permute.xlu0 %4244
      %4246 = vrot.lane.b32.xlu0 %v3789, 111
      %v4247 = vpop.permute.xlu0 %4246
      %4248 = vrot.lane.b32.xlu0 %v3790, 111
      %v4249 = vpop.permute.xlu0 %4248
      %4250 = vrot.lane.b32.xlu0 %v3791, 111
      %v4251 = vpop.permute.xlu0 %4250
      %4252 = vrot.lane.b32.xlu0 %v3792, 111
      %v4253 = vpop.permute.xlu0 %4252
      %4254 = vrot.lane.b32.xlu0 %v3793, 111
      %v4255 = vpop.permute.xlu0 %4254
      %4256 = vrot.lane.b32.xlu0 %v3794, 111
      %v4257 = vpop.permute.xlu0 %4256
      %4258 = vrot.lane.b32.xlu0 %v3795, 111
      %v4259 = vpop.permute.xlu0 %4258
      %4260 = vrot.lane.b32.xlu0 %v3796, 111
      %v4261 = vpop.permute.xlu0 %4260
      %4262 = vrot.lane.b32.xlu0 %v3797, 111
      %v4263 = vpop.permute.xlu0 %4262
      %4264 = vrot.lane.b32.xlu0 %v3798, 111
      %v4265 = vpop.permute.xlu0 %4264
      %4266 = vrot.lane.b32.xlu0 %v3799, 111
      %v4267 = vpop.permute.xlu0 %4266
      %4268 = vrot.lane.b32.xlu0 %v3800, 111
      %v4269 = vpop.permute.xlu0 %4268
      %4270 = vrot.lane.b32.xlu0 %v3801, 111
      %v4271 = vpop.permute.xlu0 %4270
      %4272 = vrot.lane.b32.xlu0 %v3802, 111
      %v4273 = vpop.permute.xlu0 %4272
      %4274 = vrot.lane.b32.xlu0 %v3803, 111
      %v4275 = vpop.permute.xlu0 %4274
      %4276 = vrot.lane.b32.xlu0 %v3804, 111
      %v4277 = vpop.permute.xlu0 %4276
      %4278 = vrot.lane.b32.xlu0 %v3805, 111
      %v4279 = vpop.permute.xlu0 %4278
      %4280 = vrot.lane.b32.xlu0 %v3806, 111
      %v4281 = vpop.permute.xlu0 %4280
      %4282 = vrot.lane.b32.xlu0 %v3807, 111
      %v4283 = vpop.permute.xlu0 %4282
      %4284 = vrot.lane.b32.xlu0 %v3808, 111
      %v4285 = vpop.permute.xlu0 %4284
      %4286 = vrot.lane.b32.xlu0 %v3809, 111
      %v4287 = vpop.permute.xlu0 %4286
      %4288 = vrot.lane.b32.xlu0 %v3810, 111
      %v4289 = vpop.permute.xlu0 %4288
      %4290 = vrot.lane.b32.xlu0 %v3811, 111
      %v4291 = vpop.permute.xlu0 %4290
      %4292 = vrot.lane.b32.xlu0 %v3812, 111
      %v4293 = vpop.permute.xlu0 %4292
      %4294 = vrot.lane.b32.xlu0 %v3813, 111
      %v4295 = vpop.permute.xlu0 %4294
      %4296 = vrot.lane.b32.xlu0 %v3814, 111
      %v4297 = vpop.permute.xlu0 %4296
      %v4298 = vsel %vm1215, %v4235, %v4237
      %v4299 = vsel %vm1215, %v4237, %v4239
      %v4300 = vsel %vm1215, %v4239, %v4241
      %v4301 = vsel %vm1215, %v4243, %v4245
      %v4302 = vsel %vm1215, %v4245, %v4247
      %v4303 = vsel %vm1215, %v4247, %v4249
      %v4304 = vsel %vm1215, %v4251, %v4253
      %v4305 = vsel %vm1215, %v4253, %v4255
      %v4306 = vsel %vm1215, %v4255, %v4257
      %v4307 = vsel %vm1215, %v4259, %v4261
      %v4308 = vsel %vm1215, %v4261, %v4263
      %v4309 = vsel %vm1215, %v4263, %v4265
      %v4310 = vsel %vm1215, %v4267, %v4269
      %v4311 = vsel %vm1215, %v4269, %v4271
      %v4312 = vsel %vm1215, %v4271, %v4273
      %v4313 = vsel %vm1215, %v4275, %v4277
      %v4314 = vsel %vm1215, %v4277, %v4279
      %v4315 = vsel %vm1215, %v4279, %v4281
      %v4316 = vsel %vm1215, %v4283, %v4285
      %v4317 = vsel %vm1215, %v4285, %v4287
      %v4318 = vsel %vm1215, %v4287, %v4289
      %v4319 = vsel %vm1215, %v4291, %v4293
      %v4320 = vsel %vm1215, %v4293, %v4295
      %v4321 = vsel %vm1215, %v4295, %v4297
      %v4347 = vsel %vm2127, %v4226, 0
      %v4350 = vsel %vm2127, %v4227, 0
      %v4353 = vsel %vm2127, %v4228, 0
      %v4356 = vsel %vm2127, %v4229, 0
      %v4359 = vsel %vm2127, %v4230, 0
      %v4362 = vsel %vm2127, %v4231, 0
      %v4365 = vsel %vm2127, %v4232, 0
      %v4368 = vsel %vm2127, %v4233, 0
      %4370 = vmatprep.subr.mxu0 %v4299
      %4371 = vmatpush1.msra.mxu0 %v4298
      %4372 = vmatprep.subr.mxu0 %v4302
      %4373 = vmatpush1.msra.mxu0 %v4301
      %4374 = vmatprep.subr.mxu0 %v4305
      %4375 = vmatpush1.msra.mxu0 %v4304
      %4376 = vmatprep.subr.mxu0 %v4308
      %4377 = vmatpush1.msra.mxu0 %v4307
      %4378 = vmatprep.subr.mxu0 %v4311
      %4379 = vmatpush1.msra.mxu0 %v4310
      %4380 = vmatprep.subr.mxu0 %v4314
      %4381 = vmatpush1.msra.mxu0 %v4313
      %4382 = vmatprep.subr.mxu0 %v4317
      %4383 = vmatpush1.msra.mxu0 %v4316
      %4384 = vmatprep.subr.mxu0 %v4320
      %4385 = vmatpush1.msra.mxu0 %v4319
      %4386 = vmatprep.subr.mxu0 0.0
      %4387 = vmatpush1.msra.mxu0 0.0
      %4388 = vmatprep.subr.mxu0 0.0
      %4389 = vmatpush1.msra.mxu0 0.0
      %4390 = vmatprep.subr.mxu0 0.0
      %4391 = vmatpush1.msra.mxu0 0.0
      %4392 = vmatprep.subr.mxu0 0.0
      %4393 = vmatpush1.msra.mxu0 0.0
      %4394 = vmatprep.subr.mxu0 0.0
      %4395 = vmatpush1.msra.mxu0 0.0
      %4396 = vmatprep.subr.mxu0 0.0
      %4397 = vmatpush1.msra.mxu0 0.0
      %4398 = vmatprep.subr.mxu0 0.0
      %4399 = vmatpush1.msra.mxu0 0.0
      %4400 = vmatprep.subr.mxu0 0.0
      %4401 = vmatpush1.msra.mxu0 0.0
      %4402 = vmatprep.subr.mxu0 0.0
      %4403 = vmatpush1.msra.mxu0 0.0
      %4404 = vmatprep.subr.mxu0 0.0
      %4405 = vmatpush1.msra.mxu0 0.0
      %4406 = vmatprep.subr.mxu0 0.0
      %4407 = vmatpush1.msra.mxu0 0.0
      %4408 = vmatprep.subr.mxu0 0.0
      %4409 = vmatpush1.msra.mxu0 0.0
      %4410 = vmatprep.subr.mxu0 0.0
      %4411 = vmatpush1.msra.mxu0 0.0
      %4412 = vmatprep.subr.mxu0 0.0
      %4413 = vmatpush1.msra.mxu0 0.0
      %4414 = vmatprep.subr.mxu0 0.0
      %4415 = vmatpush1.msra.mxu0 0.0
      %4416 = vmatprep.subr.mxu0 0.0
      %4417 = vmatpush1.msra.mxu0 0.0
      %4418 = vmatprep.subr.mxu0 0.0
      %4419 = vmatpush1.msra.mxu0 0.0
      %4420 = vmatprep.subr.mxu0 0.0
      %4421 = vmatpush1.msra.mxu0 0.0
      %4422 = vmatprep.subr.mxu0 0.0
      %4423 = vmatpush1.msra.mxu0 0.0
      %4424 = vmatprep.subr.mxu0 0.0
      %4425 = vmatpush1.msra.mxu0 0.0
      %4426 = vmatprep.subr.mxu0 0.0
      %4427 = vmatpush1.msra.mxu0 0.0
      %4428 = vmatprep.subr.mxu0 0.0
      %4429 = vmatpush1.msra.mxu0 0.0
      %4430 = vmatprep.subr.mxu0 0.0
      %4431 = vmatpush1.msra.mxu0 0.0
      %4432 = vmatprep.subr.mxu0 0.0
      %4433 = vmatpush1.msra.mxu0 0.0
      %4434 = vmatprep.mubr.f32.mxu0 0.0
      %4435 = vmatmul.mubr.f32.gmra.mrb[0].mxu0 %v4347
      %v4436 = vpop.f32.mrb[0].mxu0
      %v4437 = vadd.f32 0.0, %v4436
      %v4438 = vpop.f32.mrb[0].mxu0
      %v4439 = vadd.f32 0.0, %v4438
      %4440 = vmatprep.mubr.f32.mxu0 0.0
      %4441 = vmatmul.mubr.f32.gmra.mrb[0].mxu0 %v4350
      %v4442 = vpop.f32.mrb[0].mxu0
      %v4443 = vadd.f32 0.0, %v4442
      %v4444 = vpop.f32.mrb[0].mxu0
      %v4445 = vadd.f32 0.0, %v4444
      %4446 = vmatprep.mubr.f32.mxu0 0.0
      %4447 = vmatmul.mubr.f32.gmra.mrb[0].mxu0 %v4353
      %v4448 = vpop.f32.mrb[0].mxu0
      %v4449 = vadd.f32 0.0, %v4448
      %v4450 = vpop.f32.mrb[0].mxu0
      %v4451 = vadd.f32 0.0, %v4450
      %4452 = vmatprep.mubr.f32.mxu0 0.0
      %4453 = vmatmul.mubr.f32.gmra.mrb[0].mxu0 %v4356
      %v4454 = vpop.f32.mrb[0].mxu0
      %v4455 = vadd.f32 0.0, %v4454
      %v4456 = vpop.f32.mrb[0].mxu0
      %v4457 = vadd.f32 0.0, %v4456
      %4458 = vmatprep.mubr.f32.mxu0 0.0
      %4459 = vmatmul.mubr.f32.gmra.mrb[0].mxu0 %v4359
      %v4460 = vpop.f32.mrb[0].mxu0
      %v4461 = vadd.f32 0.0, %v4460
      %v4462 = vpop.f32.mrb[0].mxu0
      %v4463 = vadd.f32 0.0, %v4462
      %4464 = vmatprep.mubr.f32.mxu0 0.0
      %4465 = vmatmul.mubr.f32.gmra.mrb[0].mxu0 %v4362
      %v4466 = vpop.f32.mrb[0].mxu0
      %v4467 = vadd.f32 0.0, %v4466
      %v4468 = vpop.f32.mrb[0].mxu0
      %v4469 = vadd.f32 0.0, %v4468
      %4470 = vmatprep.mubr.f32.mxu0 0.0
      %4471 = vmatmul.mubr.f32.gmra.mrb[0].mxu0 %v4365
      %v4472 = vpop.f32.mrb[0].mxu0
      %v4473 = vadd.f32 0.0, %v4472
      %v4474 = vpop.f32.mrb[0].mxu0
      %v4475 = vadd.f32 0.0, %v4474
      %4476 = vmatprep.mubr.f32.mxu0 0.0
      %4477 = vmatmul.mubr.f32.gmra.mrb[0].mxu0 %v4368
      %v4478 = vpop.f32.mrb[0].mxu0
      %v4479 = vadd.f32 0.0, %v4478
      %v4480 = vpop.f32.mrb[0].mxu0
      %v4481 = vadd.f32 0.0, %v4480
      %4482 = vdwg.mxu0
      %4483 = vmatprep.subr.mxu0 0.0
      %4484 = vmatpush1.msra.mxu0 %v4300
      %4485 = vmatprep.subr.mxu0 0.0
      %4486 = vmatpush1.msra.mxu0 %v4303
      %4487 = vmatprep.subr.mxu0 0.0
      %4488 = vmatpush1.msra.mxu0 %v4306
      %4489 = vmatprep.subr.mxu0 0.0
      %4490 = vmatpush1.msra.mxu0 %v4309
      %4491 = vmatprep.subr.mxu0 0.0
      %4492 = vmatpush1.msra.mxu0 %v4312
      %4493 = vmatprep.subr.mxu0 0.0
      %4494 = vmatpush1.msra.mxu0 %v4315
      %4495 = vmatprep.subr.mxu0 0.0
      %4496 = vmatpush1.msra.mxu0 %v4318
      %4497 = vmatprep.subr.mxu0 0.0
      %4498 = vmatpush1.msra.mxu0 %v4321
      %4499 = vmatprep.subr.mxu0 0.0
      %4500 = vmatpush1.msra.mxu0 0.0
      %4501 = vmatprep.subr.mxu0 0.0
      %4502 = vmatpush1.msra.mxu0 0.0
      %4503 = vmatprep.subr.mxu0 0.0
      %4504 = vmatpush1.msra.mxu0 0.0
      %4505 = vmatprep.subr.mxu0 0.0
      %4506 = vmatpush1.msra.mxu0 0.0
      %4507 = vmatprep.subr.mxu0 0.0
      %4508 = vmatpush1.msra.mxu0 0.0
      %4509 = vmatprep.subr.mxu0 0.0
      %4510 = vmatpush1.msra.mxu0 0.0
      %4511 = vmatprep.subr.mxu0 0.0
      %4512 = vmatpush1.msra.mxu0 0.0
      %4513 = vmatprep.subr.mxu0 0.0
      %4514 = vmatpush1.msra.mxu0 0.0
      %4515 = vmatprep.subr.mxu0 0.0
      %4516 = vmatpush1.msra.mxu0 0.0
      %4517 = vmatprep.subr.mxu0 0.0
      %4518 = vmatpush1.msra.mxu0 0.0
      %4519 = vmatprep.subr.mxu0 0.0
      %4520 = vmatpush1.msra.mxu0 0.0
      %4521 = vmatprep.subr.mxu0 0.0
      %4522 = vmatpush1.msra.mxu0 0.0
      %4523 = vmatprep.subr.mxu0 0.0
      %4524 = vmatpush1.msra.mxu0 0.0
      %4525 = vmatprep.subr.mxu0 0.0
      %4526 = vmatpush1.msra.mxu0 0.0
      %4527 = vmatprep.subr.mxu0 0.0
      %4528 = vmatpush1.msra.mxu0 0.0
      %4529 = vmatprep.subr.mxu0 0.0
      %4530 = vmatpush1.msra.mxu0 0.0
      %4531 = vmatprep.subr.mxu0 0.0
      %4532 = vmatpush1.msra.mxu0 0.0
      %4533 = vmatprep.subr.mxu0 0.0
      %4534 = vmatpush1.msra.mxu0 0.0
      %4535 = vmatprep.subr.mxu0 0.0
      %4536 = vmatpush1.msra.mxu0 0.0
      %4537 = vmatprep.subr.mxu0 0.0
      %4538 = vmatpush1.msra.mxu0 0.0
      %4539 = vmatprep.subr.mxu0 0.0
      %4540 = vmatpush1.msra.mxu0 0.0
      %4541 = vmatprep.subr.mxu0 0.0
      %4542 = vmatpush1.msra.mxu0 0.0
      %4543 = vmatprep.subr.mxu0 0.0
      %4544 = vmatpush1.msra.mxu0 0.0
      %4545 = vmatprep.subr.mxu0 0.0
      %4546 = vmatpush1.msra.mxu0 0.0
      %4547 = vmatprep.mubr.f32.mxu0 0.0
      %4548 = vmatmul.mubr.f32.gmra.mrb[0].mxu0 %v4347
      %v4549 = vpop.f32.mrb[0].mxu0
      %v4550 = vadd.f32 0.0, %v4549
      %v4551 = vpop.f32.mrb[0].mxu0
      %4552 = vmatprep.mubr.f32.mxu0 0.0
      %4553 = vmatmul.mubr.f32.gmra.mrb[0].mxu0 %v4350
      %v4554 = vpop.f32.mrb[0].mxu0
      %v4555 = vadd.f32 0.0, %v4554
      %v4556 = vpop.f32.mrb[0].mxu0
      %4557 = vmatprep.mubr.f32.mxu0 0.0
      %4558 = vmatmul.mubr.f32.gmra.mrb[0].mxu0 %v4353
      %v4559 = vpop.f32.mrb[0].mxu0
      %v4560 = vadd.f32 0.0, %v4559
      %v4561 = vpop.f32.mrb[0].mxu0
      %4562 = vmatprep.mubr.f32.mxu0 0.0
      %4563 = vmatmul.mubr.f32.gmra.mrb[0].mxu0 %v4356
      %v4564 = vpop.f32.mrb[0].mxu0
      %v4565 = vadd.f32 0.0, %v4564
      %v4566 = vpop.f32.mrb[0].mxu0
      %4567 = vmatprep.mubr.f32.mxu0 0.0
      %4568 = vmatmul.mubr.f32.gmra.mrb[0].mxu0 %v4359
      %v4569 = vpop.f32.mrb[0].mxu0
      %v4570 = vadd.f32 0.0, %v4569
      %v4571 = vpop.f32.mrb[0].mxu0
      %4572 = vmatprep.mubr.f32.mxu0 0.0
      %4573 = vmatmul.mubr.f32.gmra.mrb[0].mxu0 %v4362
      %v4574 = vpop.f32.mrb[0].mxu0
      %v4575 = vadd.f32 0.0, %v4574
      %v4576 = vpop.f32.mrb[0].mxu0
      %4577 = vmatprep.mubr.f32.mxu0 0.0
      %4578 = vmatmul.mubr.f32.gmra.mrb[0].mxu0 %v4365
      %v4579 = vpop.f32.mrb[0].mxu0
      %v4580 = vadd.f32 0.0, %v4579
      %v4581 = vpop.f32.mrb[0].mxu0
      %4582 = vmatprep.mubr.f32.mxu0 0.0
      %4583 = vmatmul.mubr.f32.gmra.mrb[0].mxu0 %v4368
      %v4584 = vpop.f32.mrb[0].mxu0
      %v4585 = vadd.f32 0.0, %v4584
      %v4586 = vpop.f32.mrb[0].mxu0
      %4587 = vdwg.mxu0
      %v4588 = vadd.f32 %v4201, %v4437
      %v4589 = vadd.f32 %v4202, %v4439
      %v4590 = vadd.f32 %v4203, %v4550
      %v4591 = vadd.f32 %v4204, %v4443
      %v4592 = vadd.f32 %v4205, %v4445
      %v4593 = vadd.f32 %v4206, %v4555
      %v4594 = vadd.f32 %v4207, %v4449
      %v4595 = vadd.f32 %v4208, %v4451
      %v4596 = vadd.f32 %v4209, %v4560
      %v4597 = vadd.f32 %v4210, %v4455
      %v4598 = vadd.f32 %v4211, %v4457
      %v4599 = vadd.f32 %v4212, %v4565
      %v4600 = vadd.f32 %v4213, %v4461
      %v4601 = vadd.f32 %v4214, %v4463
      %v4602 = vadd.f32 %v4215, %v4570
      %v4603 = vadd.f32 %v4216, %v4467
      %v4604 = vadd.f32 %v4217, %v4469
      %v4605 = vadd.f32 %v4218, %v4575
      %v4606 = vadd.f32 %v4219, %v4473
      %v4607 = vadd.f32 %v4220, %v4475
      %v4608 = vadd.f32 %v4221, %v4580
      %v4609 = vadd.f32 %v4222, %v4479
      %v4610 = vadd.f32 %v4223, %v4481
      %v4611 = vadd.f32 %v4224, %v4585
      %s4612 = scalar_lea.vmem %s4, 448
      %v4613 = vld [vmem:[%s4612] sm:$0xff]
      %v4614 = vld [vmem:[%s4612 + $0x8] sm:$0xff]
      %v4615 = vld [vmem:[%s4612 + $0x10] sm:$0xff]
      %v4616 = vld [vmem:[%s4612 + $0x18] sm:$0xff]
      %v4617 = vld [vmem:[%s4612 + $0x20] sm:$0xff]
      %v4618 = vld [vmem:[%s4612 + $0x28] sm:$0xff]
      %v4619 = vld [vmem:[%s4612 + $0x30] sm:$0xff]
      %v4620 = vld [vmem:[%s4612 + $0x38] sm:$0xff]
      %4621 = vrot.lane.b32.xlu0 %v3783, 110
      %v4622 = vpop.permute.xlu0 %4621
      %4623 = vrot.lane.b32.xlu0 %v3784, 110
      %v4624 = vpop.permute.xlu0 %4623
      %4625 = vrot.lane.b32.xlu0 %v3785, 110
      %v4626 = vpop.permute.xlu0 %4625
      %4627 = vrot.lane.b32.xlu0 %v3786, 110
      %v4628 = vpop.permute.xlu0 %4627
      %4629 = vrot.lane.b32.xlu0 %v3787, 110
      %v4630 = vpop.permute.xlu0 %4629
      %4631 = vrot.lane.b32.xlu0 %v3788, 110
      %v4632 = vpop.permute.xlu0 %4631
      %4633 = vrot.lane.b32.xlu0 %v3789, 110
      %v4634 = vpop.permute.xlu0 %4633
      %4635 = vrot.lane.b32.xlu0 %v3790, 110
      %v4636 = vpop.permute.xlu0 %4635
      %4637 = vrot.lane.b32.xlu0 %v3791, 110
      %v4638 = vpop.permute.xlu0 %4637
      %4639 = vrot.lane.b32.xlu0 %v3792, 110
      %v4640 = vpop.permute.xlu0 %4639
      %4641 = vrot.lane.b32.xlu0 %v3793, 110
      %v4642 = vpop.permute.xlu0 %4641
      %4643 = vrot.lane.b32.xlu0 %v3794, 110
      %v4644 = vpop.permute.xlu0 %4643
      %4645 = vrot.lane.b32.xlu0 %v3795, 110
      %v4646 = vpop.permute.xlu0 %4645
      %4647 = vrot.lane.b32.xlu0 %v3796, 110
      %v4648 = vpop.permute.xlu0 %4647
      %4649 = vrot.lane.b32.xlu0 %v3797, 110
      %v4650 = vpop.permute.xlu0 %4649
      %4651 = vrot.lane.b32.xlu0 %v3798, 110
      %v4652 = vpop.permute.xlu0 %4651
      %4653 = vrot.lane.b32.xlu0 %v3799, 110
      %v4654 = vpop.permute.xlu0 %4653
      %4655 = vrot.lane.b32.xlu0 %v3800, 110
      %v4656 = vpop.permute.xlu0 %4655
      %4657 = vrot.lane.b32.xlu0 %v3801, 110
      %v4658 = vpop.permute.xlu0 %4657
      %4659 = vrot.lane.b32.xlu0 %v3802, 110
      %v4660 = vpop.permute.xlu0 %4659
      %4661 = vrot.lane.b32.xlu0 %v3803, 110
      %v4662 = vpop.permute.xlu0 %4661
      %4663 = vrot.lane.b32.xlu0 %v3804, 110
      %v4664 = vpop.permute.xlu0 %4663
      %4665 = vrot.lane.b32.xlu0 %v3805, 110
      %v4666 = vpop.permute.xlu0 %4665
      %4667 = vrot.lane.b32.xlu0 %v3806, 110
      %v4668 = vpop.permute.xlu0 %4667
      %4669 = vrot.lane.b32.xlu0 %v3807, 110
      %v4670 = vpop.permute.xlu0 %4669
      %4671 = vrot.lane.b32.xlu0 %v3808, 110
      %v4672 = vpop.permute.xlu0 %4671
      %4673 = vrot.lane.b32.xlu0 %v3809, 110
      %v4674 = vpop.permute.xlu0 %4673
      %4675 = vrot.lane.b32.xlu0 %v3810, 110
      %v4676 = vpop.permute.xlu0 %4675
      %4677 = vrot.lane.b32.xlu0 %v3811, 110
      %v4678 = vpop.permute.xlu0 %4677
      %4679 = vrot.lane.b32.xlu0 %v3812, 110
      %v4680 = vpop.permute.xlu0 %4679
      %4681 = vrot.lane.b32.xlu0 %v3813, 110
      %v4682 = vpop.permute.xlu0 %4681
      %4683 = vrot.lane.b32.xlu0 %v3814, 110
      %v4684 = vpop.permute.xlu0 %4683
      %vm4685 = vcmask 900096
      %v4686 = vsel %vm4685, %v4622, %v4624
      %v4687 = vsel %vm4685, %v4624, %v4626
      %v4688 = vsel %vm4685, %v4626, %v4628
      %v4689 = vsel %vm4685, %v4630, %v4632
      %v4690 = vsel %vm4685, %v4632, %v4634
      %v4691 = vsel %vm4685, %v4634, %v4636
      %v4692 = vsel %vm4685, %v4638, %v4640
      %v4693 = vsel %vm4685, %v4640, %v4642
      %v4694 = vsel %vm4685, %v4642, %v4644
      %v4695 = vsel %vm4685, %v4646, %v4648
      %v4696 = vsel %vm4685, %v4648, %v4650
      %v4697 = vsel %vm4685, %v4650, %v4652
      %v4698 = vsel %vm4685, %v4654, %v4656
      %v4699 = vsel %vm4685, %v4656, %v4658
      %v4700 = vsel %vm4685, %v4658, %v4660
      %v4701 = vsel %vm4685, %v4662, %v4664
      %v4702 = vsel %vm4685, %v4664, %v4666
      %v4703 = vsel %vm4685, %v4666, %v4668
      %v4704 = vsel %vm4685, %v4670, %v4672
      %v4705 = vsel %vm4685, %v4672, %v4674
      %v4706 = vsel %vm4685, %v4674, %v4676
      %v4707 = vsel %vm4685, %v4678, %v4680
      %v4708 = vsel %vm4685, %v4680, %v4682
      %v4709 = vsel %vm4685, %v4682, %v4684
      %v4735 = vsel %vm2127, %v4613, 0
      %v4738 = vsel %vm2127, %v4614, 0
      %v4741 = vsel %vm2127, %v4615, 0
      %v4744 = vsel %vm2127, %v4616, 0
      %v4747 = vsel %vm2127, %v4617, 0
      %v4750 = vsel %vm2127, %v4618, 0
      %v4753 = vsel %vm2127, %v4619, 0
      %v4756 = vsel %vm2127, %v4620, 0
      %4758 = vmatprep.subr.mxu0 %v4687
      %4759 = vmatpush1.msra.mxu0 %v4686
      %4760 = vmatprep.subr.mxu0 %v4690
      %4761 = vmatpush1.msra.mxu0 %v4689
      %4762 = vmatprep.subr.mxu0 %v4693
      %4763 = vmatpush1.msra.mxu0 %v4692
      %4764 = vmatprep.subr.mxu0 %v4696
      %4765 = vmatpush1.msra.mxu0 %v4695
      %4766 = vmatprep.subr.mxu0 %v4699
      %4767 = vmatpush1.msra.mxu0 %v4698
      %4768 = vmatprep.subr.mxu0 %v4702
      %4769 = vmatpush1.msra.mxu0 %v4701
      %4770 = vmatprep.subr.mxu0 %v4705
      %4771 = vmatpush1.msra.mxu0 %v4704
      %4772 = vmatprep.subr.mxu0 %v4708
      %4773 = vmatpush1.msra.mxu0 %v4707
      %4774 = vmatprep.subr.mxu0 0.0
      %4775 = vmatpush1.msra.mxu0 0.0
      %4776 = vmatprep.subr.mxu0 0.0
      %4777 = vmatpush1.msra.mxu0 0.0
      %4778 = vmatprep.subr.mxu0 0.0
      %4779 = vmatpush1.msra.mxu0 0.0
      %4780 = vmatprep.subr.mxu0 0.0
      %4781 = vmatpush1.msra.mxu0 0.0
      %4782 = vmatprep.subr.mxu0 0.0
      %4783 = vmatpush1.msra.mxu0 0.0
      %4784 = vmatprep.subr.mxu0 0.0
      %4785 = vmatpush1.msra.mxu0 0.0
      %4786 = vmatprep.subr.mxu0 0.0
      %4787 = vmatpush1.msra.mxu0 0.0
      %4788 = vmatprep.subr.mxu0 0.0
      %4789 = vmatpush1.msra.mxu0 0.0
      %4790 = vmatprep.subr.mxu0 0.0
      %4791 = vmatpush1.msra.mxu0 0.0
      %4792 = vmatprep.subr.mxu0 0.0
      %4793 = vmatpush1.msra.mxu0 0.0
      %4794 = vmatprep.subr.mxu0 0.0
      %4795 = vmatpush1.msra.mxu0 0.0
      %4796 = vmatprep.subr.mxu0 0.0
      %4797 = vmatpush1.msra.mxu0 0.0
      %4798 = vmatprep.subr.mxu0 0.0
      %4799 = vmatpush1.msra.mxu0 0.0
      %4800 = vmatprep.subr.mxu0 0.0
      %4801 = vmatpush1.msra.mxu0 0.0
      %4802 = vmatprep.subr.mxu0 0.0
      %4803 = vmatpush1.msra.mxu0 0.0
      %4804 = vmatprep.subr.mxu0 0.0
      %4805 = vmatpush1.msra.mxu0 0.0
      %4806 = vmatprep.subr.mxu0 0.0
      %4807 = vmatpush1.msra.mxu0 0.0
      %4808 = vmatprep.subr.mxu0 0.0
      %4809 = vmatpush1.msra.mxu0 0.0
      %4810 = vmatprep.subr.mxu0 0.0
      %4811 = vmatpush1.msra.mxu0 0.0
      %4812 = vmatprep.subr.mxu0 0.0
      %4813 = vmatpush1.msra.mxu0 0.0
      %4814 = vmatprep.subr.mxu0 0.0
      %4815 = vmatpush1.msra.mxu0 0.0
      %4816 = vmatprep.subr.mxu0 0.0
      %4817 = vmatpush1.msra.mxu0 0.0
      %4818 = vmatprep.subr.mxu0 0.0
      %4819 = vmatpush1.msra.mxu0 0.0
      %4820 = vmatprep.subr.mxu0 0.0
      %4821 = vmatpush1.msra.mxu0 0.0
      %4822 = vmatprep.mubr.f32.mxu0 0.0
      %4823 = vmatmul.mubr.f32.gmra.mrb[0].mxu0 %v4735
      %v4824 = vpop.f32.mrb[0].mxu0
      %v4825 = vadd.f32 0.0, %v4824
      %v4826 = vpop.f32.mrb[0].mxu0
      %v4827 = vadd.f32 0.0, %v4826
      %4828 = vmatprep.mubr.f32.mxu0 0.0
      %4829 = vmatmul.mubr.f32.gmra.mrb[0].mxu0 %v4738
      %v4830 = vpop.f32.mrb[0].mxu0
      %v4831 = vadd.f32 0.0, %v4830
      %v4832 = vpop.f32.mrb[0].mxu0
      %v4833 = vadd.f32 0.0, %v4832
      %4834 = vmatprep.mubr.f32.mxu0 0.0
      %4835 = vmatmul.mubr.f32.gmra.mrb[0].mxu0 %v4741
      %v4836 = vpop.f32.mrb[0].mxu0
      %v4837 = vadd.f32 0.0, %v4836
      %v4838 = vpop.f32.mrb[0].mxu0
      %v4839 = vadd.f32 0.0, %v4838
      %4840 = vmatprep.mubr.f32.mxu0 0.0
      %4841 = vmatmul.mubr.f32.gmra.mrb[0].mxu0 %v4744
      %v4842 = vpop.f32.mrb[0].mxu0
      %v4843 = vadd.f32 0.0, %v4842
      %v4844 = vpop.f32.mrb[0].mxu0
      %v4845 = vadd.f32 0.0, %v4844
      %4846 = vmatprep.mubr.f32.mxu0 0.0
      %4847 = vmatmul.mubr.f32.gmra.mrb[0].mxu0 %v4747
      %v4848 = vpop.f32.mrb[0].mxu0
      %v4849 = vadd.f32 0.0, %v4848
      %v4850 = vpop.f32.mrb[0].mxu0
      %v4851 = vadd.f32 0.0, %v4850
      %4852 = vmatprep.mubr.f32.mxu0 0.0
      %4853 = vmatmul.mubr.f32.gmra.mrb[0].mxu0 %v4750
      %v4854 = vpop.f32.mrb[0].mxu0
      %v4855 = vadd.f32 0.0, %v4854
      %v4856 = vpop.f32.mrb[0].mxu0
      %v4857 = vadd.f32 0.0, %v4856
      %4858 = vmatprep.mubr.f32.mxu0 0.0
      %4859 = vmatmul.mubr.f32.gmra.mrb[0].mxu0 %v4753
      %v4860 = vpop.f32.mrb[0].mxu0
      %v4861 = vadd.f32 0.0, %v4860
      %v4862 = vpop.f32.mrb[0].mxu0
      %v4863 = vadd.f32 0.0, %v4862
      %4864 = vmatprep.mubr.f32.mxu0 0.0
      %4865 = vmatmul.mubr.f32.gmra.mrb[0].mxu0 %v4756
      %v4866 = vpop.f32.mrb[0].mxu0
      %v4867 = vadd.f32 0.0, %v4866
      %v4868 = vpop.f32.mrb[0].mxu0
      %v4869 = vadd.f32 0.0, %v4868
      %4870 = vdwg.mxu0
      %4871 = vmatprep.subr.mxu0 0.0
      %4872 = vmatpush1.msra.mxu0 %v4688
      %4873 = vmatprep.subr.mxu0 0.0
      %4874 = vmatpush1.msra.mxu0 %v4691
      %4875 = vmatprep.subr.mxu0 0.0
      %4876 = vmatpush1.msra.mxu0 %v4694
      %4877 = vmatprep.subr.mxu0 0.0
      %4878 = vmatpush1.msra.mxu0 %v4697
      %4879 = vmatprep.subr.mxu0 0.0
      %4880 = vmatpush1.msra.mxu0 %v4700
      %4881 = vmatprep.subr.mxu0 0.0
      %4882 = vmatpush1.msra.mxu0 %v4703
      %4883 = vmatprep.subr.mxu0 0.0
      %4884 = vmatpush1.msra.mxu0 %v4706
      %4885 = vmatprep.subr.mxu0 0.0
      %4886 = vmatpush1.msra.mxu0 %v4709
      %4887 = vmatprep.subr.mxu0 0.0
      %4888 = vmatpush1.msra.mxu0 0.0
      %4889 = vmatprep.subr.mxu0 0.0
      %4890 = vmatpush1.msra.mxu0 0.0
      %4891 = vmatprep.subr.mxu0 0.0
      %4892 = vmatpush1.msra.mxu0 0.0
      %4893 = vmatprep.subr.mxu0 0.0
      %4894 = vmatpush1.msra.mxu0 0.0
      %4895 = vmatprep.subr.mxu0 0.0
      %4896 = vmatpush1.msra.mxu0 0.0
      %4897 = vmatprep.subr.mxu0 0.0
      %4898 = vmatpush1.msra.mxu0 0.0
      %4899 = vmatprep.subr.mxu0 0.0
      %4900 = vmatpush1.msra.mxu0 0.0
      %4901 = vmatprep.subr.mxu0 0.0
      %4902 = vmatpush1.msra.mxu0 0.0
      %4903 = vmatprep.subr.mxu0 0.0
      %4904 = vmatpush1.msra.mxu0 0.0
      %4905 = vmatprep.subr.mxu0 0.0
      %4906 = vmatpush1.msra.mxu0 0.0
      %4907 = vmatprep.subr.mxu0 0.0
      %4908 = vmatpush1.msra.mxu0 0.0
      %4909 = vmatprep.subr.mxu0 0.0
      %4910 = vmatpush1.msra.mxu0 0.0
      %4911 = vmatprep.subr.mxu0 0.0
      %4912 = vmatpush1.msra.mxu0 0.0
      %4913 = vmatprep.subr.mxu0 0.0
      %4914 = vmatpush1.msra.mxu0 0.0
      %4915 = vmatprep.subr.mxu0 0.0
      %4916 = vmatpush1.msra.mxu0 0.0
      %4917 = vmatprep.subr.mxu0 0.0
      %4918 = vmatpush1.msra.mxu0 0.0
      %4919 = vmatprep.subr.mxu0 0.0
      %4920 = vmatpush1.msra.mxu0 0.0
      %4921 = vmatprep.subr.mxu0 0.0
      %4922 = vmatpush1.msra.mxu0 0.0
      %4923 = vmatprep.subr.mxu0 0.0
      %4924 = vmatpush1.msra.mxu0 0.0
      %4925 = vmatprep.subr.mxu0 0.0
      %4926 = vmatpush1.msra.mxu0 0.0
      %4927 = vmatprep.subr.mxu0 0.0
      %4928 = vmatpush1.msra.mxu0 0.0
      %4929 = vmatprep.subr.mxu0 0.0
      %4930 = vmatpush1.msra.mxu0 0.0
      %4931 = vmatprep.subr.mxu0 0.0
      %4932 = vmatpush1.msra.mxu0 0.0
      %4933 = vmatprep.subr.mxu0 0.0
      %4934 = vmatpush1.msra.mxu0 0.0
      %4935 = vmatprep.mubr.f32.mxu0 0.0
      %4936 = vmatmul.mubr.f32.gmra.mrb[0].mxu0 %v4735
      %v4937 = vpop.f32.mrb[0].mxu0
      %v4938 = vadd.f32 0.0, %v4937
      %v4939 = vpop.f32.mrb[0].mxu0
      %4940 = vmatprep.mubr.f32.mxu0 0.0
      %4941 = vmatmul.mubr.f32.gmra.mrb[0].mxu0 %v4738
      %v4942 = vpop.f32.mrb[0].mxu0
      %v4943 = vadd.f32 0.0, %v4942
      %v4944 = vpop.f32.mrb[0].mxu0
      %4945 = vmatprep.mubr.f32.mxu0 0.0
      %4946 = vmatmul.mubr.f32.gmra.mrb[0].mxu0 %v4741
      %v4947 = vpop.f32.mrb[0].mxu0
      %v4948 = vadd.f32 0.0, %v4947
      %v4949 = vpop.f32.mrb[0].mxu0
      %4950 = vmatprep.mubr.f32.mxu0 0.0
      %4951 = vmatmul.mubr.f32.gmra.mrb[0].mxu0 %v4744
      %v4952 = vpop.f32.mrb[0].mxu0
      %v4953 = vadd.f32 0.0, %v4952
      %v4954 = vpop.f32.mrb[0].mxu0
      %4955 = vmatprep.mubr.f32.mxu0 0.0
      %4956 = vmatmul.mubr.f32.gmra.mrb[0].mxu0 %v4747
      %v4957 = vpop.f32.mrb[0].mxu0
      %v4958 = vadd.f32 0.0, %v4957
      %v4959 = vpop.f32.mrb[0].mxu0
      %4960 = vmatprep.mubr.f32.mxu0 0.0
      %4961 = vmatmul.mubr.f32.gmra.mrb[0].mxu0 %v4750
      %v4962 = vpop.f32.mrb[0].mxu0
      %v4963 = vadd.f32 0.0, %v4962
      %v4964 = vpop.f32.mrb[0].mxu0
      %4965 = vmatprep.mubr.f32.mxu0 0.0
      %4966 = vmatmul.mubr.f32.gmra.mrb[0].mxu0 %v4753
      %v4967 = vpop.f32.mrb[0].mxu0
      %v4968 = vadd.f32 0.0, %v4967
      %v4969 = vpop.f32.mrb[0].mxu0
      %4970 = vmatprep.mubr.f32.mxu0 0.0
      %4971 = vmatmul.mubr.f32.gmra.mrb[0].mxu0 %v4756
      %v4972 = vpop.f32.mrb[0].mxu0
      %v4973 = vadd.f32 0.0, %v4972
      %v4974 = vpop.f32.mrb[0].mxu0
      %4975 = vdwg.mxu0
      %v4976 = vadd.f32 %v4588, %v4825
      %v4977 = vadd.f32 %v4589, %v4827
      %v4978 = vadd.f32 %v4590, %v4938
      %v4979 = vadd.f32 %v4591, %v4831
      %v4980 = vadd.f32 %v4592, %v4833
      %v4981 = vadd.f32 %v4593, %v4943
      %v4982 = vadd.f32 %v4594, %v4837
      %v4983 = vadd.f32 %v4595, %v4839
      %v4984 = vadd.f32 %v4596, %v4948
      %v4985 = vadd.f32 %v4597, %v4843
      %v4986 = vadd.f32 %v4598, %v4845
      %v4987 = vadd.f32 %v4599, %v4953
      %v4988 = vadd.f32 %v4600, %v4849
      %v4989 = vadd.f32 %v4601, %v4851
      %v4990 = vadd.f32 %v4602, %v4958
      %v4991 = vadd.f32 %v4603, %v4855
      %v4992 = vadd.f32 %v4604, %v4857
      %v4993 = vadd.f32 %v4605, %v4963
      %v4994 = vadd.f32 %v4606, %v4861
      %v4995 = vadd.f32 %v4607, %v4863
      %v4996 = vadd.f32 %v4608, %v4968
      %v4997 = vadd.f32 %v4609, %v4867
      %v4998 = vadd.f32 %v4610, %v4869
      %v4999 = vadd.f32 %v4611, %v4973
      %s5000 = scalar_lea.vmem %s4, 512
      %v5001 = vld [vmem:[%s5000] sm:$0xff]
      %v5002 = vld [vmem:[%s5000 + $0x8] sm:$0xff]
      %v5003 = vld [vmem:[%s5000 + $0x10] sm:$0xff]
      %v5004 = vld [vmem:[%s5000 + $0x18] sm:$0xff]
      %v5005 = vld [vmem:[%s5000 + $0x20] sm:$0xff]
      %v5006 = vld [vmem:[%s5000 + $0x28] sm:$0xff]
      %v5007 = vld [vmem:[%s5000 + $0x30] sm:$0xff]
      %v5008 = vld [vmem:[%s5000 + $0x38] sm:$0xff]
      %5009 = vrot.lane.b32.xlu0 %v3783, 109
      %v5010 = vpop.permute.xlu0 %5009
      %5011 = vrot.lane.b32.xlu0 %v3784, 109
      %v5012 = vpop.permute.xlu0 %5011
      %5013 = vrot.lane.b32.xlu0 %v3785, 109
      %v5014 = vpop.permute.xlu0 %5013
      %5015 = vrot.lane.b32.xlu0 %v3786, 109
      %v5016 = vpop.permute.xlu0 %5015
      %5017 = vrot.lane.b32.xlu0 %v3787, 109
      %v5018 = vpop.permute.xlu0 %5017
      %5019 = vrot.lane.b32.xlu0 %v3788, 109
      %v5020 = vpop.permute.xlu0 %5019
      %5021 = vrot.lane.b32.xlu0 %v3789, 109
      %v5022 = vpop.permute.xlu0 %5021
      %5023 = vrot.lane.b32.xlu0 %v3790, 109
      %v5024 = vpop.permute.xlu0 %5023
      %5025 = vrot.lane.b32.xlu0 %v3791, 109
      %v5026 = vpop.permute.xlu0 %5025
      %5027 = vrot.lane.b32.xlu0 %v3792, 109
      %v5028 = vpop.permute.xlu0 %5027
      %5029 = vrot.lane.b32.xlu0 %v3793, 109
      %v5030 = vpop.permute.xlu0 %5029
      %5031 = vrot.lane.b32.xlu0 %v3794, 109
      %v5032 = vpop.permute.xlu0 %5031
      %5033 = vrot.lane.b32.xlu0 %v3795, 109
      %v5034 = vpop.permute.xlu0 %5033
      %5035 = vrot.lane.b32.xlu0 %v3796, 109
      %v5036 = vpop.permute.xlu0 %5035
      %5037 = vrot.lane.b32.xlu0 %v3797, 109
      %v5038 = vpop.permute.xlu0 %5037
      %5039 = vrot.lane.b32.xlu0 %v3798, 109
      %v5040 = vpop.permute.xlu0 %5039
      %5041 = vrot.lane.b32.xlu0 %v3799, 109
      %v5042 = vpop.permute.xlu0 %5041
      %5043 = vrot.lane.b32.xlu0 %v3800, 109
      %v5044 = vpop.permute.xlu0 %5043
      %5045 = vrot.lane.b32.xlu0 %v3801, 109
      %v5046 = vpop.permute.xlu0 %5045
      %5047 = vrot.lane.b32.xlu0 %v3802, 109
      %v5048 = vpop.permute.xlu0 %5047
      %5049 = vrot.lane.b32.xlu0 %v3803, 109
      %v5050 = vpop.permute.xlu0 %5049
      %5051 = vrot.lane.b32.xlu0 %v3804, 109
      %v5052 = vpop.permute.xlu0 %5051
      %5053 = vrot.lane.b32.xlu0 %v3805, 109
      %v5054 = vpop.permute.xlu0 %5053
      %5055 = vrot.lane.b32.xlu0 %v3806, 109
      %v5056 = vpop.permute.xlu0 %5055
      %5057 = vrot.lane.b32.xlu0 %v3807, 109
      %v5058 = vpop.permute.xlu0 %5057
      %5059 = vrot.lane.b32.xlu0 %v3808, 109
      %v5060 = vpop.permute.xlu0 %5059
      %5061 = vrot.lane.b32.xlu0 %v3809, 109
      %v5062 = vpop.permute.xlu0 %5061
      %5063 = vrot.lane.b32.xlu0 %v3810, 109
      %v5064 = vpop.permute.xlu0 %5063
      %5065 = vrot.lane.b32.xlu0 %v3811, 109
      %v5066 = vpop.permute.xlu0 %5065
      %5067 = vrot.lane.b32.xlu0 %v3812, 109
      %v5068 = vpop.permute.xlu0 %5067
      %5069 = vrot.lane.b32.xlu0 %v3813, 109
      %v5070 = vpop.permute.xlu0 %5069
      %5071 = vrot.lane.b32.xlu0 %v3814, 109
      %v5072 = vpop.permute.xlu0 %5071
      %vm5073 = vcmask 891904
      %v5074 = vsel %vm5073, %v5010, %v5012
      %v5075 = vsel %vm5073, %v5012, %v5014
      %v5076 = vsel %vm5073, %v5014, %v5016
      %v5077 = vsel %vm5073, %v5018, %v5020
      %v5078 = vsel %vm5073, %v5020, %v5022
      %v5079 = vsel %vm5073, %v5022, %v5024
      %v5080 = vsel %vm5073, %v5026, %v5028
      %v5081 = vsel %vm5073, %v5028, %v5030
      %v5082 = vsel %vm5073, %v5030, %v5032
      %v5083 = vsel %vm5073, %v5034, %v5036
      %v5084 = vsel %vm5073, %v5036, %v5038
      %v5085 = vsel %vm5073, %v5038, %v5040
      %v5086 = vsel %vm5073, %v5042, %v5044
      %v5087 = vsel %vm5073, %v5044, %v5046
      %v5088 = vsel %vm5073, %v5046, %v5048
      %v5089 = vsel %vm5073, %v5050, %v5052
      %v5090 = vsel %vm5073, %v5052, %v5054
      %v5091 = vsel %vm5073, %v5054, %v5056
      %v5092 = vsel %vm5073, %v5058, %v5060
      %v5093 = vsel %vm5073, %v5060, %v5062
      %v5094 = vsel %vm5073, %v5062, %v5064
      %v5095 = vsel %vm5073, %v5066, %v5068
      %v5096 = vsel %vm5073, %v5068, %v5070
      %v5097 = vsel %vm5073, %v5070, %v5072
      %v5123 = vsel %vm2127, %v5001, 0
      %v5126 = vsel %vm2127, %v5002, 0
      %v5129 = vsel %vm2127, %v5003, 0
      %v5132 = vsel %vm2127, %v5004, 0
      %v5135 = vsel %vm2127, %v5005, 0
      %v5138 = vsel %vm2127, %v5006, 0
      %v5141 = vsel %vm2127, %v5007, 0
      %v5144 = vsel %vm2127, %v5008, 0
      %5146 = vmatprep.subr.mxu0 %v5075
      %5147 = vmatpush1.msra.mxu0 %v5074
      %5148 = vmatprep.subr.mxu0 %v5078
      %5149 = vmatpush1.msra.mxu0 %v5077
      %5150 = vmatprep.subr.mxu0 %v5081
      %5151 = vmatpush1.msra.mxu0 %v5080
      %5152 = vmatprep.subr.mxu0 %v5084
      %5153 = vmatpush1.msra.mxu0 %v5083
      %5154 = vmatprep.subr.mxu0 %v5087
      %5155 = vmatpush1.msra.mxu0 %v5086
      %5156 = vmatprep.subr.mxu0 %v5090
      %5157 = vmatpush1.msra.mxu0 %v5089
      %5158 = vmatprep.subr.mxu0 %v5093
      %5159 = vmatpush1.msra.mxu0 %v5092
      %5160 = vmatprep.subr.mxu0 %v5096
      %5161 = vmatpush1.msra.mxu0 %v5095
      %5162 = vmatprep.subr.mxu0 0.0
      %5163 = vmatpush1.msra.mxu0 0.0
      %5164 = vmatprep.subr.mxu0 0.0
      %5165 = vmatpush1.msra.mxu0 0.0
      %5166 = vmatprep.subr.mxu0 0.0
      %5167 = vmatpush1.msra.mxu0 0.0
      %5168 = vmatprep.subr.mxu0 0.0
      %5169 = vmatpush1.msra.mxu0 0.0
      %5170 = vmatprep.subr.mxu0 0.0
      %5171 = vmatpush1.msra.mxu0 0.0
      %5172 = vmatprep.subr.mxu0 0.0
      %5173 = vmatpush1.msra.mxu0 0.0
      %5174 = vmatprep.subr.mxu0 0.0
      %5175 = vmatpush1.msra.mxu0 0.0
      %5176 = vmatprep.subr.mxu0 0.0
      %5177 = vmatpush1.msra.mxu0 0.0
      %5178 = vmatprep.subr.mxu0 0.0
      %5179 = vmatpush1.msra.mxu0 0.0
      %5180 = vmatprep.subr.mxu0 0.0
      %5181 = vmatpush1.msra.mxu0 0.0
      %5182 = vmatprep.subr.mxu0 0.0
      %5183 = vmatpush1.msra.mxu0 0.0
      %5184 = vmatprep.subr.mxu0 0.0
      %5185 = vmatpush1.msra.mxu0 0.0
      %5186 = vmatprep.subr.mxu0 0.0
      %5187 = vmatpush1.msra.mxu0 0.0
      %5188 = vmatprep.subr.mxu0 0.0
      %5189 = vmatpush1.msra.mxu0 0.0
      %5190 = vmatprep.subr.mxu0 0.0
      %5191 = vmatpush1.msra.mxu0 0.0
      %5192 = vmatprep.subr.mxu0 0.0
      %5193 = vmatpush1.msra.mxu0 0.0
      %5194 = vmatprep.subr.mxu0 0.0
      %5195 = vmatpush1.msra.mxu0 0.0
      %5196 = vmatprep.subr.mxu0 0.0
      %5197 = vmatpush1.msra.mxu0 0.0
      %5198 = vmatprep.subr.mxu0 0.0
      %5199 = vmatpush1.msra.mxu0 0.0
      %5200 = vmatprep.subr.mxu0 0.0
      %5201 = vmatpush1.msra.mxu0 0.0
      %5202 = vmatprep.subr.mxu0 0.0
      %5203 = vmatpush1.msra.mxu0 0.0
      %5204 = vmatprep.subr.mxu0 0.0
      %5205 = vmatpush1.msra.mxu0 0.0
      %5206 = vmatprep.subr.mxu0 0.0
      %5207 = vmatpush1.msra.mxu0 0.0
      %5208 = vmatprep.subr.mxu0 0.0
      %5209 = vmatpush1.msra.mxu0 0.0
      %5210 = vmatprep.mubr.f32.mxu0 0.0
      %5211 = vmatmul.mubr.f32.gmra.mrb[0].mxu0 %v5123
      %v5212 = vpop.f32.mrb[0].mxu0
      %v5213 = vadd.f32 0.0, %v5212
      %v5214 = vpop.f32.mrb[0].mxu0
      %v5215 = vadd.f32 0.0, %v5214
      %5216 = vmatprep.mubr.f32.mxu0 0.0
      %5217 = vmatmul.mubr.f32.gmra.mrb[0].mxu0 %v5126
      %v5218 = vpop.f32.mrb[0].mxu0
      %v5219 = vadd.f32 0.0, %v5218
      %v5220 = vpop.f32.mrb[0].mxu0
      %v5221 = vadd.f32 0.0, %v5220
      %5222 = vmatprep.mubr.f32.mxu0 0.0
      %5223 = vmatmul.mubr.f32.gmra.mrb[0].mxu0 %v5129
      %v5224 = vpop.f32.mrb[0].mxu0
      %v5225 = vadd.f32 0.0, %v5224
      %v5226 = vpop.f32.mrb[0].mxu0
      %v5227 = vadd.f32 0.0, %v5226
      %5228 = vmatprep.mubr.f32.mxu0 0.0
      %5229 = vmatmul.mubr.f32.gmra.mrb[0].mxu0 %v5132
      %v5230 = vpop.f32.mrb[0].mxu0
      %v5231 = vadd.f32 0.0, %v5230
      %v5232 = vpop.f32.mrb[0].mxu0
      %v5233 = vadd.f32 0.0, %v5232
      %5234 = vmatprep.mubr.f32.mxu0 0.0
      %5235 = vmatmul.mubr.f32.gmra.mrb[0].mxu0 %v5135
      %v5236 = vpop.f32.mrb[0].mxu0
      %v5237 = vadd.f32 0.0, %v5236
      %v5238 = vpop.f32.mrb[0].mxu0
      %v5239 = vadd.f32 0.0, %v5238
      %5240 = vmatprep.mubr.f32.mxu0 0.0
      %5241 = vmatmul.mubr.f32.gmra.mrb[0].mxu0 %v5138
      %v5242 = vpop.f32.mrb[0].mxu0
      %v5243 = vadd.f32 0.0, %v5242
      %v5244 = vpop.f32.mrb[0].mxu0
      %v5245 = vadd.f32 0.0, %v5244
      %5246 = vmatprep.mubr.f32.mxu0 0.0
      %5247 = vmatmul.mubr.f32.gmra.mrb[0].mxu0 %v5141
      %v5248 = vpop.f32.mrb[0].mxu0
      %v5249 = vadd.f32 0.0, %v5248
      %v5250 = vpop.f32.mrb[0].mxu0
      %v5251 = vadd.f32 0.0, %v5250
      %5252 = vmatprep.mubr.f32.mxu0 0.0
      %5253 = vmatmul.mubr.f32.gmra.mrb[0].mxu0 %v5144
      %v5254 = vpop.f32.mrb[0].mxu0
      %v5255 = vadd.f32 0.0, %v5254
      %v5256 = vpop.f32.mrb[0].mxu0
      %v5257 = vadd.f32 0.0, %v5256
      %5258 = vdwg.mxu0
      %5259 = vmatprep.subr.mxu0 0.0
      %5260 = vmatpush1.msra.mxu0 %v5076
      %5261 = vmatprep.subr.mxu0 0.0
      %5262 = vmatpush1.msra.mxu0 %v5079
      %5263 = vmatprep.subr.mxu0 0.0
      %5264 = vmatpush1.msra.mxu0 %v5082
      %5265 = vmatprep.subr.mxu0 0.0
      %5266 = vmatpush1.msra.mxu0 %v5085
      %5267 = vmatprep.subr.mxu0 0.0
      %5268 = vmatpush1.msra.mxu0 %v5088
      %5269 = vmatprep.subr.mxu0 0.0
      %5270 = vmatpush1.msra.mxu0 %v5091
      %5271 = vmatprep.subr.mxu0 0.0
      %5272 = vmatpush1.msra.mxu0 %v5094
      %5273 = vmatprep.subr.mxu0 0.0
      %5274 = vmatpush1.msra.mxu0 %v5097
      %5275 = vmatprep.subr.mxu0 0.0
      %5276 = vmatpush1.msra.mxu0 0.0
      %5277 = vmatprep.subr.mxu0 0.0
      %5278 = vmatpush1.msra.mxu0 0.0
      %5279 = vmatprep.subr.mxu0 0.0
      %5280 = vmatpush1.msra.mxu0 0.0
      %5281 = vmatprep.subr.mxu0 0.0
      %5282 = vmatpush1.msra.mxu0 0.0
      %5283 = vmatprep.subr.mxu0 0.0
      %5284 = vmatpush1.msra.mxu0 0.0
      %5285 = vmatprep.subr.mxu0 0.0
      %5286 = vmatpush1.msra.mxu0 0.0
      %5287 = vmatprep.subr.mxu0 0.0
      %5288 = vmatpush1.msra.mxu0 0.0
      %5289 = vmatprep.subr.mxu0 0.0
      %5290 = vmatpush1.msra.mxu0 0.0
      %5291 = vmatprep.subr.mxu0 0.0
      %5292 = vmatpush1.msra.mxu0 0.0
      %5293 = vmatprep.subr.mxu0 0.0
      %5294 = vmatpush1.msra.mxu0 0.0
      %5295 = vmatprep.subr.mxu0 0.0
      %5296 = vmatpush1.msra.mxu0 0.0
      %5297 = vmatprep.subr.mxu0 0.0
      %5298 = vmatpush1.msra.mxu0 0.0
      %5299 = vmatprep.subr.mxu0 0.0
      %5300 = vmatpush1.msra.mxu0 0.0
      %5301 = vmatprep.subr.mxu0 0.0
      %5302 = vmatpush1.msra.mxu0 0.0
      %5303 = vmatprep.subr.mxu0 0.0
      %5304 = vmatpush1.msra.mxu0 0.0
      %5305 = vmatprep.subr.mxu0 0.0
      %5306 = vmatpush1.msra.mxu0 0.0
      %5307 = vmatprep.subr.mxu0 0.0
      %5308 = vmatpush1.msra.mxu0 0.0
      %5309 = vmatprep.subr.mxu0 0.0
      %5310 = vmatpush1.msra.mxu0 0.0
      %5311 = vmatprep.subr.mxu0 0.0
      %5312 = vmatpush1.msra.mxu0 0.0
      %5313 = vmatprep.subr.mxu0 0.0
      %5314 = vmatpush1.msra.mxu0 0.0
      %5315 = vmatprep.subr.mxu0 0.0
      %5316 = vmatpush1.msra.mxu0 0.0
      %5317 = vmatprep.subr.mxu0 0.0
      %5318 = vmatpush1.msra.mxu0 0.0
      %5319 = vmatprep.subr.mxu0 0.0
      %5320 = vmatpush1.msra.mxu0 0.0
      %5321 = vmatprep.subr.mxu0 0.0
      %5322 = vmatpush1.msra.mxu0 0.0
      %5323 = vmatprep.mubr.f32.mxu0 0.0
      %5324 = vmatmul.mubr.f32.gmra.mrb[0].mxu0 %v5123
      %v5325 = vpop.f32.mrb[0].mxu0
      %v5326 = vadd.f32 0.0, %v5325
      %v5327 = vpop.f32.mrb[0].mxu0
      %5328 = vmatprep.mubr.f32.mxu0 0.0
      %5329 = vmatmul.mubr.f32.gmra.mrb[0].mxu0 %v5126
      %v5330 = vpop.f32.mrb[0].mxu0
      %v5331 = vadd.f32 0.0, %v5330
      %v5332 = vpop.f32.mrb[0].mxu0
      %5333 = vmatprep.mubr.f32.mxu0 0.0
      %5334 = vmatmul.mubr.f32.gmra.mrb[0].mxu0 %v5129
      %v5335 = vpop.f32.mrb[0].mxu0
      %v5336 = vadd.f32 0.0, %v5335
      %v5337 = vpop.f32.mrb[0].mxu0
      %5338 = vmatprep.mubr.f32.mxu0 0.0
      %5339 = vmatmul.mubr.f32.gmra.mrb[0].mxu0 %v5132
      %v5340 = vpop.f32.mrb[0].mxu0
      %v5341 = vadd.f32 0.0, %v5340
      %v5342 = vpop.f32.mrb[0].mxu0
      %5343 = vmatprep.mubr.f32.mxu0 0.0
      %5344 = vmatmul.mubr.f32.gmra.mrb[0].mxu0 %v5135
      %v5345 = vpop.f32.mrb[0].mxu0
      %v5346 = vadd.f32 0.0, %v5345
      %v5347 = vpop.f32.mrb[0].mxu0
      %5348 = vmatprep.mubr.f32.mxu0 0.0
      %5349 = vmatmul.mubr.f32.gmra.mrb[0].mxu0 %v5138
      %v5350 = vpop.f32.mrb[0].mxu0
      %v5351 = vadd.f32 0.0, %v5350
      %v5352 = vpop.f32.mrb[0].mxu0
      %5353 = vmatprep.mubr.f32.mxu0 0.0
      %5354 = vmatmul.mubr.f32.gmra.mrb[0].mxu0 %v5141
      %v5355 = vpop.f32.mrb[0].mxu0
      %v5356 = vadd.f32 0.0, %v5355
      %v5357 = vpop.f32.mrb[0].mxu0
      %5358 = vmatprep.mubr.f32.mxu0 0.0
      %5359 = vmatmul.mubr.f32.gmra.mrb[0].mxu0 %v5144
      %v5360 = vpop.f32.mrb[0].mxu0
      %v5361 = vadd.f32 0.0, %v5360
      %v5362 = vpop.f32.mrb[0].mxu0
      %5363 = vdwg.mxu0
      %v5364 = vadd.f32 %v4976, %v5213
      %v5365 = vadd.f32 %v4977, %v5215
      %v5366 = vadd.f32 %v4978, %v5326
      %v5367 = vadd.f32 %v4979, %v5219
      %v5368 = vadd.f32 %v4980, %v5221
      %v5369 = vadd.f32 %v4981, %v5331
      %v5370 = vadd.f32 %v4982, %v5225
      %v5371 = vadd.f32 %v4983, %v5227
      %v5372 = vadd.f32 %v4984, %v5336
      %v5373 = vadd.f32 %v4985, %v5231
      %v5374 = vadd.f32 %v4986, %v5233
      %v5375 = vadd.f32 %v4987, %v5341
      %v5376 = vadd.f32 %v4988, %v5237
      %v5377 = vadd.f32 %v4989, %v5239
      %v5378 = vadd.f32 %v4990, %v5346
      %v5379 = vadd.f32 %v4991, %v5243
      %v5380 = vadd.f32 %v4992, %v5245
      %v5381 = vadd.f32 %v4993, %v5351
      %v5382 = vadd.f32 %v4994, %v5249
      %v5383 = vadd.f32 %v4995, %v5251
      %v5384 = vadd.f32 %v4996, %v5356
      %v5385 = vadd.f32 %v4997, %v5255
      %v5386 = vadd.f32 %v4998, %v5257
      %v5387 = vadd.f32 %v4999, %v5361
      %v5388 = vld [vmem:[%s5] sm:$0xff]
      %v5389 = vld [vmem:[%s5 + $0x8] sm:$0xff]
      %v5390 = vld [vmem:[%s5 + $0x10] sm:$0xff]
      %v5391 = vld [vmem:[%s5 + $0x18] sm:$0xff]
      %v5392 = vld [vmem:[%s5 + $0x20] sm:$0xff]
      %v5393 = vld [vmem:[%s5 + $0x28] sm:$0xff]
      %v5394 = vld [vmem:[%s5 + $0x30] sm:$0xff]
      %v5395 = vld [vmem:[%s5 + $0x38] sm:$0xff]
      %5397 = vset.pattern.permute.xlu0 0
      %5398 = vperm.xlu0 %5397, %v5388
      %v5399 = vpop.permute.xlu0 %5398
      %5402 = vset.pattern.permute.xlu0 0
      %5403 = vperm.xlu0 %5402, %v5389
      %v5404 = vpop.permute.xlu0 %5403
      %5407 = vset.pattern.permute.xlu0 0
      %5408 = vperm.xlu0 %5407, %v5390
      %v5409 = vpop.permute.xlu0 %5408
      %5412 = vset.pattern.permute.xlu0 0
      %5413 = vperm.xlu0 %5412, %v5391
      %v5414 = vpop.permute.xlu0 %5413
      %5417 = vset.pattern.permute.xlu0 0
      %5418 = vperm.xlu0 %5417, %v5392
      %v5419 = vpop.permute.xlu0 %5418
      %5422 = vset.pattern.permute.xlu0 0
      %5423 = vperm.xlu0 %5422, %v5393
      %v5424 = vpop.permute.xlu0 %5423
      %5427 = vset.pattern.permute.xlu0 0
      %5428 = vperm.xlu0 %5427, %v5394
      %v5429 = vpop.permute.xlu0 %5428
      %5432 = vset.pattern.permute.xlu0 0
      %5433 = vperm.xlu0 %5432, %v5395
      %v5434 = vpop.permute.xlu0 %5433
      %v5436 = vadd.f32 %v5364, %v5399
      %v5437 = vadd.f32 %v5365, %v5399
      %v5438 = vadd.f32 %v5366, %v5399
      %v5439 = vadd.f32 %v5367, %v5404
      %v5440 = vadd.f32 %v5368, %v5404
      %v5441 = vadd.f32 %v5369, %v5404
      %v5442 = vadd.f32 %v5370, %v5409
      %v5443 = vadd.f32 %v5371, %v5409
      %v5444 = vadd.f32 %v5372, %v5409
      %v5445 = vadd.f32 %v5373, %v5414
      %v5446 = vadd.f32 %v5374, %v5414
      %v5447 = vadd.f32 %v5375, %v5414
      %v5448 = vadd.f32 %v5376, %v5419
      %v5449 = vadd.f32 %v5377, %v5419
      %v5450 = vadd.f32 %v5378, %v5419
      %v5451 = vadd.f32 %v5379, %v5424
      %v5452 = vadd.f32 %v5380, %v5424
      %v5453 = vadd.f32 %v5381, %v5424
      %v5454 = vadd.f32 %v5382, %v5429
      %v5455 = vadd.f32 %v5383, %v5429
      %v5456 = vadd.f32 %v5384, %v5429
      %v5457 = vadd.f32 %v5385, %v5434
      %v5458 = vadd.f32 %v5386, %v5434
      %v5459 = vadd.f32 %v5387, %v5434
      %v5460 = vld [vmem:[%s6] sm:$0xff]
      %v5461 = vld [vmem:[%s6 + $0x8] sm:$0xff]
      %v5462 = vld [vmem:[%s6 + $0x10] sm:$0xff]
      %v5463 = vld [vmem:[%s6 + $0x18] sm:$0xff]
      %v5464 = vld [vmem:[%s6 + $0x20] sm:$0xff]
      %v5465 = vld [vmem:[%s6 + $0x28] sm:$0xff]
      %v5466 = vld [vmem:[%s6 + $0x30] sm:$0xff]
      %v5467 = vld [vmem:[%s6 + $0x38] sm:$0xff]
      %v5468 = vmul.f32 %v5436, %v5436
      %v5469 = vmul.f32 %v5437, %v5437
      %v5470 = vmul.f32 %v5438, %v5438
      %v5471 = vmul.f32 %v5439, %v5439
      %v5472 = vmul.f32 %v5440, %v5440
      %v5473 = vmul.f32 %v5441, %v5441
      %v5474 = vmul.f32 %v5442, %v5442
      %v5475 = vmul.f32 %v5443, %v5443
      %v5476 = vmul.f32 %v5444, %v5444
      %v5477 = vmul.f32 %v5445, %v5445
      %v5478 = vmul.f32 %v5446, %v5446
      %v5479 = vmul.f32 %v5447, %v5447
      %v5480 = vmul.f32 %v5448, %v5448
      %v5481 = vmul.f32 %v5449, %v5449
      %v5482 = vmul.f32 %v5450, %v5450
      %v5483 = vmul.f32 %v5451, %v5451
      %v5484 = vmul.f32 %v5452, %v5452
      %v5485 = vmul.f32 %v5453, %v5453
      %v5486 = vmul.f32 %v5454, %v5454
      %v5487 = vmul.f32 %v5455, %v5455
      %v5488 = vmul.f32 %v5456, %v5456
      %v5489 = vmul.f32 %v5457, %v5457
      %v5490 = vmul.f32 %v5458, %v5458
      %v5491 = vmul.f32 %v5459, %v5459
      %v5492 = vld [vmem:[%s7] sm:$0xff]
      %v5493 = vld [vmem:[%s7 + $0x8] sm:$0xff]
      %v5494 = vld [vmem:[%s7 + $0x10] sm:$0xff]
      %v5495 = vld [vmem:[%s7 + $0x18] sm:$0xff]
      %v5496 = vld [vmem:[%s7 + $0x20] sm:$0xff]
      %v5497 = vld [vmem:[%s7 + $0x28] sm:$0xff]
      %v5498 = vld [vmem:[%s7 + $0x30] sm:$0xff]
      %v5499 = vld [vmem:[%s7 + $0x38] sm:$0xff]
      %5501 = vset.pattern.permute.xlu0 0
      %5502 = vperm.xlu0 %5501, %v5492
      %v5503 = vpop.permute.xlu0 %5502
      %5506 = vset.pattern.permute.xlu0 0
      %5507 = vperm.xlu0 %5506, %v5493
      %v5508 = vpop.permute.xlu0 %5507
      %5511 = vset.pattern.permute.xlu0 0
      %5512 = vperm.xlu0 %5511, %v5494
      %v5513 = vpop.permute.xlu0 %5512
      %5516 = vset.pattern.permute.xlu0 0
      %5517 = vperm.xlu0 %5516, %v5495
      %v5518 = vpop.permute.xlu0 %5517
      %5521 = vset.pattern.permute.xlu0 0
      %5522 = vperm.xlu0 %5521, %v5496
      %v5523 = vpop.permute.xlu0 %5522
      %5526 = vset.pattern.permute.xlu0 0
      %5527 = vperm.xlu0 %5526, %v5497
      %v5528 = vpop.permute.xlu0 %5527
      %5531 = vset.pattern.permute.xlu0 0
      %5532 = vperm.xlu0 %5531, %v5498
      %v5533 = vpop.permute.xlu0 %5532
      %5536 = vset.pattern.permute.xlu0 0
      %5537 = vperm.xlu0 %5536, %v5499
      %v5538 = vpop.permute.xlu0 %5537
      %v5541 = vsel %vm2127, %v5460, 0
      %v5544 = vsel %vm2127, %v5461, 0
      %v5547 = vsel %vm2127, %v5462, 0
      %v5550 = vsel %vm2127, %v5463, 0
      %v5553 = vsel %vm2127, %v5464, 0
      %v5556 = vsel %vm2127, %v5465, 0
      %v5559 = vsel %vm2127, %v5466, 0
      %v5562 = vsel %vm2127, %v5467, 0
      %5564 = vmatprep.subr.mxu0 %v5469
      %5565 = vmatpush1.msra.mxu0 %v5468
      %5566 = vmatprep.subr.mxu0 %v5472
      %5567 = vmatpush1.msra.mxu0 %v5471
      %5568 = vmatprep.subr.mxu0 %v5475
      %5569 = vmatpush1.msra.mxu0 %v5474
      %5570 = vmatprep.subr.mxu0 %v5478
      %5571 = vmatpush1.msra.mxu0 %v5477
      %5572 = vmatprep.subr.mxu0 %v5481
      %5573 = vmatpush1.msra.mxu0 %v5480
      %5574 = vmatprep.subr.mxu0 %v5484
      %5575 = vmatpush1.msra.mxu0 %v5483
      %5576 = vmatprep.subr.mxu0 %v5487
      %5577 = vmatpush1.msra.mxu0 %v5486
      %5578 = vmatprep.subr.mxu0 %v5490
      %5579 = vmatpush1.msra.mxu0 %v5489
      %5580 = vmatprep.subr.mxu0 0.0
      %5581 = vmatpush1.msra.mxu0 0.0
      %5582 = vmatprep.subr.mxu0 0.0
      %5583 = vmatpush1.msra.mxu0 0.0
      %5584 = vmatprep.subr.mxu0 0.0
      %5585 = vmatpush1.msra.mxu0 0.0
      %5586 = vmatprep.subr.mxu0 0.0
      %5587 = vmatpush1.msra.mxu0 0.0
      %5588 = vmatprep.subr.mxu0 0.0
      %5589 = vmatpush1.msra.mxu0 0.0
      %5590 = vmatprep.subr.mxu0 0.0
      %5591 = vmatpush1.msra.mxu0 0.0
      %5592 = vmatprep.subr.mxu0 0.0
      %5593 = vmatpush1.msra.mxu0 0.0
      %5594 = vmatprep.subr.mxu0 0.0
      %5595 = vmatpush1.msra.mxu0 0.0
      %5596 = vmatprep.subr.mxu0 0.0
      %5597 = vmatpush1.msra.mxu0 0.0
      %5598 = vmatprep.subr.mxu0 0.0
      %5599 = vmatpush1.msra.mxu0 0.0
      %5600 = vmatprep.subr.mxu0 0.0
      %5601 = vmatpush1.msra.mxu0 0.0
      %5602 = vmatprep.subr.mxu0 0.0
      %5603 = vmatpush1.msra.mxu0 0.0
      %5604 = vmatprep.subr.mxu0 0.0
      %5605 = vmatpush1.msra.mxu0 0.0
      %5606 = vmatprep.subr.mxu0 0.0
      %5607 = vmatpush1.msra.mxu0 0.0
      %5608 = vmatprep.subr.mxu0 0.0
      %5609 = vmatpush1.msra.mxu0 0.0
      %5610 = vmatprep.subr.mxu0 0.0
      %5611 = vmatpush1.msra.mxu0 0.0
      %5612 = vmatprep.subr.mxu0 0.0
      %5613 = vmatpush1.msra.mxu0 0.0
      %5614 = vmatprep.subr.mxu0 0.0
      %5615 = vmatpush1.msra.mxu0 0.0
      %5616 = vmatprep.subr.mxu0 0.0
      %5617 = vmatpush1.msra.mxu0 0.0
      %5618 = vmatprep.subr.mxu0 0.0
      %5619 = vmatpush1.msra.mxu0 0.0
      %5620 = vmatprep.subr.mxu0 0.0
      %5621 = vmatpush1.msra.mxu0 0.0
      %5622 = vmatprep.subr.mxu0 0.0
      %5623 = vmatpush1.msra.mxu0 0.0
      %5624 = vmatprep.subr.mxu0 0.0
      %5625 = vmatpush1.msra.mxu0 0.0
      %5626 = vmatprep.subr.mxu0 0.0
      %5627 = vmatpush1.msra.mxu0 0.0
      %5628 = vmatprep.mubr.f32.mxu0 0.0
      %5629 = vmatmul.mubr.f32.gmra.mrb[0].mxu0 %v5541
      %v5630 = vpop.f32.mrb[0].mxu0
      %v5631 = vadd.f32 %v5503, %v5630
      %v5632 = vpop.f32.mrb[0].mxu0
      %v5633 = vadd.f32 %v5503, %v5632
      %5634 = vmatprep.mubr.f32.mxu0 0.0
      %5635 = vmatmul.mubr.f32.gmra.mrb[0].mxu0 %v5544
      %v5636 = vpop.f32.mrb[0].mxu0
      %v5637 = vadd.f32 %v5508, %v5636
      %v5638 = vpop.f32.mrb[0].mxu0
      %v5639 = vadd.f32 %v5508, %v5638
      %5640 = vmatprep.mubr.f32.mxu0 0.0
      %5641 = vmatmul.mubr.f32.gmra.mrb[0].mxu0 %v5547
      %v5642 = vpop.f32.mrb[0].mxu0
      %v5643 = vadd.f32 %v5513, %v5642
      %v5644 = vpop.f32.mrb[0].mxu0
      %v5645 = vadd.f32 %v5513, %v5644
      %5646 = vmatprep.mubr.f32.mxu0 0.0
      %5647 = vmatmul.mubr.f32.gmra.mrb[0].mxu0 %v5550
      %v5648 = vpop.f32.mrb[0].mxu0
      %v5649 = vadd.f32 %v5518, %v5648
      %v5650 = vpop.f32.mrb[0].mxu0
      %v5651 = vadd.f32 %v5518, %v5650
      %5652 = vmatprep.mubr.f32.mxu0 0.0
      %5653 = vmatmul.mubr.f32.gmra.mrb[0].mxu0 %v5553
      %v5654 = vpop.f32.mrb[0].mxu0
      %v5655 = vadd.f32 %v5523, %v5654
      %v5656 = vpop.f32.mrb[0].mxu0
      %v5657 = vadd.f32 %v5523, %v5656
      %5658 = vmatprep.mubr.f32.mxu0 0.0
      %5659 = vmatmul.mubr.f32.gmra.mrb[0].mxu0 %v5556
      %v5660 = vpop.f32.mrb[0].mxu0
      %v5661 = vadd.f32 %v5528, %v5660
      %v5662 = vpop.f32.mrb[0].mxu0
      %v5663 = vadd.f32 %v5528, %v5662
      %5664 = vmatprep.mubr.f32.mxu0 0.0
      %5665 = vmatmul.mubr.f32.gmra.mrb[0].mxu0 %v5559
      %v5666 = vpop.f32.mrb[0].mxu0
      %v5667 = vadd.f32 %v5533, %v5666
      %v5668 = vpop.f32.mrb[0].mxu0
      %v5669 = vadd.f32 %v5533, %v5668
      %5670 = vmatprep.mubr.f32.mxu0 0.0
      %5671 = vmatmul.mubr.f32.gmra.mrb[0].mxu0 %v5562
      %v5672 = vpop.f32.mrb[0].mxu0
      %v5673 = vadd.f32 %v5538, %v5672
      %v5674 = vpop.f32.mrb[0].mxu0
      %v5675 = vadd.f32 %v5538, %v5674
      %5676 = vdwg.mxu0
      %5677 = vmatprep.subr.mxu0 0.0
      %5678 = vmatpush1.msra.mxu0 %v5470
      %5679 = vmatprep.subr.mxu0 0.0
      %5680 = vmatpush1.msra.mxu0 %v5473
      %5681 = vmatprep.subr.mxu0 0.0
      %5682 = vmatpush1.msra.mxu0 %v5476
      %5683 = vmatprep.subr.mxu0 0.0
      %5684 = vmatpush1.msra.mxu0 %v5479
      %5685 = vmatprep.subr.mxu0 0.0
      %5686 = vmatpush1.msra.mxu0 %v5482
      %5687 = vmatprep.subr.mxu0 0.0
      %5688 = vmatpush1.msra.mxu0 %v5485
      %5689 = vmatprep.subr.mxu0 0.0
      %5690 = vmatpush1.msra.mxu0 %v5488
      %5691 = vmatprep.subr.mxu0 0.0
      %5692 = vmatpush1.msra.mxu0 %v5491
      %5693 = vmatprep.subr.mxu0 0.0
      %5694 = vmatpush1.msra.mxu0 0.0
      %5695 = vmatprep.subr.mxu0 0.0
      %5696 = vmatpush1.msra.mxu0 0.0
      %5697 = vmatprep.subr.mxu0 0.0
      %5698 = vmatpush1.msra.mxu0 0.0
      %5699 = vmatprep.subr.mxu0 0.0
      %5700 = vmatpush1.msra.mxu0 0.0
      %5701 = vmatprep.subr.mxu0 0.0
      %5702 = vmatpush1.msra.mxu0 0.0
      %5703 = vmatprep.subr.mxu0 0.0
      %5704 = vmatpush1.msra.mxu0 0.0
      %5705 = vmatprep.subr.mxu0 0.0
      %5706 = vmatpush1.msra.mxu0 0.0
      %5707 = vmatprep.subr.mxu0 0.0
      %5708 = vmatpush1.msra.mxu0 0.0
      %5709 = vmatprep.subr.mxu0 0.0
      %5710 = vmatpush1.msra.mxu0 0.0
      %5711 = vmatprep.subr.mxu0 0.0
      %5712 = vmatpush1.msra.mxu0 0.0
      %5713 = vmatprep.subr.mxu0 0.0
      %5714 = vmatpush1.msra.mxu0 0.0
      %5715 = vmatprep.subr.mxu0 0.0
      %5716 = vmatpush1.msra.mxu0 0.0
      %5717 = vmatprep.subr.mxu0 0.0
      %5718 = vmatpush1.msra.mxu0 0.0
      %5719 = vmatprep.subr.mxu0 0.0
      %5720 = vmatpush1.msra.mxu0 0.0
      %5721 = vmatprep.subr.mxu0 0.0
      %5722 = vmatpush1.msra.mxu0 0.0
      %5723 = vmatprep.subr.mxu0 0.0
      %5724 = vmatpush1.msra.mxu0 0.0
      %5725 = vmatprep.subr.mxu0 0.0
      %5726 = vmatpush1.msra.mxu0 0.0
      %5727 = vmatprep.subr.mxu0 0.0
      %5728 = vmatpush1.msra.mxu0 0.0
      %5729 = vmatprep.subr.mxu0 0.0
      %5730 = vmatpush1.msra.mxu0 0.0
      %5731 = vmatprep.subr.mxu0 0.0
      %5732 = vmatpush1.msra.mxu0 0.0
      %5733 = vmatprep.subr.mxu0 0.0
      %5734 = vmatpush1.msra.mxu0 0.0
      %5735 = vmatprep.subr.mxu0 0.0
      %5736 = vmatpush1.msra.mxu0 0.0
      %5737 = vmatprep.subr.mxu0 0.0
      %5738 = vmatpush1.msra.mxu0 0.0
      %5739 = vmatprep.subr.mxu0 0.0
      %5740 = vmatpush1.msra.mxu0 0.0
      %5741 = vmatprep.mubr.f32.mxu0 0.0
      %5742 = vmatmul.mubr.f32.gmra.mrb[0].mxu0 %v5541
      %v5743 = vpop.f32.mrb[0].mxu0
      %v5744 = vadd.f32 %v5503, %v5743
      %v5745 = vpop.f32.mrb[0].mxu0
      %5746 = vmatprep.mubr.f32.mxu0 0.0
      %5747 = vmatmul.mubr.f32.gmra.mrb[0].mxu0 %v5544
      %v5748 = vpop.f32.mrb[0].mxu0
      %v5749 = vadd.f32 %v5508, %v5748
      %v5750 = vpop.f32.mrb[0].mxu0
      %5751 = vmatprep.mubr.f32.mxu0 0.0
      %5752 = vmatmul.mubr.f32.gmra.mrb[0].mxu0 %v5547
      %v5753 = vpop.f32.mrb[0].mxu0
      %v5754 = vadd.f32 %v5513, %v5753
      %v5755 = vpop.f32.mrb[0].mxu0
      %5756 = vmatprep.mubr.f32.mxu0 0.0
      %5757 = vmatmul.mubr.f32.gmra.mrb[0].mxu0 %v5550
      %v5758 = vpop.f32.mrb[0].mxu0
      %v5759 = vadd.f32 %v5518, %v5758
      %v5760 = vpop.f32.mrb[0].mxu0
      %5761 = vmatprep.mubr.f32.mxu0 0.0
      %5762 = vmatmul.mubr.f32.gmra.mrb[0].mxu0 %v5553
      %v5763 = vpop.f32.mrb[0].mxu0
      %v5764 = vadd.f32 %v5523, %v5763
      %v5765 = vpop.f32.mrb[0].mxu0
      %5766 = vmatprep.mubr.f32.mxu0 0.0
      %5767 = vmatmul.mubr.f32.gmra.mrb[0].mxu0 %v5556
      %v5768 = vpop.f32.mrb[0].mxu0
      %v5769 = vadd.f32 %v5528, %v5768
      %v5770 = vpop.f32.mrb[0].mxu0
      %5771 = vmatprep.mubr.f32.mxu0 0.0
      %5772 = vmatmul.mubr.f32.gmra.mrb[0].mxu0 %v5559
      %v5773 = vpop.f32.mrb[0].mxu0
      %v5774 = vadd.f32 %v5533, %v5773
      %v5775 = vpop.f32.mrb[0].mxu0
      %5776 = vmatprep.mubr.f32.mxu0 0.0
      %5777 = vmatmul.mubr.f32.gmra.mrb[0].mxu0 %v5562
      %v5778 = vpop.f32.mrb[0].mxu0
      %v5779 = vadd.f32 %v5538, %v5778
      %v5780 = vpop.f32.mrb[0].mxu0
      %5781 = vdwg.mxu0
      %v5782 = vrsqrt.pop %v5631
      %v5783 = vmul.f32 %v5631, %v5782
      %vm5784 = vcmp.eq.f32.partialorder %v5631, inf
      %v5785 = vsel %vm5784, %v5631, %v5783
      %vm5786 = vcmp.eq.f32.partialorder %v5631, 0.0
      %v5787 = vand.u32 %v5631, 2147483648
      %v5788 = vsel %vm5786, %v5787, %v5785
      %v5789 = vrsqrt.pop %v5633
      %v5790 = vmul.f32 %v5633, %v5789
      %vm5791 = vcmp.eq.f32.partialorder %v5633, inf
      %v5792 = vsel %vm5791, %v5633, %v5790
      %vm5793 = vcmp.eq.f32.partialorder %v5633, 0.0
      %v5794 = vand.u32 %v5633, 2147483648
      %v5795 = vsel %vm5793, %v5794, %v5792
      %v5796 = vrsqrt.pop %v5744
      %v5797 = vmul.f32 %v5744, %v5796
      %vm5798 = vcmp.eq.f32.partialorder %v5744, inf
      %v5799 = vsel %vm5798, %v5744, %v5797
      %vm5800 = vcmp.eq.f32.partialorder %v5744, 0.0
      %v5801 = vand.u32 %v5744, 2147483648
      %v5802 = vsel %vm5800, %v5801, %v5799
      %v5803 = vrsqrt.pop %v5637
      %v5804 = vmul.f32 %v5637, %v5803
      %vm5805 = vcmp.eq.f32.partialorder %v5637, inf
      %v5806 = vsel %vm5805, %v5637, %v5804
      %vm5807 = vcmp.eq.f32.partialorder %v5637, 0.0
      %v5808 = vand.u32 %v5637, 2147483648
      %v5809 = vsel %vm5807, %v5808, %v5806
      %v5810 = vrsqrt.pop %v5639
      %v5811 = vmul.f32 %v5639, %v5810
      %vm5812 = vcmp.eq.f32.partialorder %v5639, inf
      %v5813 = vsel %vm5812, %v5639, %v5811
      %vm5814 = vcmp.eq.f32.partialorder %v5639, 0.0
      %v5815 = vand.u32 %v5639, 2147483648
      %v5816 = vsel %vm5814, %v5815, %v5813
      %v5817 = vrsqrt.pop %v5749
      %v5818 = vmul.f32 %v5749, %v5817
      %vm5819 = vcmp.eq.f32.partialorder %v5749, inf
      %v5820 = vsel %vm5819, %v5749, %v5818
      %vm5821 = vcmp.eq.f32.partialorder %v5749, 0.0
      %v5822 = vand.u32 %v5749, 2147483648
      %v5823 = vsel %vm5821, %v5822, %v5820
      %v5824 = vrsqrt.pop %v5643
      %v5825 = vmul.f32 %v5643, %v5824
      %vm5826 = vcmp.eq.f32.partialorder %v5643, inf
      %v5827 = vsel %vm5826, %v5643, %v5825
      %vm5828 = vcmp.eq.f32.partialorder %v5643, 0.0
      %v5829 = vand.u32 %v5643, 2147483648
      %v5830 = vsel %vm5828, %v5829, %v5827
      %v5831 = vrsqrt.pop %v5645
      %v5832 = vmul.f32 %v5645, %v5831
      %vm5833 = vcmp.eq.f32.partialorder %v5645, inf
      %v5834 = vsel %vm5833, %v5645, %v5832
      %vm5835 = vcmp.eq.f32.partialorder %v5645, 0.0
      %v5836 = vand.u32 %v5645, 2147483648
      %v5837 = vsel %vm5835, %v5836, %v5834
      %v5838 = vrsqrt.pop %v5754
      %v5839 = vmul.f32 %v5754, %v5838
      %vm5840 = vcmp.eq.f32.partialorder %v5754, inf
      %v5841 = vsel %vm5840, %v5754, %v5839
      %vm5842 = vcmp.eq.f32.partialorder %v5754, 0.0
      %v5843 = vand.u32 %v5754, 2147483648
      %v5844 = vsel %vm5842, %v5843, %v5841
      %v5845 = vrsqrt.pop %v5649
      %v5846 = vmul.f32 %v5649, %v5845
      %vm5847 = vcmp.eq.f32.partialorder %v5649, inf
      %v5848 = vsel %vm5847, %v5649, %v5846
      %vm5849 = vcmp.eq.f32.partialorder %v5649, 0.0
      %v5850 = vand.u32 %v5649, 2147483648
      %v5851 = vsel %vm5849, %v5850, %v5848
      %v5852 = vrsqrt.pop %v5651
      %v5853 = vmul.f32 %v5651, %v5852
      %vm5854 = vcmp.eq.f32.partialorder %v5651, inf
      %v5855 = vsel %vm5854, %v5651, %v5853
      %vm5856 = vcmp.eq.f32.partialorder %v5651, 0.0
      %v5857 = vand.u32 %v5651, 2147483648
      %v5858 = vsel %vm5856, %v5857, %v5855
      %v5859 = vrsqrt.pop %v5759
      %v5860 = vmul.f32 %v5759, %v5859
      %vm5861 = vcmp.eq.f32.partialorder %v5759, inf
      %v5862 = vsel %vm5861, %v5759, %v5860
      %vm5863 = vcmp.eq.f32.partialorder %v5759, 0.0
      %v5864 = vand.u32 %v5759, 2147483648
      %v5865 = vsel %vm5863, %v5864, %v5862
      %v5866 = vrsqrt.pop %v5655
      %v5867 = vmul.f32 %v5655, %v5866
      %vm5868 = vcmp.eq.f32.partialorder %v5655, inf
      %v5869 = vsel %vm5868, %v5655, %v5867
      %vm5870 = vcmp.eq.f32.partialorder %v5655, 0.0
      %v5871 = vand.u32 %v5655, 2147483648
      %v5872 = vsel %vm5870, %v5871, %v5869
      %v5873 = vrsqrt.pop %v5657
      %v5874 = vmul.f32 %v5657, %v5873
      %vm5875 = vcmp.eq.f32.partialorder %v5657, inf
      %v5876 = vsel %vm5875, %v5657, %v5874
      %vm5877 = vcmp.eq.f32.partialorder %v5657, 0.0
      %v5878 = vand.u32 %v5657, 2147483648
      %v5879 = vsel %vm5877, %v5878, %v5876
      %v5880 = vrsqrt.pop %v5764
      %v5881 = vmul.f32 %v5764, %v5880
      %vm5882 = vcmp.eq.f32.partialorder %v5764, inf
      %v5883 = vsel %vm5882, %v5764, %v5881
      %vm5884 = vcmp.eq.f32.partialorder %v5764, 0.0
      %v5885 = vand.u32 %v5764, 2147483648
      %v5886 = vsel %vm5884, %v5885, %v5883
      %v5887 = vrsqrt.pop %v5661
      %v5888 = vmul.f32 %v5661, %v5887
      %vm5889 = vcmp.eq.f32.partialorder %v5661, inf
      %v5890 = vsel %vm5889, %v5661, %v5888
      %vm5891 = vcmp.eq.f32.partialorder %v5661, 0.0
      %v5892 = vand.u32 %v5661, 2147483648
      %v5893 = vsel %vm5891, %v5892, %v5890
      %v5894 = vrsqrt.pop %v5663
      %v5895 = vmul.f32 %v5663, %v5894
      %vm5896 = vcmp.eq.f32.partialorder %v5663, inf
      %v5897 = vsel %vm5896, %v5663, %v5895
      %vm5898 = vcmp.eq.f32.partialorder %v5663, 0.0
      %v5899 = vand.u32 %v5663, 2147483648
      %v5900 = vsel %vm5898, %v5899, %v5897
      %v5901 = vrsqrt.pop %v5769
      %v5902 = vmul.f32 %v5769, %v5901
      %vm5903 = vcmp.eq.f32.partialorder %v5769, inf
      %v5904 = vsel %vm5903, %v5769, %v5902
      %vm5905 = vcmp.eq.f32.partialorder %v5769, 0.0
      %v5906 = vand.u32 %v5769, 2147483648
      %v5907 = vsel %vm5905, %v5906, %v5904
      %v5908 = vrsqrt.pop %v5667
      %v5909 = vmul.f32 %v5667, %v5908
      %vm5910 = vcmp.eq.f32.partialorder %v5667, inf
      %v5911 = vsel %vm5910, %v5667, %v5909
      %vm5912 = vcmp.eq.f32.partialorder %v5667, 0.0
      %v5913 = vand.u32 %v5667, 2147483648
      %v5914 = vsel %vm5912, %v5913, %v5911
      %v5915 = vrsqrt.pop %v5669
      %v5916 = vmul.f32 %v5669, %v5915
      %vm5917 = vcmp.eq.f32.partialorder %v5669, inf
      %v5918 = vsel %vm5917, %v5669, %v5916
      %vm5919 = vcmp.eq.f32.partialorder %v5669, 0.0
      %v5920 = vand.u32 %v5669, 2147483648
      %v5921 = vsel %vm5919, %v5920, %v5918
      %v5922 = vrsqrt.pop %v5774
      %v5923 = vmul.f32 %v5774, %v5922
      %vm5924 = vcmp.eq.f32.partialorder %v5774, inf
      %v5925 = vsel %vm5924, %v5774, %v5923
      %vm5926 = vcmp.eq.f32.partialorder %v5774, 0.0
      %v5927 = vand.u32 %v5774, 2147483648
      %v5928 = vsel %vm5926, %v5927, %v5925
      %v5929 = vrsqrt.pop %v5673
      %v5930 = vmul.f32 %v5673, %v5929
      %vm5931 = vcmp.eq.f32.partialorder %v5673, inf
      %v5932 = vsel %vm5931, %v5673, %v5930
      %vm5933 = vcmp.eq.f32.partialorder %v5673, 0.0
      %v5934 = vand.u32 %v5673, 2147483648
      %v5935 = vsel %vm5933, %v5934, %v5932
      %v5936 = vrsqrt.pop %v5675
      %v5937 = vmul.f32 %v5675, %v5936
      %vm5938 = vcmp.eq.f32.partialorder %v5675, inf
      %v5939 = vsel %vm5938, %v5675, %v5937
      %vm5940 = vcmp.eq.f32.partialorder %v5675, 0.0
      %v5941 = vand.u32 %v5675, 2147483648
      %v5942 = vsel %vm5940, %v5941, %v5939
      %v5943 = vrsqrt.pop %v5779
      %v5944 = vmul.f32 %v5779, %v5943
      %vm5945 = vcmp.eq.f32.partialorder %v5779, inf
      %v5946 = vsel %vm5945, %v5779, %v5944
      %vm5947 = vcmp.eq.f32.partialorder %v5779, 0.0
      %v5948 = vand.u32 %v5779, 2147483648
      %v5949 = vsel %vm5947, %v5948, %v5946
      %v5950 = vmul.f32 %v5436, %v5788
      %v5951 = vmul.f32 %v5437, %v5795
      %v5952 = vmul.f32 %v5438, %v5802
      %v5953 = vmul.f32 %v5439, %v5809
      %v5954 = vmul.f32 %v5440, %v5816
      %v5955 = vmul.f32 %v5441, %v5823
      %v5956 = vmul.f32 %v5442, %v5830
      %v5957 = vmul.f32 %v5443, %v5837
      %v5958 = vmul.f32 %v5444, %v5844
      %v5959 = vmul.f32 %v5445, %v5851
      %v5960 = vmul.f32 %v5446, %v5858
      %v5961 = vmul.f32 %v5447, %v5865
      %v5962 = vmul.f32 %v5448, %v5872
      %v5963 = vmul.f32 %v5449, %v5879
      %v5964 = vmul.f32 %v5450, %v5886
      %v5965 = vmul.f32 %v5451, %v5893
      %v5966 = vmul.f32 %v5452, %v5900
      %v5967 = vmul.f32 %v5453, %v5907
      %v5968 = vmul.f32 %v5454, %v5914
      %v5969 = vmul.f32 %v5455, %v5921
      %v5970 = vmul.f32 %v5456, %v5928
      %v5971 = vmul.f32 %v5457, %v5935
      %v5972 = vmul.f32 %v5458, %v5942
      %v5973 = vmul.f32 %v5459, %v5949
      %v5974 = vadd.f32 %v5950, %v1756
      %v5975 = vadd.f32 %v5951, %v1757
      %v5976 = vadd.f32 %v5952, %v1758
      %v5977 = vadd.f32 %v5953, %v1759
      %v5978 = vadd.f32 %v5954, %v1760
      %v5979 = vadd.f32 %v5955, %v1761
      %v5980 = vadd.f32 %v5956, %v1762
      %v5981 = vadd.f32 %v5957, %v1763
      %v5982 = vadd.f32 %v5958, %v1764
      %v5983 = vadd.f32 %v5959, %v1765
      %v5984 = vadd.f32 %v5960, %v1766
      %v5985 = vadd.f32 %v5961, %v1767
      %v5986 = vadd.f32 %v5962, %v1768
      %v5987 = vadd.f32 %v5963, %v1769
      %v5988 = vadd.f32 %v5964, %v1770
      %v5989 = vadd.f32 %v5965, %v1771
      %v5990 = vadd.f32 %v5966, %v1772
      %v5991 = vadd.f32 %v5967, %v1773
      %v5992 = vadd.f32 %v5968, %v1774
      %v5993 = vadd.f32 %v5969, %v1775
      %v5994 = vadd.f32 %v5970, %v1776
      %v5995 = vadd.f32 %v5971, %v1777
      %v5996 = vadd.f32 %v5972, %v1778
      %v5997 = vadd.f32 %v5973, %v1779
      %5998 = vst [vmem:[%s305] sm:$0xff] %v5974
      %5999 = vst [vmem:[%s305 + $0x8] sm:$0xff] %v5975
      %6000 = vst [vmem:[%s305 + $0x10] sm:$0xff] %v5976
      %6001 = vst [vmem:[%s305 + $0x18] sm:$0xff] %v5977
      %6002 = vst [vmem:[%s305 + $0x20] sm:$0xff] %v5978
      %6003 = vst [vmem:[%s305 + $0x28] sm:$0xff] %v5979
      %6004 = vst [vmem:[%s305 + $0x30] sm:$0xff] %v5980
      %6005 = vst [vmem:[%s305 + $0x38] sm:$0xff] %v5981
      %6006 = vst [vmem:[%s305 + $0x40] sm:$0xff] %v5982
      %6007 = vst [vmem:[%s305 + $0x48] sm:$0xff] %v5983
      %6008 = vst [vmem:[%s305 + $0x50] sm:$0xff] %v5984
      %6009 = vst [vmem:[%s305 + $0x58] sm:$0xff] %v5985
      %6010 = vst [vmem:[%s305 + $0x60] sm:$0xff] %v5986
      %6011 = vst [vmem:[%s305 + $0x68] sm:$0xff] %v5987
      %6012 = vst [vmem:[%s305 + $0x70] sm:$0xff] %v5988
      %6013 = vst [vmem:[%s305 + $0x78] sm:$0xff] %v5989
      %6014 = vst [vmem:[%s305 + $0x80] sm:$0xff] %v5990
      %6015 = vst [vmem:[%s305 + $0x88] sm:$0xff] %v5991
      %6016 = vst [vmem:[%s305 + $0x90] sm:$0xff] %v5992
      %6017 = vst [vmem:[%s305 + $0x98] sm:$0xff] %v5993
      %6018 = vst [vmem:[%s305 + $0xa0] sm:$0xff] %v5994
      %6019 = vst [vmem:[%s305 + $0xa8] sm:$0xff] %v5995
      %6020 = vst [vmem:[%s305 + $0xb0] sm:$0xff] %v5996
      %6021 = vst [vmem:[%s305 + $0xb8] sm:$0xff] %v5997
      %p6022 = scmp.lt.s32.totalorder %s19, 1
      %s6023 = scalar_select %p6022, %s19, 1
      %s6024 = smul.addr %s6023, 24
      %s6025 = smul.addr %s6024, 8
      %s6026 = scalar_lea.vmem %s8, %s6025
      // Predicated region
      $region53: #{residual_block_upsample_forward.1} parent=51 // pred_check
        %p6027 = pneg %p210
      $region54: #{residual_block_upsample_forward.1} parent=51 // pred_check_branch
        %6029 = sbr.rel (%p6027) target = $region56
      $region55: #{residual_block_upsample_forward.1} parent=51 // pred_region
        _
      $region56: #{residual_block_upsample_forward.1} parent=51 // pred_fallthru
        _
    $region52: #{residual_block_upsample_forward.1} parent=5 // pred_fallthru
      _
    %p6030 = scmp.le.s32.totalorder 2, %s14
    // Predicated region
    $region57: #{residual_block_upsample_forward.1} parent=5 // pred_check
      %p6031 = pneg %p6030
    $region58: #{residual_block_upsample_forward.1} parent=5 // pred_check_branch
      %6033 = sbr.rel (%p6031) target = $region60
    $region59: #{residual_block_upsample_forward.1} parent=5 // pred_region
      %s6034 = ssub.s32 %s14, 2
      // Predicated region
      $region61: #{residual_block_upsample_forward.1} parent=59 // pred_check
        %p6035 = pneg %p216
      $region62: #{residual_block_upsample_forward.1} parent=59 // pred_check_branch
        %6037 = sbr.rel (%p6035) target = $region64
      $region63: #{residual_block_upsample_forward.1} parent=59 // pred_region
        %p6038 = scmp.lt.s32.totalorder %s20, 1
        %s6039 = scalar_select %p6038, %s20, 1
        %s6040 = smul.addr %s6039, 24
        %s6041 = smul.addr %s6040, 8
        %s6042 = scalar_lea.vmem %s8, %s6041
      $region64: #{residual_block_upsample_forward.1} parent=59 // pred_fallthru
        _
    $region60: #{residual_block_upsample_forward.1} parent=5 // pred_fallthru
      _
  $region6: #{residual_block_upsample_forward.1} parent=0 // loop_footer
    %s18 = sadd.s32 1, %s14
  $region7: #{residual_block_upsample_forward.1} parent=0 // loop_footer_branch
    %13 = sbr.rel target = $region3
  $region8: #{residual_block_upsample_forward.1} parent=0 // loop_exit
    _

</llo_original>
